<compile_context>
chip_gen: v7x
topology: tpu7x:2x2x1
jax: 0.10.0
libtpu: 0.0.40
codegen_flags: <defaults>
</compile_context>

<pallas_src>
import math
import numpy as np
import jax
import jax.numpy as jnp
from jax import lax
from jax.experimental import pallas as pl
from jax.experimental.pallas import tpu as pltpu  # noqa: F401  (TPU backend)

# ----------------------- hyperparameters (small) -----------------------
BATCH = 2
SEQ = 8                      # n
DIM = 32                     # model dim
DEPTH = 2
HEADS = 4
DIM_HEAD = 32
QDIM = HEADS * DIM_HEAD      # 128 (fused-head q width)
FF_MULT = 4
INNER = FF_MULT * DIM        # 128
ROT_DIM = min(32, DIM_HEAD)  # rotary dims (rest pass through)
NUM_BUCKETS = 32
MAX_DISTANCE = 128
COSINE_SIM_SCALE = 16.0
SQRT_SCALE = math.sqrt(COSINE_SIM_SCALE)
LN_EPS = 1e-5                # fp32 eps of reference LayerNorm
L2_EPS_SQ = 1e-24            # (F.normalize eps = 1e-12) squared
MAX_NEG = -3.4028234663852886e38   # -finfo(float32).max


# ----------------------- in-kernel helpers (jnp only) -----------------------
def _layernorm(x, g, eps=LN_EPS):
    mean = jnp.mean(x, axis=-1, keepdims=True)
    var = jnp.mean(jnp.square(x - mean), axis=-1, keepdims=True)  # unbiased=False
    return (x - mean) * lax.rsqrt(var + eps) * g


# ----------------------- the fused Pallas kernel -----------------------
def fused_transformer_kernel(
        x_ref, bias_ref, cos_q_ref, sin_q_ref, rot_q_ref, hd_ones_ref,
        attn_g_ref, attn_wqkv_ref, attn_nkv_ref, attn_wo_ref, attn_go_ref,
        ff_g_ref, ff_w1_ref, ff_w2_ref, final_g_ref, wproj_ref,
        o_ref):
    # x_ref:        (B*SEQ, DIM)
    # bias_ref:     (HEADS, SEQ, SEQ+1)   rel-pos bias, null key at column 0
    # cos_q/sin_q:  (B*SEQ, QDIM)         rotary tables tiled over batch & heads
    # rot_q:        (QDIM, QDIM)          block-diag rotate_half matrix
    # hd_ones:      (QDIM, QDIM)          block-diag ones (per-head sum-of-squares)
    # attn_*/ff_*:  stacked over DEPTH on axis 0
    x = x_ref[...]                                    # (16, 32)
    bias = bias_ref[...]                              # (4, 8, 9)
    cos_q = cos_q_ref[...]                            # (16, 128)
    sin_q = sin_q_ref[...]
    rot_q = rot_q_ref[...]                            # (128, 128)
    hd_ones = hd_ones_ref[...]                        # (128, 128)
    cos_k = cos_q[:, :DIM_HEAD]                       # (16, 32)  (head-0 block == cos)
    sin_k = sin_q[:, :DIM_HEAD]
    rot_k = rot_q[:DIM_HEAD, :DIM_HEAD]

    # causal mask over [null | keys]: key column j masked when j - i >= 2
    row = lax.broadcasted_iota(jnp.int32, (SEQ, SEQ + 1), 0)
    col = lax.broadcasted_iota(jnp.int32, (SEQ, SEQ + 1), 1)
    causal = col > row + 1                            # null column (j=0) never masked

    for l in range(DEPTH):                            # static unroll over layers
        # ----------------------- attention -----------------------
        xn = _layernorm(x, attn_g_ref[l])
        # fused q|k|v projection: (16,32)@(32,192) — lane dense
        qkv = jnp.dot(xn, attn_wqkv_ref[l], preferred_element_type=jnp.float32)
        q = qkv[:, :QDIM]                             # (16, 128) heads concat on lanes
        k = qkv[:, QDIM:QDIM + DIM_HEAD]              # (16, 32)  shared across heads
        v = qkv[:, QDIM + DIM_HEAD:]                  # (16, 32)

        # rotary embedding: t*cos + rotate_half(t)*sin (block-diag ±1 matmul)
        # NOTE: reference's `q = q * self.scale` before rotary is a no-op under
        # the following l2norm (positive scale), so it is dropped.
        q = q * cos_q + jnp.dot(q, rot_q, preferred_element_type=jnp.float32) * sin_q
        k = k * cos_k + jnp.dot(k, rot_k, preferred_element_type=jnp.float32) * sin_k

        # cosine-sim attention: per-head l2norm of q, lane-dense via block-diag ones
        ssq_q = jnp.dot(q * q, hd_ones, preferred_element_type=jnp.float32)
        q = q * lax.rsqrt(jnp.maximum(ssq_q, L2_EPS_SQ)) * SQRT_SCALE
        ssq_k = jnp.sum(k * k, axis=-1, keepdims=True)
        k = k * lax.rsqrt(jnp.maximum(ssq_k, L2_EPS_SQ)) * SQRT_SCALE

        nkv = attn_nkv_ref[l]                         # (2, DIM_HEAD)
        nk = nkv[0:1, :]
        nv = nkv[1:2, :]
        ssq_nk = jnp.sum(nk * nk, axis=-1, keepdims=True)
        nk = nk * lax.rsqrt(jnp.maximum(ssq_nk, L2_EPS_SQ)) * SQRT_SCALE

        batch_outs = []
        for b in range(BATCH):                        # static unroll over batch
            r0 = b * SEQ
            q_b = q[r0:r0 + SEQ, :]                               # (8, 128)
            k_full = jnp.concatenate([nk, k[r0:r0 + SEQ, :]], 0)  # (9, 32)  null at row 0
            v_full = jnp.concatenate([nv, v[r0:r0 + SEQ, :]], 0)  # (9, 32)
            head_outs = []
            for h in range(HEADS):                    # static unroll over heads
                qh = q_b[:, h * DIM_HEAD:(h + 1) * DIM_HEAD]      # (8, 32)
                sim = lax.dot_general(qh, k_full, (((1,), (1,)), ((), ())),
                                      preferred_element_type=jnp.float32)  # (8, 9)
                sim = sim + bias[h]
                sim = jnp.where(causal, MAX_NEG, sim)
                m = jnp.max(sim, axis=-1, keepdims=True)
                p = jnp.exp(sim - m)
                inv = pl.reciprocal(jnp.sum(p, axis=-1, keepdims=True), approx=False)
                attn = p * inv
                head_outs.append(jnp.dot(attn, v_full,
                                         preferred_element_type=jnp.float32))  # (8,32)
            batch_outs.append(jnp.concatenate(head_outs, axis=-1))  # (8, 128)
        out_cat = jnp.concatenate(batch_outs, axis=0)               # (16, 128)

        # concat-heads output projection: (16,128)@(128,32) — lane dense
        attn_out = jnp.dot(out_cat, attn_wo_ref[l], preferred_element_type=jnp.float32)
        x = x + _layernorm(attn_out, attn_go_ref[l])                # to_out LN + residual

        # ----------------------- feed-forward (SwiGLU) -----------------------
        xn = _layernorm(x, ff_g_ref[l])
        h1 = jnp.dot(xn, ff_w1_ref[l], preferred_element_type=jnp.float32)  # (16, 256)
        a = h1[:, :INNER]
        gate = h1[:, INNER:]
        act = a * (gate * jax.nn.sigmoid(gate))
        x = x + jnp.dot(act, ff_w2_ref[l], preferred_element_type=jnp.float32)

    # -------------- final stable LayerNorm + output projection --------------
    x = x / jnp.max(x, axis=-1, keepdims=True)        # stable=True (matches reference)
    xn = _layernorm(x, final_g_ref[...])
    o_ref[...] = jnp.dot(xn, wproj_ref[...], preferred_element_type=jnp.float32)


# ----------------------- host-side setup (plain JAX / numpy glue) -----------------------
def rel_pos_bias(n_q, n_k, emb):
    """T5-style relative position bias, (HEADS, n_q, n_k); null key is column 0."""
    q_pos = jnp.arange(n_q)
    k_pos = jnp.arange(n_k)
    rel = k_pos[None, :] - q_pos[:, None]
    nrel = jnp.maximum(-rel, 0)
    max_exact = NUM_BUCKETS // 2
    is_small = nrel < max_exact
    safe = jnp.maximum(nrel, 1).astype(jnp.float32)       # guard log(0); masked by where
    val_if_large = max_exact + (
        jnp.log(safe / max_exact) / math.log(MAX_DISTANCE / max_exact)
        * (NUM_BUCKETS - max_exact)
    ).astype(jnp.int32)
    val_if_large = jnp.minimum(val_if_large, NUM_BUCKETS - 1)
    bucket = jnp.where(is_small, nrel, val_if_large)
    values = emb[bucket]                                   # (n_q, n_k, HEADS)
    return jnp.transpose(values, (2, 0, 1)).astype(jnp.float32)


def rotary_tables(n, batch):
    """Tiled cos/sin (batch*n, QDIM), block-diag rotate_half and per-head-ones matrices."""
    inv_freq = 1.0 / (10000.0 ** (np.arange(0, ROT_DIM, 2, dtype=np.float32) / ROT_DIM))
    t = np.arange(n, dtype=np.float32)
    freqs = np.repeat(t[:, None] * inv_freq[None, :], 2, axis=-1)   # [f0,f0,f1,f1,...]
    cos = np.ones((n, DIM_HEAD), np.float32)
    sin = np.zeros((n, DIM_HEAD), np.float32)
    cos[:, :ROT_DIM] = np.cos(freqs)
    sin[:, :ROT_DIM] = np.sin(freqs)
    cos_q = np.tile(cos, (batch, HEADS))                  # (batch*n, QDIM)
    sin_q = np.tile(sin, (batch, HEADS))
    # rotate_half(t) == t @ R with R[2i+1,2i] = -1, R[2i,2i+1] = +1 (zeros past ROT_DIM)
    R = np.zeros((DIM_HEAD, DIM_HEAD), np.float32)
    for i in range(ROT_DIM // 2):
        R[2 * i + 1, 2 * i] = -1.0
        R[2 * i, 2 * i + 1] = 1.0
    rot_q = np.kron(np.eye(HEADS, dtype=np.float32), R)                        # (QDIM, QDIM)
    hd_ones = np.kron(np.eye(HEADS, dtype=np.float32),
                      np.ones((DIM_HEAD, DIM_HEAD), np.float32))               # (QDIM, QDIM)
    return (jnp.asarray(cos_q), jnp.asarray(sin_q),
            jnp.asarray(rot_q), jnp.asarray(hd_ones))


def init_params(key):
    ks = iter(jax.random.split(key, 6 * DEPTH + 2))

    def lin(shape, fan_in):
        return jax.random.normal(next(ks), shape, jnp.float32) * (fan_in ** -0.5)

    attn_wqkv, attn_nkv, attn_wo, ff_w1, ff_w2 = [], [], [], [], []
    for _ in range(DEPTH):
        wq = lin((DIM, QDIM), DIM)                       # natural (DIM, H*Dh) layout
        wkv = lin((DIM, 2 * DIM_HEAD), DIM)
        attn_wqkv.append(jnp.concatenate([wq, wkv], axis=-1))   # (DIM, QDIM + 2*Dh)
        attn_nkv.append(jax.random.normal(next(ks), (2, DIM_HEAD), jnp.float32))
        attn_wo.append(lin((QDIM, DIM), QDIM))           # concat-heads output proj
        ff_w1.append(lin((DIM, 2 * INNER), DIM))
        ff_w2.append(lin((INNER, DIM), INNER))

    return dict(
        attn_g=jnp.ones((DEPTH, 1, DIM), jnp.float32),
        attn_wqkv=jnp.stack(attn_wqkv),                  # (DEPTH, DIM, 192)
        attn_nkv=jnp.stack(attn_nkv),                    # (DEPTH, 2, DIM_HEAD)
        attn_wo=jnp.stack(attn_wo),                      # (DEPTH, QDIM, DIM)
        attn_go=jnp.ones((DEPTH, 1, DIM), jnp.float32),
        ff_g=jnp.ones((DEPTH, 1, DIM), jnp.float32),
        ff_w1=jnp.stack(ff_w1),                          # (DEPTH, DIM, 2*INNER)
        ff_w2=jnp.stack(ff_w2),                          # (DEPTH, INNER, DIM)
        rel_pos_emb=jax.random.normal(next(ks), (NUM_BUCKETS, HEADS), jnp.float32),
        final_g=jnp.ones((1, DIM), jnp.float32),
        wproj=lin((DIM, DIM), DIM),
    )


def causal_transformer_forward(params, x):
    # init_norm is Identity (norm_in=False); dropout probs are 0 (identity).
    b, n, d = x.shape
    bias = rel_pos_bias(n, n + 1, params["rel_pos_emb"])    # (HEADS, n, n+1), null at col 0
    cos_q, sin_q, rot_q, hd_ones = rotary_tables(n, b)
    x2d = x.reshape(b * n, d)                               # batch folded into sublanes

    out2d = pl.pallas_call(
        fused_transformer_kernel,
        out_shape=jax.ShapeDtypeStruct((b * n, d), jnp.float32),
        # no grid: single invocation, whole arrays resident in VMEM (~0.4 MiB total)
    )(x2d, bias, cos_q, sin_q, rot_q, hd_ones,
      params["attn_g"], params["attn_wqkv"], params["attn_nkv"],
      params["attn_wo"], params["attn_go"],
      params["ff_g"], params["ff_w1"], params["ff_w2"],
      params["final_g"], params["wproj"])
    return out2d.reshape(b, n, d)


if __name__ == "__main__":
    key = jax.random.PRNGKey(0)
    pkey, xkey = jax.random.split(key)
    params = init_params(pkey)
    x = jax.random.normal(xkey, (BATCH, SEQ, DIM), jnp.float32)

    out = jax.jit(causal_transformer_forward)(params, x)
    out = jax.block_until_ready(out)

    assert out.shape == (BATCH, SEQ, DIM), out.shape
    assert bool(jnp.all(jnp.isfinite(out)))
    print("KERNEL_OK")
</pallas_src>

<mosaic_0001>
module attributes {stable_mosaic.version = 11 : i64} {
  func.func @fused_transformer_kernel(%arg0: memref<16x32xf32, #tpu.memory_space<vmem>>, %arg1: memref<4x8x9xf32, #tpu.memory_space<vmem>>, %arg2: memref<16x128xf32, #tpu.memory_space<vmem>>, %arg3: memref<16x128xf32, #tpu.memory_space<vmem>>, %arg4: memref<128x128xf32, #tpu.memory_space<vmem>>, %arg5: memref<128x128xf32, #tpu.memory_space<vmem>>, %arg6: memref<2x1x32xf32, #tpu.memory_space<vmem>>, %arg7: memref<2x32x192xf32, #tpu.memory_space<vmem>>, %arg8: memref<2x2x32xf32, #tpu.memory_space<vmem>>, %arg9: memref<2x128x32xf32, #tpu.memory_space<vmem>>, %arg10: memref<2x1x32xf32, #tpu.memory_space<vmem>>, %arg11: memref<2x1x32xf32, #tpu.memory_space<vmem>>, %arg12: memref<2x32x256xf32, #tpu.memory_space<vmem>>, %arg13: memref<2x128x32xf32, #tpu.memory_space<vmem>>, %arg14: memref<1x32xf32, #tpu.memory_space<vmem>>, %arg15: memref<32x32xf32, #tpu.memory_space<vmem>>, %arg16: memref<16x32xf32, #tpu.memory_space<vmem>>) attributes {dimension_semantics = [], scalar_prefetch = 0 : i64, scratch_operands = 0 : i64, tpu.core_type = #tpu.core_type<tc>} {
    %c0 = arith.constant 0 : index
    %c0_0 = arith.constant 0 : index
    %0 = vector.load %arg0[%c0, %c0_0] : memref<16x32xf32, #tpu.memory_space<vmem>>, vector<16x32xf32>
    %c0_1 = arith.constant 0 : index
    %c0_2 = arith.constant 0 : index
    %c0_3 = arith.constant 0 : index
    %1 = vector.load %arg1[%c0_1, %c0_2, %c0_3] : memref<4x8x9xf32, #tpu.memory_space<vmem>>, vector<4x8x9xf32>
    %c0_4 = arith.constant 0 : index
    %c0_5 = arith.constant 0 : index
    %2 = vector.load %arg2[%c0_4, %c0_5] : memref<16x128xf32, #tpu.memory_space<vmem>>, vector<16x128xf32>
    %c0_6 = arith.constant 0 : index
    %c0_7 = arith.constant 0 : index
    %3 = vector.load %arg3[%c0_6, %c0_7] : memref<16x128xf32, #tpu.memory_space<vmem>>, vector<16x128xf32>
    %c0_8 = arith.constant 0 : index
    %c0_9 = arith.constant 0 : index
    %4 = vector.load %arg4[%c0_8, %c0_9] : memref<128x128xf32, #tpu.memory_space<vmem>>, vector<128x128xf32>
    %c0_10 = arith.constant 0 : index
    %c0_11 = arith.constant 0 : index
    %5 = vector.load %arg5[%c0_10, %c0_11] : memref<128x128xf32, #tpu.memory_space<vmem>>, vector<128x128xf32>
    %6 = vector.extract_strided_slice %2 {offsets = [0, 0], sizes = [16, 32], strides = [1, 1]} : vector<16x128xf32> to vector<16x32xf32>
    %7 = vector.extract_strided_slice %3 {offsets = [0, 0], sizes = [16, 32], strides = [1, 1]} : vector<16x128xf32> to vector<16x32xf32>
    %8 = vector.extract_strided_slice %4 {offsets = [0, 0], sizes = [32, 32], strides = [1, 1]} : vector<128x128xf32> to vector<32x32xf32>
    %9 = tpu.iota {dimensions = array<i32: 0>} : vector<8x9xi32>
    %10 = tpu.iota {dimensions = array<i32: 1>} : vector<8x9xi32>
    %c1_i32 = arith.constant 1 : i32
    %11 = vector.broadcast %c1_i32 : i32 to vector<8x9xi32>
    %12 = arith.addi %9, %11 : vector<8x9xi32>
    %13 = arith.cmpi sgt, %10, %12 : vector<8x9xi32>
    %c0_12 = arith.constant 0 : index
    %c0_13 = arith.constant 0 : index
    %c0_14 = arith.constant 0 : index
    %14 = vector.load %arg6[%c0_12, %c0_13, %c0_14] : memref<2x1x32xf32, #tpu.memory_space<vmem>>, vector<1x1x32xf32>
    %15 = vector.shape_cast %14 : vector<1x1x32xf32> to vector<1x32xf32>
    %cst = arith.constant dense<0.000000e+00> : vector<16xf32>
    %16 = vector.multi_reduction <add>, %0, %cst [1] : vector<16x32xf32> to vector<16xf32>
    %17 = vector.shape_cast %16 : vector<16xf32> to vector<16x1xf32>
    %cst_15 = arith.constant 3.200000e+01 : f32
    %18 = vector.broadcast %cst_15 : f32 to vector<16x1xf32>
    %19 = arith.divf %17, %18 : vector<16x1xf32>
    %20 = vector.broadcast %19 : vector<16x1xf32> to vector<16x32xf32>
    %21 = arith.subf %0, %20 : vector<16x32xf32>
    %22 = arith.mulf %21, %21 : vector<16x32xf32>
    %cst_16 = arith.constant dense<0.000000e+00> : vector<16xf32>
    %23 = vector.multi_reduction <add>, %22, %cst_16 [1] : vector<16x32xf32> to vector<16xf32>
    %24 = vector.shape_cast %23 : vector<16xf32> to vector<16x1xf32>
    %cst_17 = arith.constant 3.200000e+01 : f32
    %25 = vector.broadcast %cst_17 : f32 to vector<16x1xf32>
    %26 = arith.divf %24, %25 : vector<16x1xf32>
    %27 = vector.broadcast %19 : vector<16x1xf32> to vector<16x32xf32>
    %28 = arith.subf %0, %27 : vector<16x32xf32>
    %cst_18 = arith.constant 9.99999974E-6 : f32
    %29 = vector.broadcast %cst_18 : f32 to vector<16x1xf32>
    %30 = arith.addf %26, %29 : vector<16x1xf32>
    %31 = math.rsqrt %30 : vector<16x1xf32>
    %32 = vector.broadcast %31 : vector<16x1xf32> to vector<16x32xf32>
    %33 = arith.mulf %28, %32 : vector<16x32xf32>
    %34 = vector.broadcast %15 : vector<1x32xf32> to vector<16x32xf32>
    %35 = arith.mulf %33, %34 : vector<16x32xf32>
    %c0_19 = arith.constant 0 : index
    %c0_20 = arith.constant 0 : index
    %c0_21 = arith.constant 0 : index
    %36 = vector.load %arg7[%c0_19, %c0_20, %c0_21] : memref<2x32x192xf32, #tpu.memory_space<vmem>>, vector<1x32x192xf32>
    %37 = vector.shape_cast %36 : vector<1x32x192xf32> to vector<32x192xf32>
    %cst_22 = arith.constant dense<0.000000e+00> : vector<16x192xf32>
    %38 = tpu.matmul %35, %37, %cst_22 {dimension_numbers = #tpu.dot_dimension_numbers<[1], [0], [0], [1], [0, 0, 1, 1], [], []>} : vector<16x32xf32>, vector<32x192xf32>, vector<16x192xf32> -> vector<16x192xf32>
    %39 = vector.extract_strided_slice %38 {offsets = [0, 0], sizes = [16, 128], strides = [1, 1]} : vector<16x192xf32> to vector<16x128xf32>
    %40 = vector.extract_strided_slice %38 {offsets = [0, 128], sizes = [16, 32], strides = [1, 1]} : vector<16x192xf32> to vector<16x32xf32>
    %41 = vector.extract_strided_slice %38 {offsets = [0, 160], sizes = [16, 32], strides = [1, 1]} : vector<16x192xf32> to vector<16x32xf32>
    %42 = arith.mulf %39, %2 : vector<16x128xf32>
    %cst_23 = arith.constant dense<0.000000e+00> : vector<16x128xf32>
    %43 = tpu.matmul %39, %4, %cst_23 {dimension_numbers = #tpu.dot_dimension_numbers<[1], [0], [0], [1], [0, 0, 1, 1], [], []>} : vector<16x128xf32>, vector<128x128xf32>, vector<16x128xf32> -> vector<16x128xf32>
    %44 = arith.mulf %43, %3 : vector<16x128xf32>
    %45 = arith.addf %42, %44 : vector<16x128xf32>
    %46 = arith.mulf %40, %6 : vector<16x32xf32>
    %cst_24 = arith.constant dense<0.000000e+00> : vector<16x32xf32>
    %47 = tpu.matmul %40, %8, %cst_24 {dimension_numbers = #tpu.dot_dimension_numbers<[1], [0], [0], [1], [0, 0, 1, 1], [], []>} : vector<16x32xf32>, vector<32x32xf32>, vector<16x32xf32> -> vector<16x32xf32>
    %48 = arith.mulf %47, %7 : vector<16x32xf32>
    %49 = arith.addf %46, %48 : vector<16x32xf32>
    %50 = arith.mulf %45, %45 : vector<16x128xf32>
    %cst_25 = arith.constant dense<0.000000e+00> : vector<16x128xf32>
    %51 = tpu.matmul %50, %5, %cst_25 {dimension_numbers = #tpu.dot_dimension_numbers<[1], [0], [0], [1], [0, 0, 1, 1], [], []>} : vector<16x128xf32>, vector<128x128xf32>, vector<16x128xf32> -> vector<16x128xf32>
    %cst_26 = arith.constant 1.000000e-24 : f32
    %52 = vector.broadcast %cst_26 : f32 to vector<16x128xf32>
    %53 = arith.maximumf %51, %52 : vector<16x128xf32>
    %54 = math.rsqrt %53 : vector<16x128xf32>
    %55 = arith.mulf %45, %54 : vector<16x128xf32>
    %cst_27 = arith.constant 4.000000e+00 : f32
    %56 = vector.broadcast %cst_27 : f32 to vector<16x128xf32>
    %57 = arith.mulf %55, %56 : vector<16x128xf32>
    %58 = arith.mulf %49, %49 : vector<16x32xf32>
    %cst_28 = arith.constant dense<0.000000e+00> : vector<16xf32>
    %59 = vector.multi_reduction <add>, %58, %cst_28 [1] : vector<16x32xf32> to vector<16xf32>
    %60 = vector.shape_cast %59 : vector<16xf32> to vector<16x1xf32>
    %cst_29 = arith.constant 1.000000e-24 : f32
    %61 = vector.broadcast %cst_29 : f32 to vector<16x1xf32>
    %62 = arith.maximumf %60, %61 : vector<16x1xf32>
    %63 = math.rsqrt %62 : vector<16x1xf32>
    %64 = vector.broadcast %63 : vector<16x1xf32> to vector<16x32xf32>
    %65 = arith.mulf %49, %64 : vector<16x32xf32>
    %cst_30 = arith.constant 4.000000e+00 : f32
    %66 = vector.broadcast %cst_30 : f32 to vector<16x32xf32>
    %67 = arith.mulf %65, %66 : vector<16x32xf32>
    %c0_31 = arith.constant 0 : index
    %c0_32 = arith.constant 0 : index
    %c0_33 = arith.constant 0 : index
    %68 = vector.load %arg8[%c0_31, %c0_32, %c0_33] : memref<2x2x32xf32, #tpu.memory_space<vmem>>, vector<1x2x32xf32>
    %69 = vector.shape_cast %68 : vector<1x2x32xf32> to vector<2x32xf32>
    %70 = vector.extract_strided_slice %69 {offsets = [0, 0], sizes = [1, 32], strides = [1, 1]} : vector<2x32xf32> to vector<1x32xf32>
    %71 = vector.extract_strided_slice %69 {offsets = [1, 0], sizes = [1, 32], strides = [1, 1]} : vector<2x32xf32> to vector<1x32xf32>
    %72 = arith.mulf %70, %70 : vector<1x32xf32>
    %cst_34 = arith.constant dense<0.000000e+00> : vector<1xf32>
    %73 = vector.multi_reduction <add>, %72, %cst_34 [1] : vector<1x32xf32> to vector<1xf32>
    %74 = vector.shape_cast %73 : vector<1xf32> to vector<1x1xf32>
    %cst_35 = arith.constant 1.000000e-24 : f32
    %75 = vector.broadcast %cst_35 : f32 to vector<1x1xf32>
    %76 = arith.maximumf %74, %75 : vector<1x1xf32>
    %77 = math.rsqrt %76 : vector<1x1xf32>
    %78 = vector.broadcast %77 : vector<1x1xf32> to vector<1x32xf32>
    %79 = arith.mulf %70, %78 : vector<1x32xf32>
    %cst_36 = arith.constant 4.000000e+00 : f32
    %80 = vector.broadcast %cst_36 : f32 to vector<1x32xf32>
    %81 = arith.mulf %79, %80 : vector<1x32xf32>
    %82 = vector.extract_strided_slice %57 {offsets = [0, 0], sizes = [8, 128], strides = [1, 1]} : vector<16x128xf32> to vector<8x128xf32>
    %83 = vector.extract_strided_slice %67 {offsets = [0, 0], sizes = [8, 32], strides = [1, 1]} : vector<16x32xf32> to vector<8x32xf32>
    %84 = tpu.concatenate %81, %83 in 0 : vector<1x32xf32>, vector<8x32xf32> -> vector<9x32xf32>
    %85 = vector.extract_strided_slice %41 {offsets = [0, 0], sizes = [8, 32], strides = [1, 1]} : vector<16x32xf32> to vector<8x32xf32>
    %86 = tpu.concatenate %71, %85 in 0 : vector<1x32xf32>, vector<8x32xf32> -> vector<9x32xf32>
    %87 = vector.extract_strided_slice %82 {offsets = [0, 0], sizes = [8, 32], strides = [1, 1]} : vector<8x128xf32> to vector<8x32xf32>
    %cst_37 = arith.constant dense<0.000000e+00> : vector<8x9xf32>
    %88 = tpu.matmul %87, %84, %cst_37 {dimension_numbers = #tpu.dot_dimension_numbers<[1], [1], [0], [0], [0, 0, 1, 0], [], []>} : vector<8x32xf32>, vector<9x32xf32>, vector<8x9xf32> -> vector<8x9xf32>
    %89 = vector.extract_strided_slice %1 {offsets = [0, 0, 0], sizes = [1, 8, 9], strides = [1, 1, 1]} : vector<4x8x9xf32> to vector<1x8x9xf32>
    %90 = vector.shape_cast %89 : vector<1x8x9xf32> to vector<8x9xf32>
    %91 = arith.addf %88, %90 : vector<8x9xf32>
    %cst_38 = arith.constant -3.40282347E+38 : f32
    %92 = vector.broadcast %cst_38 : f32 to vector<8x9xf32>
    %93 = arith.select %13, %92, %91 : vector<8x9xi1>, vector<8x9xf32>
    %cst_39 = arith.constant dense<0xFF800000> : vector<8xf32>
    %94 = vector.multi_reduction <maximumf>, %93, %cst_39 [1] : vector<8x9xf32> to vector<8xf32>
    %95 = vector.shape_cast %94 : vector<8xf32> to vector<8x1xf32>
    %96 = vector.broadcast %95 : vector<8x1xf32> to vector<8x9xf32>
    %97 = arith.subf %93, %96 : vector<8x9xf32>
    %98 = math.exp %97 : vector<8x9xf32>
    %cst_40 = arith.constant dense<0.000000e+00> : vector<8xf32>
    %99 = vector.multi_reduction <add>, %98, %cst_40 [1] : vector<8x9xf32> to vector<8xf32>
    %100 = vector.shape_cast %99 : vector<8xf32> to vector<8x1xf32>
    %101 = tpu.reciprocal %100 : vector<8x1xf32> -> vector<8x1xf32>
    %102 = vector.broadcast %101 : vector<8x1xf32> to vector<8x9xf32>
    %103 = arith.mulf %98, %102 : vector<8x9xf32>
    %cst_41 = arith.constant dense<0.000000e+00> : vector<8x32xf32>
    %104 = tpu.matmul %103, %86, %cst_41 {dimension_numbers = #tpu.dot_dimension_numbers<[1], [0], [0], [1], [0, 0, 1, 1], [], []>} : vector<8x9xf32>, vector<9x32xf32>, vector<8x32xf32> -> vector<8x32xf32>
    %105 = vector.extract_strided_slice %82 {offsets = [0, 32], sizes = [8, 32], strides = [1, 1]} : vector<8x128xf32> to vector<8x32xf32>
    %cst_42 = arith.constant dense<0.000000e+00> : vector<8x9xf32>
    %106 = tpu.matmul %105, %84, %cst_42 {dimension_numbers = #tpu.dot_dimension_numbers<[1], [1], [0], [0], [0, 0, 1, 0], [], []>} : vector<8x32xf32>, vector<9x32xf32>, vector<8x9xf32> -> vector<8x9xf32>
    %107 = vector.extract_strided_slice %1 {offsets = [1, 0, 0], sizes = [1, 8, 9], strides = [1, 1, 1]} : vector<4x8x9xf32> to vector<1x8x9xf32>
    %108 = vector.shape_cast %107 : vector<1x8x9xf32> to vector<8x9xf32>
    %109 = arith.addf %106, %108 : vector<8x9xf32>
    %cst_43 = arith.constant -3.40282347E+38 : f32
    %110 = vector.broadcast %cst_43 : f32 to vector<8x9xf32>
    %111 = arith.select %13, %110, %109 : vector<8x9xi1>, vector<8x9xf32>
    %cst_44 = arith.constant dense<0xFF800000> : vector<8xf32>
    %112 = vector.multi_reduction <maximumf>, %111, %cst_44 [1] : vector<8x9xf32> to vector<8xf32>
    %113 = vector.shape_cast %112 : vector<8xf32> to vector<8x1xf32>
    %114 = vector.broadcast %113 : vector<8x1xf32> to vector<8x9xf32>
    %115 = arith.subf %111, %114 : vector<8x9xf32>
    %116 = math.exp %115 : vector<8x9xf32>
    %cst_45 = arith.constant dense<0.000000e+00> : vector<8xf32>
    %117 = vector.multi_reduction <add>, %116, %cst_45 [1] : vector<8x9xf32> to vector<8xf32>
    %118 = vector.shape_cast %117 : vector<8xf32> to vector<8x1xf32>
    %119 = tpu.reciprocal %118 : vector<8x1xf32> -> vector<8x1xf32>
    %120 = vector.broadcast %119 : vector<8x1xf32> to vector<8x9xf32>
    %121 = arith.mulf %116, %120 : vector<8x9xf32>
    %cst_46 = arith.constant dense<0.000000e+00> : vector<8x32xf32>
    %122 = tpu.matmul %121, %86, %cst_46 {dimension_numbers = #tpu.dot_dimension_numbers<[1], [0], [0], [1], [0, 0, 1, 1], [], []>} : vector<8x9xf32>, vector<9x32xf32>, vector<8x32xf32> -> vector<8x32xf32>
    %123 = vector.extract_strided_slice %82 {offsets = [0, 64], sizes = [8, 32], strides = [1, 1]} : vector<8x128xf32> to vector<8x32xf32>
    %cst_47 = arith.constant dense<0.000000e+00> : vector<8x9xf32>
    %124 = tpu.matmul %123, %84, %cst_47 {dimension_numbers = #tpu.dot_dimension_numbers<[1], [1], [0], [0], [0, 0, 1, 0], [], []>} : vector<8x32xf32>, vector<9x32xf32>, vector<8x9xf32> -> vector<8x9xf32>
    %125 = vector.extract_strided_slice %1 {offsets = [2, 0, 0], sizes = [1, 8, 9], strides = [1, 1, 1]} : vector<4x8x9xf32> to vector<1x8x9xf32>
    %126 = vector.shape_cast %125 : vector<1x8x9xf32> to vector<8x9xf32>
    %127 = arith.addf %124, %126 : vector<8x9xf32>
    %cst_48 = arith.constant -3.40282347E+38 : f32
    %128 = vector.broadcast %cst_48 : f32 to vector<8x9xf32>
    %129 = arith.select %13, %128, %127 : vector<8x9xi1>, vector<8x9xf32>
    %cst_49 = arith.constant dense<0xFF800000> : vector<8xf32>
    %130 = vector.multi_reduction <maximumf>, %129, %cst_49 [1] : vector<8x9xf32> to vector<8xf32>
    %131 = vector.shape_cast %130 : vector<8xf32> to vector<8x1xf32>
    %132 = vector.broadcast %131 : vector<8x1xf32> to vector<8x9xf32>
    %133 = arith.subf %129, %132 : vector<8x9xf32>
    %134 = math.exp %133 : vector<8x9xf32>
    %cst_50 = arith.constant dense<0.000000e+00> : vector<8xf32>
    %135 = vector.multi_reduction <add>, %134, %cst_50 [1] : vector<8x9xf32> to vector<8xf32>
    %136 = vector.shape_cast %135 : vector<8xf32> to vector<8x1xf32>
    %137 = tpu.reciprocal %136 : vector<8x1xf32> -> vector<8x1xf32>
    %138 = vector.broadcast %137 : vector<8x1xf32> to vector<8x9xf32>
    %139 = arith.mulf %134, %138 : vector<8x9xf32>
    %cst_51 = arith.constant dense<0.000000e+00> : vector<8x32xf32>
    %140 = tpu.matmul %139, %86, %cst_51 {dimension_numbers = #tpu.dot_dimension_numbers<[1], [0], [0], [1], [0, 0, 1, 1], [], []>} : vector<8x9xf32>, vector<9x32xf32>, vector<8x32xf32> -> vector<8x32xf32>
    %141 = vector.extract_strided_slice %82 {offsets = [0, 96], sizes = [8, 32], strides = [1, 1]} : vector<8x128xf32> to vector<8x32xf32>
    %cst_52 = arith.constant dense<0.000000e+00> : vector<8x9xf32>
    %142 = tpu.matmul %141, %84, %cst_52 {dimension_numbers = #tpu.dot_dimension_numbers<[1], [1], [0], [0], [0, 0, 1, 0], [], []>} : vector<8x32xf32>, vector<9x32xf32>, vector<8x9xf32> -> vector<8x9xf32>
    %143 = vector.extract_strided_slice %1 {offsets = [3, 0, 0], sizes = [1, 8, 9], strides = [1, 1, 1]} : vector<4x8x9xf32> to vector<1x8x9xf32>
    %144 = vector.shape_cast %143 : vector<1x8x9xf32> to vector<8x9xf32>
    %145 = arith.addf %142, %144 : vector<8x9xf32>
    %cst_53 = arith.constant -3.40282347E+38 : f32
    %146 = vector.broadcast %cst_53 : f32 to vector<8x9xf32>
    %147 = arith.select %13, %146, %145 : vector<8x9xi1>, vector<8x9xf32>
    %cst_54 = arith.constant dense<0xFF800000> : vector<8xf32>
    %148 = vector.multi_reduction <maximumf>, %147, %cst_54 [1] : vector<8x9xf32> to vector<8xf32>
    %149 = vector.shape_cast %148 : vector<8xf32> to vector<8x1xf32>
    %150 = vector.broadcast %149 : vector<8x1xf32> to vector<8x9xf32>
    %151 = arith.subf %147, %150 : vector<8x9xf32>
    %152 = math.exp %151 : vector<8x9xf32>
    %cst_55 = arith.constant dense<0.000000e+00> : vector<8xf32>
    %153 = vector.multi_reduction <add>, %152, %cst_55 [1] : vector<8x9xf32> to vector<8xf32>
    %154 = vector.shape_cast %153 : vector<8xf32> to vector<8x1xf32>
    %155 = tpu.reciprocal %154 : vector<8x1xf32> -> vector<8x1xf32>
    %156 = vector.broadcast %155 : vector<8x1xf32> to vector<8x9xf32>
    %157 = arith.mulf %152, %156 : vector<8x9xf32>
    %cst_56 = arith.constant dense<0.000000e+00> : vector<8x32xf32>
    %158 = tpu.matmul %157, %86, %cst_56 {dimension_numbers = #tpu.dot_dimension_numbers<[1], [0], [0], [1], [0, 0, 1, 1], [], []>} : vector<8x9xf32>, vector<9x32xf32>, vector<8x32xf32> -> vector<8x32xf32>
    %159 = tpu.concatenate %104, %122, %140, %158 in 1 : vector<8x32xf32>, vector<8x32xf32>, vector<8x32xf32>, vector<8x32xf32> -> vector<8x128xf32>
    %160 = vector.extract_strided_slice %57 {offsets = [8, 0], sizes = [8, 128], strides = [1, 1]} : vector<16x128xf32> to vector<8x128xf32>
    %161 = vector.extract_strided_slice %67 {offsets = [8, 0], sizes = [8, 32], strides = [1, 1]} : vector<16x32xf32> to vector<8x32xf32>
    %162 = tpu.concatenate %81, %161 in 0 : vector<1x32xf32>, vector<8x32xf32> -> vector<9x32xf32>
    %163 = vector.extract_strided_slice %41 {offsets = [8, 0], sizes = [8, 32], strides = [1, 1]} : vector<16x32xf32> to vector<8x32xf32>
    %164 = tpu.concatenate %71, %163 in 0 : vector<1x32xf32>, vector<8x32xf32> -> vector<9x32xf32>
    %165 = vector.extract_strided_slice %160 {offsets = [0, 0], sizes = [8, 32], strides = [1, 1]} : vector<8x128xf32> to vector<8x32xf32>
    %cst_57 = arith.constant dense<0.000000e+00> : vector<8x9xf32>
    %166 = tpu.matmul %165, %162, %cst_57 {dimension_numbers = #tpu.dot_dimension_numbers<[1], [1], [0], [0], [0, 0, 1, 0], [], []>} : vector<8x32xf32>, vector<9x32xf32>, vector<8x9xf32> -> vector<8x9xf32>
    %167 = vector.extract_strided_slice %1 {offsets = [0, 0, 0], sizes = [1, 8, 9], strides = [1, 1, 1]} : vector<4x8x9xf32> to vector<1x8x9xf32>
    %168 = vector.shape_cast %167 : vector<1x8x9xf32> to vector<8x9xf32>
    %169 = arith.addf %166, %168 : vector<8x9xf32>
    %cst_58 = arith.constant -3.40282347E+38 : f32
    %170 = vector.broadcast %cst_58 : f32 to vector<8x9xf32>
    %171 = arith.select %13, %170, %169 : vector<8x9xi1>, vector<8x9xf32>
    %cst_59 = arith.constant dense<0xFF800000> : vector<8xf32>
    %172 = vector.multi_reduction <maximumf>, %171, %cst_59 [1] : vector<8x9xf32> to vector<8xf32>
    %173 = vector.shape_cast %172 : vector<8xf32> to vector<8x1xf32>
    %174 = vector.broadcast %173 : vector<8x1xf32> to vector<8x9xf32>
    %175 = arith.subf %171, %174 : vector<8x9xf32>
    %176 = math.exp %175 : vector<8x9xf32>
    %cst_60 = arith.constant dense<0.000000e+00> : vector<8xf32>
    %177 = vector.multi_reduction <add>, %176, %cst_60 [1] : vector<8x9xf32> to vector<8xf32>
    %178 = vector.shape_cast %177 : vector<8xf32> to vector<8x1xf32>
    %179 = tpu.reciprocal %178 : vector<8x1xf32> -> vector<8x1xf32>
    %180 = vector.broadcast %179 : vector<8x1xf32> to vector<8x9xf32>
    %181 = arith.mulf %176, %180 : vector<8x9xf32>
    %cst_61 = arith.constant dense<0.000000e+00> : vector<8x32xf32>
    %182 = tpu.matmul %181, %164, %cst_61 {dimension_numbers = #tpu.dot_dimension_numbers<[1], [0], [0], [1], [0, 0, 1, 1], [], []>} : vector<8x9xf32>, vector<9x32xf32>, vector<8x32xf32> -> vector<8x32xf32>
    %183 = vector.extract_strided_slice %160 {offsets = [0, 32], sizes = [8, 32], strides = [1, 1]} : vector<8x128xf32> to vector<8x32xf32>
    %cst_62 = arith.constant dense<0.000000e+00> : vector<8x9xf32>
    %184 = tpu.matmul %183, %162, %cst_62 {dimension_numbers = #tpu.dot_dimension_numbers<[1], [1], [0], [0], [0, 0, 1, 0], [], []>} : vector<8x32xf32>, vector<9x32xf32>, vector<8x9xf32> -> vector<8x9xf32>
    %185 = vector.extract_strided_slice %1 {offsets = [1, 0, 0], sizes = [1, 8, 9], strides = [1, 1, 1]} : vector<4x8x9xf32> to vector<1x8x9xf32>
    %186 = vector.shape_cast %185 : vector<1x8x9xf32> to vector<8x9xf32>
    %187 = arith.addf %184, %186 : vector<8x9xf32>
    %cst_63 = arith.constant -3.40282347E+38 : f32
    %188 = vector.broadcast %cst_63 : f32 to vector<8x9xf32>
    %189 = arith.select %13, %188, %187 : vector<8x9xi1>, vector<8x9xf32>
    %cst_64 = arith.constant dense<0xFF800000> : vector<8xf32>
    %190 = vector.multi_reduction <maximumf>, %189, %cst_64 [1] : vector<8x9xf32> to vector<8xf32>
    %191 = vector.shape_cast %190 : vector<8xf32> to vector<8x1xf32>
    %192 = vector.broadcast %191 : vector<8x1xf32> to vector<8x9xf32>
    %193 = arith.subf %189, %192 : vector<8x9xf32>
    %194 = math.exp %193 : vector<8x9xf32>
    %cst_65 = arith.constant dense<0.000000e+00> : vector<8xf32>
    %195 = vector.multi_reduction <add>, %194, %cst_65 [1] : vector<8x9xf32> to vector<8xf32>
    %196 = vector.shape_cast %195 : vector<8xf32> to vector<8x1xf32>
    %197 = tpu.reciprocal %196 : vector<8x1xf32> -> vector<8x1xf32>
    %198 = vector.broadcast %197 : vector<8x1xf32> to vector<8x9xf32>
    %199 = arith.mulf %194, %198 : vector<8x9xf32>
    %cst_66 = arith.constant dense<0.000000e+00> : vector<8x32xf32>
    %200 = tpu.matmul %199, %164, %cst_66 {dimension_numbers = #tpu.dot_dimension_numbers<[1], [0], [0], [1], [0, 0, 1, 1], [], []>} : vector<8x9xf32>, vector<9x32xf32>, vector<8x32xf32> -> vector<8x32xf32>
    %201 = vector.extract_strided_slice %160 {offsets = [0, 64], sizes = [8, 32], strides = [1, 1]} : vector<8x128xf32> to vector<8x32xf32>
    %cst_67 = arith.constant dense<0.000000e+00> : vector<8x9xf32>
    %202 = tpu.matmul %201, %162, %cst_67 {dimension_numbers = #tpu.dot_dimension_numbers<[1], [1], [0], [0], [0, 0, 1, 0], [], []>} : vector<8x32xf32>, vector<9x32xf32>, vector<8x9xf32> -> vector<8x9xf32>
    %203 = vector.extract_strided_slice %1 {offsets = [2, 0, 0], sizes = [1, 8, 9], strides = [1, 1, 1]} : vector<4x8x9xf32> to vector<1x8x9xf32>
    %204 = vector.shape_cast %203 : vector<1x8x9xf32> to vector<8x9xf32>
    %205 = arith.addf %202, %204 : vector<8x9xf32>
    %cst_68 = arith.constant -3.40282347E+38 : f32
    %206 = vector.broadcast %cst_68 : f32 to vector<8x9xf32>
    %207 = arith.select %13, %206, %205 : vector<8x9xi1>, vector<8x9xf32>
    %cst_69 = arith.constant dense<0xFF800000> : vector<8xf32>
    %208 = vector.multi_reduction <maximumf>, %207, %cst_69 [1] : vector<8x9xf32> to vector<8xf32>
    %209 = vector.shape_cast %208 : vector<8xf32> to vector<8x1xf32>
    %210 = vector.broadcast %209 : vector<8x1xf32> to vector<8x9xf32>
    %211 = arith.subf %207, %210 : vector<8x9xf32>
    %212 = math.exp %211 : vector<8x9xf32>
    %cst_70 = arith.constant dense<0.000000e+00> : vector<8xf32>
    %213 = vector.multi_reduction <add>, %212, %cst_70 [1] : vector<8x9xf32> to vector<8xf32>
    %214 = vector.shape_cast %213 : vector<8xf32> to vector<8x1xf32>
    %215 = tpu.reciprocal %214 : vector<8x1xf32> -> vector<8x1xf32>
    %216 = vector.broadcast %215 : vector<8x1xf32> to vector<8x9xf32>
    %217 = arith.mulf %212, %216 : vector<8x9xf32>
    %cst_71 = arith.constant dense<0.000000e+00> : vector<8x32xf32>
    %218 = tpu.matmul %217, %164, %cst_71 {dimension_numbers = #tpu.dot_dimension_numbers<[1], [0], [0], [1], [0, 0, 1, 1], [], []>} : vector<8x9xf32>, vector<9x32xf32>, vector<8x32xf32> -> vector<8x32xf32>
    %219 = vector.extract_strided_slice %160 {offsets = [0, 96], sizes = [8, 32], strides = [1, 1]} : vector<8x128xf32> to vector<8x32xf32>
    %cst_72 = arith.constant dense<0.000000e+00> : vector<8x9xf32>
    %220 = tpu.matmul %219, %162, %cst_72 {dimension_numbers = #tpu.dot_dimension_numbers<[1], [1], [0], [0], [0, 0, 1, 0], [], []>} : vector<8x32xf32>, vector<9x32xf32>, vector<8x9xf32> -> vector<8x9xf32>
    %221 = vector.extract_strided_slice %1 {offsets = [3, 0, 0], sizes = [1, 8, 9], strides = [1, 1, 1]} : vector<4x8x9xf32> to vector<1x8x9xf32>
    %222 = vector.shape_cast %221 : vector<1x8x9xf32> to vector<8x9xf32>
    %223 = arith.addf %220, %222 : vector<8x9xf32>
    %cst_73 = arith.constant -3.40282347E+38 : f32
    %224 = vector.broadcast %cst_73 : f32 to vector<8x9xf32>
    %225 = arith.select %13, %224, %223 : vector<8x9xi1>, vector<8x9xf32>
    %cst_74 = arith.constant dense<0xFF800000> : vector<8xf32>
    %226 = vector.multi_reduction <maximumf>, %225, %cst_74 [1] : vector<8x9xf32> to vector<8xf32>
    %227 = vector.shape_cast %226 : vector<8xf32> to vector<8x1xf32>
    %228 = vector.broadcast %227 : vector<8x1xf32> to vector<8x9xf32>
    %229 = arith.subf %225, %228 : vector<8x9xf32>
    %230 = math.exp %229 : vector<8x9xf32>
    %cst_75 = arith.constant dense<0.000000e+00> : vector<8xf32>
    %231 = vector.multi_reduction <add>, %230, %cst_75 [1] : vector<8x9xf32> to vector<8xf32>
    %232 = vector.shape_cast %231 : vector<8xf32> to vector<8x1xf32>
    %233 = tpu.reciprocal %232 : vector<8x1xf32> -> vector<8x1xf32>
    %234 = vector.broadcast %233 : vector<8x1xf32> to vector<8x9xf32>
    %235 = arith.mulf %230, %234 : vector<8x9xf32>
    %cst_76 = arith.constant dense<0.000000e+00> : vector<8x32xf32>
    %236 = tpu.matmul %235, %164, %cst_76 {dimension_numbers = #tpu.dot_dimension_numbers<[1], [0], [0], [1], [0, 0, 1, 1], [], []>} : vector<8x9xf32>, vector<9x32xf32>, vector<8x32xf32> -> vector<8x32xf32>
    %237 = tpu.concatenate %182, %200, %218, %236 in 1 : vector<8x32xf32>, vector<8x32xf32>, vector<8x32xf32>, vector<8x32xf32> -> vector<8x128xf32>
    %238 = tpu.concatenate %159, %237 in 0 : vector<8x128xf32>, vector<8x128xf32> -> vector<16x128xf32>
    %c0_77 = arith.constant 0 : index
    %c0_78 = arith.constant 0 : index
    %c0_79 = arith.constant 0 : index
    %239 = vector.load %arg9[%c0_77, %c0_78, %c0_79] : memref<2x128x32xf32, #tpu.memory_space<vmem>>, vector<1x128x32xf32>
    %240 = vector.shape_cast %239 : vector<1x128x32xf32> to vector<128x32xf32>
    %cst_80 = arith.constant dense<0.000000e+00> : vector<16x32xf32>
    %241 = tpu.matmul %238, %240, %cst_80 {dimension_numbers = #tpu.dot_dimension_numbers<[1], [0], [0], [1], [0, 0, 1, 1], [], []>} : vector<16x128xf32>, vector<128x32xf32>, vector<16x32xf32> -> vector<16x32xf32>
    %c0_81 = arith.constant 0 : index
    %c0_82 = arith.constant 0 : index
    %c0_83 = arith.constant 0 : index
    %242 = vector.load %arg10[%c0_81, %c0_82, %c0_83] : memref<2x1x32xf32, #tpu.memory_space<vmem>>, vector<1x1x32xf32>
    %243 = vector.shape_cast %242 : vector<1x1x32xf32> to vector<1x32xf32>
    %cst_84 = arith.constant dense<0.000000e+00> : vector<16xf32>
    %244 = vector.multi_reduction <add>, %241, %cst_84 [1] : vector<16x32xf32> to vector<16xf32>
    %245 = vector.shape_cast %244 : vector<16xf32> to vector<16x1xf32>
    %cst_85 = arith.constant 3.200000e+01 : f32
    %246 = vector.broadcast %cst_85 : f32 to vector<16x1xf32>
    %247 = arith.divf %245, %246 : vector<16x1xf32>
    %248 = vector.broadcast %247 : vector<16x1xf32> to vector<16x32xf32>
    %249 = arith.subf %241, %248 : vector<16x32xf32>
    %250 = arith.mulf %249, %249 : vector<16x32xf32>
    %cst_86 = arith.constant dense<0.000000e+00> : vector<16xf32>
    %251 = vector.multi_reduction <add>, %250, %cst_86 [1] : vector<16x32xf32> to vector<16xf32>
    %252 = vector.shape_cast %251 : vector<16xf32> to vector<16x1xf32>
    %cst_87 = arith.constant 3.200000e+01 : f32
    %253 = vector.broadcast %cst_87 : f32 to vector<16x1xf32>
    %254 = arith.divf %252, %253 : vector<16x1xf32>
    %255 = vector.broadcast %247 : vector<16x1xf32> to vector<16x32xf32>
    %256 = arith.subf %241, %255 : vector<16x32xf32>
    %cst_88 = arith.constant 9.99999974E-6 : f32
    %257 = vector.broadcast %cst_88 : f32 to vector<16x1xf32>
    %258 = arith.addf %254, %257 : vector<16x1xf32>
    %259 = math.rsqrt %258 : vector<16x1xf32>
    %260 = vector.broadcast %259 : vector<16x1xf32> to vector<16x32xf32>
    %261 = arith.mulf %256, %260 : vector<16x32xf32>
    %262 = vector.broadcast %243 : vector<1x32xf32> to vector<16x32xf32>
    %263 = arith.mulf %261, %262 : vector<16x32xf32>
    %264 = arith.addf %0, %263 : vector<16x32xf32>
    %c0_89 = arith.constant 0 : index
    %c0_90 = arith.constant 0 : index
    %c0_91 = arith.constant 0 : index
    %265 = vector.load %arg11[%c0_89, %c0_90, %c0_91] : memref<2x1x32xf32, #tpu.memory_space<vmem>>, vector<1x1x32xf32>
    %266 = vector.shape_cast %265 : vector<1x1x32xf32> to vector<1x32xf32>
    %cst_92 = arith.constant dense<0.000000e+00> : vector<16xf32>
    %267 = vector.multi_reduction <add>, %264, %cst_92 [1] : vector<16x32xf32> to vector<16xf32>
    %268 = vector.shape_cast %267 : vector<16xf32> to vector<16x1xf32>
    %cst_93 = arith.constant 3.200000e+01 : f32
    %269 = vector.broadcast %cst_93 : f32 to vector<16x1xf32>
    %270 = arith.divf %268, %269 : vector<16x1xf32>
    %271 = vector.broadcast %270 : vector<16x1xf32> to vector<16x32xf32>
    %272 = arith.subf %264, %271 : vector<16x32xf32>
    %273 = arith.mulf %272, %272 : vector<16x32xf32>
    %cst_94 = arith.constant dense<0.000000e+00> : vector<16xf32>
    %274 = vector.multi_reduction <add>, %273, %cst_94 [1] : vector<16x32xf32> to vector<16xf32>
    %275 = vector.shape_cast %274 : vector<16xf32> to vector<16x1xf32>
    %cst_95 = arith.constant 3.200000e+01 : f32
    %276 = vector.broadcast %cst_95 : f32 to vector<16x1xf32>
    %277 = arith.divf %275, %276 : vector<16x1xf32>
    %278 = vector.broadcast %270 : vector<16x1xf32> to vector<16x32xf32>
    %279 = arith.subf %264, %278 : vector<16x32xf32>
    %cst_96 = arith.constant 9.99999974E-6 : f32
    %280 = vector.broadcast %cst_96 : f32 to vector<16x1xf32>
    %281 = arith.addf %277, %280 : vector<16x1xf32>
    %282 = math.rsqrt %281 : vector<16x1xf32>
    %283 = vector.broadcast %282 : vector<16x1xf32> to vector<16x32xf32>
    %284 = arith.mulf %279, %283 : vector<16x32xf32>
    %285 = vector.broadcast %266 : vector<1x32xf32> to vector<16x32xf32>
    %286 = arith.mulf %284, %285 : vector<16x32xf32>
    %c0_97 = arith.constant 0 : index
    %c0_98 = arith.constant 0 : index
    %c0_99 = arith.constant 0 : index
    %287 = vector.load %arg12[%c0_97, %c0_98, %c0_99] : memref<2x32x256xf32, #tpu.memory_space<vmem>>, vector<1x32x256xf32>
    %288 = vector.shape_cast %287 : vector<1x32x256xf32> to vector<32x256xf32>
    %cst_100 = arith.constant dense<0.000000e+00> : vector<16x256xf32>
    %289 = tpu.matmul %286, %288, %cst_100 {dimension_numbers = #tpu.dot_dimension_numbers<[1], [0], [0], [1], [0, 0, 1, 1], [], []>} : vector<16x32xf32>, vector<32x256xf32>, vector<16x256xf32> -> vector<16x256xf32>
    %290 = vector.extract_strided_slice %289 {offsets = [0, 0], sizes = [16, 128], strides = [1, 1]} : vector<16x256xf32> to vector<16x128xf32>
    %291 = vector.extract_strided_slice %289 {offsets = [0, 128], sizes = [16, 128], strides = [1, 1]} : vector<16x256xf32> to vector<16x128xf32>
    %292 = arith.negf %291 : vector<16x128xf32>
    %293 = math.exp %292 : vector<16x128xf32>
    %cst_101 = arith.constant 1.000000e+00 : f32
    %294 = vector.broadcast %cst_101 : f32 to vector<16x128xf32>
    %295 = arith.addf %294, %293 : vector<16x128xf32>
    %296 = arith.divf %294, %295 : vector<16x128xf32>
    %297 = arith.mulf %291, %296 : vector<16x128xf32>
    %298 = arith.mulf %290, %297 : vector<16x128xf32>
    %c0_102 = arith.constant 0 : index
    %c0_103 = arith.constant 0 : index
    %c0_104 = arith.constant 0 : index
    %299 = vector.load %arg13[%c0_102, %c0_103, %c0_104] : memref<2x128x32xf32, #tpu.memory_space<vmem>>, vector<1x128x32xf32>
    %300 = vector.shape_cast %299 : vector<1x128x32xf32> to vector<128x32xf32>
    %cst_105 = arith.constant dense<0.000000e+00> : vector<16x32xf32>
    %301 = tpu.matmul %298, %300, %cst_105 {dimension_numbers = #tpu.dot_dimension_numbers<[1], [0], [0], [1], [0, 0, 1, 1], [], []>} : vector<16x128xf32>, vector<128x32xf32>, vector<16x32xf32> -> vector<16x32xf32>
    %302 = arith.addf %264, %301 : vector<16x32xf32>
    %c1 = arith.constant 1 : index
    %c0_106 = arith.constant 0 : index
    %c0_107 = arith.constant 0 : index
    %303 = vector.load %arg6[%c1, %c0_106, %c0_107] : memref<2x1x32xf32, #tpu.memory_space<vmem>>, vector<1x1x32xf32>
    %304 = vector.shape_cast %303 : vector<1x1x32xf32> to vector<1x32xf32>
    %cst_108 = arith.constant dense<0.000000e+00> : vector<16xf32>
    %305 = vector.multi_reduction <add>, %302, %cst_108 [1] : vector<16x32xf32> to vector<16xf32>
    %306 = vector.shape_cast %305 : vector<16xf32> to vector<16x1xf32>
    %cst_109 = arith.constant 3.200000e+01 : f32
    %307 = vector.broadcast %cst_109 : f32 to vector<16x1xf32>
    %308 = arith.divf %306, %307 : vector<16x1xf32>
    %309 = vector.broadcast %308 : vector<16x1xf32> to vector<16x32xf32>
    %310 = arith.subf %302, %309 : vector<16x32xf32>
    %311 = arith.mulf %310, %310 : vector<16x32xf32>
    %cst_110 = arith.constant dense<0.000000e+00> : vector<16xf32>
    %312 = vector.multi_reduction <add>, %311, %cst_110 [1] : vector<16x32xf32> to vector<16xf32>
    %313 = vector.shape_cast %312 : vector<16xf32> to vector<16x1xf32>
    %cst_111 = arith.constant 3.200000e+01 : f32
    %314 = vector.broadcast %cst_111 : f32 to vector<16x1xf32>
    %315 = arith.divf %313, %314 : vector<16x1xf32>
    %316 = vector.broadcast %308 : vector<16x1xf32> to vector<16x32xf32>
    %317 = arith.subf %302, %316 : vector<16x32xf32>
    %cst_112 = arith.constant 9.99999974E-6 : f32
    %318 = vector.broadcast %cst_112 : f32 to vector<16x1xf32>
    %319 = arith.addf %315, %318 : vector<16x1xf32>
    %320 = math.rsqrt %319 : vector<16x1xf32>
    %321 = vector.broadcast %320 : vector<16x1xf32> to vector<16x32xf32>
    %322 = arith.mulf %317, %321 : vector<16x32xf32>
    %323 = vector.broadcast %304 : vector<1x32xf32> to vector<16x32xf32>
    %324 = arith.mulf %322, %323 : vector<16x32xf32>
    %c1_113 = arith.constant 1 : index
    %c0_114 = arith.constant 0 : index
    %c0_115 = arith.constant 0 : index
    %325 = vector.load %arg7[%c1_113, %c0_114, %c0_115] : memref<2x32x192xf32, #tpu.memory_space<vmem>>, vector<1x32x192xf32>
    %326 = vector.shape_cast %325 : vector<1x32x192xf32> to vector<32x192xf32>
    %cst_116 = arith.constant dense<0.000000e+00> : vector<16x192xf32>
    %327 = tpu.matmul %324, %326, %cst_116 {dimension_numbers = #tpu.dot_dimension_numbers<[1], [0], [0], [1], [0, 0, 1, 1], [], []>} : vector<16x32xf32>, vector<32x192xf32>, vector<16x192xf32> -> vector<16x192xf32>
    %328 = vector.extract_strided_slice %327 {offsets = [0, 0], sizes = [16, 128], strides = [1, 1]} : vector<16x192xf32> to vector<16x128xf32>
    %329 = vector.extract_strided_slice %327 {offsets = [0, 128], sizes = [16, 32], strides = [1, 1]} : vector<16x192xf32> to vector<16x32xf32>
    %330 = vector.extract_strided_slice %327 {offsets = [0, 160], sizes = [16, 32], strides = [1, 1]} : vector<16x192xf32> to vector<16x32xf32>
    %331 = arith.mulf %328, %2 : vector<16x128xf32>
    %cst_117 = arith.constant dense<0.000000e+00> : vector<16x128xf32>
    %332 = tpu.matmul %328, %4, %cst_117 {dimension_numbers = #tpu.dot_dimension_numbers<[1], [0], [0], [1], [0, 0, 1, 1], [], []>} : vector<16x128xf32>, vector<128x128xf32>, vector<16x128xf32> -> vector<16x128xf32>
    %333 = arith.mulf %332, %3 : vector<16x128xf32>
    %334 = arith.addf %331, %333 : vector<16x128xf32>
    %335 = arith.mulf %329, %6 : vector<16x32xf32>
    %cst_118 = arith.constant dense<0.000000e+00> : vector<16x32xf32>
    %336 = tpu.matmul %329, %8, %cst_118 {dimension_numbers = #tpu.dot_dimension_numbers<[1], [0], [0], [1], [0, 0, 1, 1], [], []>} : vector<16x32xf32>, vector<32x32xf32>, vector<16x32xf32> -> vector<16x32xf32>
    %337 = arith.mulf %336, %7 : vector<16x32xf32>
    %338 = arith.addf %335, %337 : vector<16x32xf32>
    %339 = arith.mulf %334, %334 : vector<16x128xf32>
    %cst_119 = arith.constant dense<0.000000e+00> : vector<16x128xf32>
    %340 = tpu.matmul %339, %5, %cst_119 {dimension_numbers = #tpu.dot_dimension_numbers<[1], [0], [0], [1], [0, 0, 1, 1], [], []>} : vector<16x128xf32>, vector<128x128xf32>, vector<16x128xf32> -> vector<16x128xf32>
    %cst_120 = arith.constant 1.000000e-24 : f32
    %341 = vector.broadcast %cst_120 : f32 to vector<16x128xf32>
    %342 = arith.maximumf %340, %341 : vector<16x128xf32>
    %343 = math.rsqrt %342 : vector<16x128xf32>
    %344 = arith.mulf %334, %343 : vector<16x128xf32>
    %cst_121 = arith.constant 4.000000e+00 : f32
    %345 = vector.broadcast %cst_121 : f32 to vector<16x128xf32>
    %346 = arith.mulf %344, %345 : vector<16x128xf32>
    %347 = arith.mulf %338, %338 : vector<16x32xf32>
    %cst_122 = arith.constant dense<0.000000e+00> : vector<16xf32>
    %348 = vector.multi_reduction <add>, %347, %cst_122 [1] : vector<16x32xf32> to vector<16xf32>
    %349 = vector.shape_cast %348 : vector<16xf32> to vector<16x1xf32>
    %cst_123 = arith.constant 1.000000e-24 : f32
    %350 = vector.broadcast %cst_123 : f32 to vector<16x1xf32>
    %351 = arith.maximumf %349, %350 : vector<16x1xf32>
    %352 = math.rsqrt %351 : vector<16x1xf32>
    %353 = vector.broadcast %352 : vector<16x1xf32> to vector<16x32xf32>
    %354 = arith.mulf %338, %353 : vector<16x32xf32>
    %cst_124 = arith.constant 4.000000e+00 : f32
    %355 = vector.broadcast %cst_124 : f32 to vector<16x32xf32>
    %356 = arith.mulf %354, %355 : vector<16x32xf32>
    %c1_125 = arith.constant 1 : index
    %c0_126 = arith.constant 0 : index
    %c0_127 = arith.constant 0 : index
    %357 = vector.load %arg8[%c1_125, %c0_126, %c0_127] : memref<2x2x32xf32, #tpu.memory_space<vmem>>, vector<1x2x32xf32>
    %358 = vector.shape_cast %357 : vector<1x2x32xf32> to vector<2x32xf32>
    %359 = vector.extract_strided_slice %358 {offsets = [0, 0], sizes = [1, 32], strides = [1, 1]} : vector<2x32xf32> to vector<1x32xf32>
    %360 = vector.extract_strided_slice %358 {offsets = [1, 0], sizes = [1, 32], strides = [1, 1]} : vector<2x32xf32> to vector<1x32xf32>
    %361 = arith.mulf %359, %359 : vector<1x32xf32>
    %cst_128 = arith.constant dense<0.000000e+00> : vector<1xf32>
    %362 = vector.multi_reduction <add>, %361, %cst_128 [1] : vector<1x32xf32> to vector<1xf32>
    %363 = vector.shape_cast %362 : vector<1xf32> to vector<1x1xf32>
    %cst_129 = arith.constant 1.000000e-24 : f32
    %364 = vector.broadcast %cst_129 : f32 to vector<1x1xf32>
    %365 = arith.maximumf %363, %364 : vector<1x1xf32>
    %366 = math.rsqrt %365 : vector<1x1xf32>
    %367 = vector.broadcast %366 : vector<1x1xf32> to vector<1x32xf32>
    %368 = arith.mulf %359, %367 : vector<1x32xf32>
    %cst_130 = arith.constant 4.000000e+00 : f32
    %369 = vector.broadcast %cst_130 : f32 to vector<1x32xf32>
    %370 = arith.mulf %368, %369 : vector<1x32xf32>
    %371 = vector.extract_strided_slice %346 {offsets = [0, 0], sizes = [8, 128], strides = [1, 1]} : vector<16x128xf32> to vector<8x128xf32>
    %372 = vector.extract_strided_slice %356 {offsets = [0, 0], sizes = [8, 32], strides = [1, 1]} : vector<16x32xf32> to vector<8x32xf32>
    %373 = tpu.concatenate %370, %372 in 0 : vector<1x32xf32>, vector<8x32xf32> -> vector<9x32xf32>
    %374 = vector.extract_strided_slice %330 {offsets = [0, 0], sizes = [8, 32], strides = [1, 1]} : vector<16x32xf32> to vector<8x32xf32>
    %375 = tpu.concatenate %360, %374 in 0 : vector<1x32xf32>, vector<8x32xf32> -> vector<9x32xf32>
    %376 = vector.extract_strided_slice %371 {offsets = [0, 0], sizes = [8, 32], strides = [1, 1]} : vector<8x128xf32> to vector<8x32xf32>
    %cst_131 = arith.constant dense<0.000000e+00> : vector<8x9xf32>
    %377 = tpu.matmul %376, %373, %cst_131 {dimension_numbers = #tpu.dot_dimension_numbers<[1], [1], [0], [0], [0, 0, 1, 0], [], []>} : vector<8x32xf32>, vector<9x32xf32>, vector<8x9xf32> -> vector<8x9xf32>
    %378 = vector.extract_strided_slice %1 {offsets = [0, 0, 0], sizes = [1, 8, 9], strides = [1, 1, 1]} : vector<4x8x9xf32> to vector<1x8x9xf32>
    %379 = vector.shape_cast %378 : vector<1x8x9xf32> to vector<8x9xf32>
    %380 = arith.addf %377, %379 : vector<8x9xf32>
    %cst_132 = arith.constant -3.40282347E+38 : f32
    %381 = vector.broadcast %cst_132 : f32 to vector<8x9xf32>
    %382 = arith.select %13, %381, %380 : vector<8x9xi1>, vector<8x9xf32>
    %cst_133 = arith.constant dense<0xFF800000> : vector<8xf32>
    %383 = vector.multi_reduction <maximumf>, %382, %cst_133 [1] : vector<8x9xf32> to vector<8xf32>
    %384 = vector.shape_cast %383 : vector<8xf32> to vector<8x1xf32>
    %385 = vector.broadcast %384 : vector<8x1xf32> to vector<8x9xf32>
    %386 = arith.subf %382, %385 : vector<8x9xf32>
    %387 = math.exp %386 : vector<8x9xf32>
    %cst_134 = arith.constant dense<0.000000e+00> : vector<8xf32>
    %388 = vector.multi_reduction <add>, %387, %cst_134 [1] : vector<8x9xf32> to vector<8xf32>
    %389 = vector.shape_cast %388 : vector<8xf32> to vector<8x1xf32>
    %390 = tpu.reciprocal %389 : vector<8x1xf32> -> vector<8x1xf32>
    %391 = vector.broadcast %390 : vector<8x1xf32> to vector<8x9xf32>
    %392 = arith.mulf %387, %391 : vector<8x9xf32>
    %cst_135 = arith.constant dense<0.000000e+00> : vector<8x32xf32>
    %393 = tpu.matmul %392, %375, %cst_135 {dimension_numbers = #tpu.dot_dimension_numbers<[1], [0], [0], [1], [0, 0, 1, 1], [], []>} : vector<8x9xf32>, vector<9x32xf32>, vector<8x32xf32> -> vector<8x32xf32>
    %394 = vector.extract_strided_slice %371 {offsets = [0, 32], sizes = [8, 32], strides = [1, 1]} : vector<8x128xf32> to vector<8x32xf32>
    %cst_136 = arith.constant dense<0.000000e+00> : vector<8x9xf32>
    %395 = tpu.matmul %394, %373, %cst_136 {dimension_numbers = #tpu.dot_dimension_numbers<[1], [1], [0], [0], [0, 0, 1, 0], [], []>} : vector<8x32xf32>, vector<9x32xf32>, vector<8x9xf32> -> vector<8x9xf32>
    %396 = vector.extract_strided_slice %1 {offsets = [1, 0, 0], sizes = [1, 8, 9], strides = [1, 1, 1]} : vector<4x8x9xf32> to vector<1x8x9xf32>
    %397 = vector.shape_cast %396 : vector<1x8x9xf32> to vector<8x9xf32>
    %398 = arith.addf %395, %397 : vector<8x9xf32>
    %cst_137 = arith.constant -3.40282347E+38 : f32
    %399 = vector.broadcast %cst_137 : f32 to vector<8x9xf32>
    %400 = arith.select %13, %399, %398 : vector<8x9xi1>, vector<8x9xf32>
    %cst_138 = arith.constant dense<0xFF800000> : vector<8xf32>
    %401 = vector.multi_reduction <maximumf>, %400, %cst_138 [1] : vector<8x9xf32> to vector<8xf32>
    %402 = vector.shape_cast %401 : vector<8xf32> to vector<8x1xf32>
    %403 = vector.broadcast %402 : vector<8x1xf32> to vector<8x9xf32>
    %404 = arith.subf %400, %403 : vector<8x9xf32>
    %405 = math.exp %404 : vector<8x9xf32>
    %cst_139 = arith.constant dense<0.000000e+00> : vector<8xf32>
    %406 = vector.multi_reduction <add>, %405, %cst_139 [1] : vector<8x9xf32> to vector<8xf32>
    %407 = vector.shape_cast %406 : vector<8xf32> to vector<8x1xf32>
    %408 = tpu.reciprocal %407 : vector<8x1xf32> -> vector<8x1xf32>
    %409 = vector.broadcast %408 : vector<8x1xf32> to vector<8x9xf32>
    %410 = arith.mulf %405, %409 : vector<8x9xf32>
    %cst_140 = arith.constant dense<0.000000e+00> : vector<8x32xf32>
    %411 = tpu.matmul %410, %375, %cst_140 {dimension_numbers = #tpu.dot_dimension_numbers<[1], [0], [0], [1], [0, 0, 1, 1], [], []>} : vector<8x9xf32>, vector<9x32xf32>, vector<8x32xf32> -> vector<8x32xf32>
    %412 = vector.extract_strided_slice %371 {offsets = [0, 64], sizes = [8, 32], strides = [1, 1]} : vector<8x128xf32> to vector<8x32xf32>
    %cst_141 = arith.constant dense<0.000000e+00> : vector<8x9xf32>
    %413 = tpu.matmul %412, %373, %cst_141 {dimension_numbers = #tpu.dot_dimension_numbers<[1], [1], [0], [0], [0, 0, 1, 0], [], []>} : vector<8x32xf32>, vector<9x32xf32>, vector<8x9xf32> -> vector<8x9xf32>
    %414 = vector.extract_strided_slice %1 {offsets = [2, 0, 0], sizes = [1, 8, 9], strides = [1, 1, 1]} : vector<4x8x9xf32> to vector<1x8x9xf32>
    %415 = vector.shape_cast %414 : vector<1x8x9xf32> to vector<8x9xf32>
    %416 = arith.addf %413, %415 : vector<8x9xf32>
    %cst_142 = arith.constant -3.40282347E+38 : f32
    %417 = vector.broadcast %cst_142 : f32 to vector<8x9xf32>
    %418 = arith.select %13, %417, %416 : vector<8x9xi1>, vector<8x9xf32>
    %cst_143 = arith.constant dense<0xFF800000> : vector<8xf32>
    %419 = vector.multi_reduction <maximumf>, %418, %cst_143 [1] : vector<8x9xf32> to vector<8xf32>
    %420 = vector.shape_cast %419 : vector<8xf32> to vector<8x1xf32>
    %421 = vector.broadcast %420 : vector<8x1xf32> to vector<8x9xf32>
    %422 = arith.subf %418, %421 : vector<8x9xf32>
    %423 = math.exp %422 : vector<8x9xf32>
    %cst_144 = arith.constant dense<0.000000e+00> : vector<8xf32>
    %424 = vector.multi_reduction <add>, %423, %cst_144 [1] : vector<8x9xf32> to vector<8xf32>
    %425 = vector.shape_cast %424 : vector<8xf32> to vector<8x1xf32>
    %426 = tpu.reciprocal %425 : vector<8x1xf32> -> vector<8x1xf32>
    %427 = vector.broadcast %426 : vector<8x1xf32> to vector<8x9xf32>
    %428 = arith.mulf %423, %427 : vector<8x9xf32>
    %cst_145 = arith.constant dense<0.000000e+00> : vector<8x32xf32>
    %429 = tpu.matmul %428, %375, %cst_145 {dimension_numbers = #tpu.dot_dimension_numbers<[1], [0], [0], [1], [0, 0, 1, 1], [], []>} : vector<8x9xf32>, vector<9x32xf32>, vector<8x32xf32> -> vector<8x32xf32>
    %430 = vector.extract_strided_slice %371 {offsets = [0, 96], sizes = [8, 32], strides = [1, 1]} : vector<8x128xf32> to vector<8x32xf32>
    %cst_146 = arith.constant dense<0.000000e+00> : vector<8x9xf32>
    %431 = tpu.matmul %430, %373, %cst_146 {dimension_numbers = #tpu.dot_dimension_numbers<[1], [1], [0], [0], [0, 0, 1, 0], [], []>} : vector<8x32xf32>, vector<9x32xf32>, vector<8x9xf32> -> vector<8x9xf32>
    %432 = vector.extract_strided_slice %1 {offsets = [3, 0, 0], sizes = [1, 8, 9], strides = [1, 1, 1]} : vector<4x8x9xf32> to vector<1x8x9xf32>
    %433 = vector.shape_cast %432 : vector<1x8x9xf32> to vector<8x9xf32>
    %434 = arith.addf %431, %433 : vector<8x9xf32>
    %cst_147 = arith.constant -3.40282347E+38 : f32
    %435 = vector.broadcast %cst_147 : f32 to vector<8x9xf32>
    %436 = arith.select %13, %435, %434 : vector<8x9xi1>, vector<8x9xf32>
    %cst_148 = arith.constant dense<0xFF800000> : vector<8xf32>
    %437 = vector.multi_reduction <maximumf>, %436, %cst_148 [1] : vector<8x9xf32> to vector<8xf32>
    %438 = vector.shape_cast %437 : vector<8xf32> to vector<8x1xf32>
    %439 = vector.broadcast %438 : vector<8x1xf32> to vector<8x9xf32>
    %440 = arith.subf %436, %439 : vector<8x9xf32>
    %441 = math.exp %440 : vector<8x9xf32>
    %cst_149 = arith.constant dense<0.000000e+00> : vector<8xf32>
    %442 = vector.multi_reduction <add>, %441, %cst_149 [1] : vector<8x9xf32> to vector<8xf32>
    %443 = vector.shape_cast %442 : vector<8xf32> to vector<8x1xf32>
    %444 = tpu.reciprocal %443 : vector<8x1xf32> -> vector<8x1xf32>
    %445 = vector.broadcast %444 : vector<8x1xf32> to vector<8x9xf32>
    %446 = arith.mulf %441, %445 : vector<8x9xf32>
    %cst_150 = arith.constant dense<0.000000e+00> : vector<8x32xf32>
    %447 = tpu.matmul %446, %375, %cst_150 {dimension_numbers = #tpu.dot_dimension_numbers<[1], [0], [0], [1], [0, 0, 1, 1], [], []>} : vector<8x9xf32>, vector<9x32xf32>, vector<8x32xf32> -> vector<8x32xf32>
    %448 = tpu.concatenate %393, %411, %429, %447 in 1 : vector<8x32xf32>, vector<8x32xf32>, vector<8x32xf32>, vector<8x32xf32> -> vector<8x128xf32>
    %449 = vector.extract_strided_slice %346 {offsets = [8, 0], sizes = [8, 128], strides = [1, 1]} : vector<16x128xf32> to vector<8x128xf32>
    %450 = vector.extract_strided_slice %356 {offsets = [8, 0], sizes = [8, 32], strides = [1, 1]} : vector<16x32xf32> to vector<8x32xf32>
    %451 = tpu.concatenate %370, %450 in 0 : vector<1x32xf32>, vector<8x32xf32> -> vector<9x32xf32>
    %452 = vector.extract_strided_slice %330 {offsets = [8, 0], sizes = [8, 32], strides = [1, 1]} : vector<16x32xf32> to vector<8x32xf32>
    %453 = tpu.concatenate %360, %452 in 0 : vector<1x32xf32>, vector<8x32xf32> -> vector<9x32xf32>
    %454 = vector.extract_strided_slice %449 {offsets = [0, 0], sizes = [8, 32], strides = [1, 1]} : vector<8x128xf32> to vector<8x32xf32>
    %cst_151 = arith.constant dense<0.000000e+00> : vector<8x9xf32>
    %455 = tpu.matmul %454, %451, %cst_151 {dimension_numbers = #tpu.dot_dimension_numbers<[1], [1], [0], [0], [0, 0, 1, 0], [], []>} : vector<8x32xf32>, vector<9x32xf32>, vector<8x9xf32> -> vector<8x9xf32>
    %456 = vector.extract_strided_slice %1 {offsets = [0, 0, 0], sizes = [1, 8, 9], strides = [1, 1, 1]} : vector<4x8x9xf32> to vector<1x8x9xf32>
    %457 = vector.shape_cast %456 : vector<1x8x9xf32> to vector<8x9xf32>
    %458 = arith.addf %455, %457 : vector<8x9xf32>
    %cst_152 = arith.constant -3.40282347E+38 : f32
    %459 = vector.broadcast %cst_152 : f32 to vector<8x9xf32>
    %460 = arith.select %13, %459, %458 : vector<8x9xi1>, vector<8x9xf32>
    %cst_153 = arith.constant dense<0xFF800000> : vector<8xf32>
    %461 = vector.multi_reduction <maximumf>, %460, %cst_153 [1] : vector<8x9xf32> to vector<8xf32>
    %462 = vector.shape_cast %461 : vector<8xf32> to vector<8x1xf32>
    %463 = vector.broadcast %462 : vector<8x1xf32> to vector<8x9xf32>
    %464 = arith.subf %460, %463 : vector<8x9xf32>
    %465 = math.exp %464 : vector<8x9xf32>
    %cst_154 = arith.constant dense<0.000000e+00> : vector<8xf32>
    %466 = vector.multi_reduction <add>, %465, %cst_154 [1] : vector<8x9xf32> to vector<8xf32>
    %467 = vector.shape_cast %466 : vector<8xf32> to vector<8x1xf32>
    %468 = tpu.reciprocal %467 : vector<8x1xf32> -> vector<8x1xf32>
    %469 = vector.broadcast %468 : vector<8x1xf32> to vector<8x9xf32>
    %470 = arith.mulf %465, %469 : vector<8x9xf32>
    %cst_155 = arith.constant dense<0.000000e+00> : vector<8x32xf32>
    %471 = tpu.matmul %470, %453, %cst_155 {dimension_numbers = #tpu.dot_dimension_numbers<[1], [0], [0], [1], [0, 0, 1, 1], [], []>} : vector<8x9xf32>, vector<9x32xf32>, vector<8x32xf32> -> vector<8x32xf32>
    %472 = vector.extract_strided_slice %449 {offsets = [0, 32], sizes = [8, 32], strides = [1, 1]} : vector<8x128xf32> to vector<8x32xf32>
    %cst_156 = arith.constant dense<0.000000e+00> : vector<8x9xf32>
    %473 = tpu.matmul %472, %451, %cst_156 {dimension_numbers = #tpu.dot_dimension_numbers<[1], [1], [0], [0], [0, 0, 1, 0], [], []>} : vector<8x32xf32>, vector<9x32xf32>, vector<8x9xf32> -> vector<8x9xf32>
    %474 = vector.extract_strided_slice %1 {offsets = [1, 0, 0], sizes = [1, 8, 9], strides = [1, 1, 1]} : vector<4x8x9xf32> to vector<1x8x9xf32>
    %475 = vector.shape_cast %474 : vector<1x8x9xf32> to vector<8x9xf32>
    %476 = arith.addf %473, %475 : vector<8x9xf32>
    %cst_157 = arith.constant -3.40282347E+38 : f32
    %477 = vector.broadcast %cst_157 : f32 to vector<8x9xf32>
    %478 = arith.select %13, %477, %476 : vector<8x9xi1>, vector<8x9xf32>
    %cst_158 = arith.constant dense<0xFF800000> : vector<8xf32>
    %479 = vector.multi_reduction <maximumf>, %478, %cst_158 [1] : vector<8x9xf32> to vector<8xf32>
    %480 = vector.shape_cast %479 : vector<8xf32> to vector<8x1xf32>
    %481 = vector.broadcast %480 : vector<8x1xf32> to vector<8x9xf32>
    %482 = arith.subf %478, %481 : vector<8x9xf32>
    %483 = math.exp %482 : vector<8x9xf32>
    %cst_159 = arith.constant dense<0.000000e+00> : vector<8xf32>
    %484 = vector.multi_reduction <add>, %483, %cst_159 [1] : vector<8x9xf32> to vector<8xf32>
    %485 = vector.shape_cast %484 : vector<8xf32> to vector<8x1xf32>
    %486 = tpu.reciprocal %485 : vector<8x1xf32> -> vector<8x1xf32>
    %487 = vector.broadcast %486 : vector<8x1xf32> to vector<8x9xf32>
    %488 = arith.mulf %483, %487 : vector<8x9xf32>
    %cst_160 = arith.constant dense<0.000000e+00> : vector<8x32xf32>
    %489 = tpu.matmul %488, %453, %cst_160 {dimension_numbers = #tpu.dot_dimension_numbers<[1], [0], [0], [1], [0, 0, 1, 1], [], []>} : vector<8x9xf32>, vector<9x32xf32>, vector<8x32xf32> -> vector<8x32xf32>
    %490 = vector.extract_strided_slice %449 {offsets = [0, 64], sizes = [8, 32], strides = [1, 1]} : vector<8x128xf32> to vector<8x32xf32>
    %cst_161 = arith.constant dense<0.000000e+00> : vector<8x9xf32>
    %491 = tpu.matmul %490, %451, %cst_161 {dimension_numbers = #tpu.dot_dimension_numbers<[1], [1], [0], [0], [0, 0, 1, 0], [], []>} : vector<8x32xf32>, vector<9x32xf32>, vector<8x9xf32> -> vector<8x9xf32>
    %492 = vector.extract_strided_slice %1 {offsets = [2, 0, 0], sizes = [1, 8, 9], strides = [1, 1, 1]} : vector<4x8x9xf32> to vector<1x8x9xf32>
    %493 = vector.shape_cast %492 : vector<1x8x9xf32> to vector<8x9xf32>
    %494 = arith.addf %491, %493 : vector<8x9xf32>
    %cst_162 = arith.constant -3.40282347E+38 : f32
    %495 = vector.broadcast %cst_162 : f32 to vector<8x9xf32>
    %496 = arith.select %13, %495, %494 : vector<8x9xi1>, vector<8x9xf32>
    %cst_163 = arith.constant dense<0xFF800000> : vector<8xf32>
    %497 = vector.multi_reduction <maximumf>, %496, %cst_163 [1] : vector<8x9xf32> to vector<8xf32>
    %498 = vector.shape_cast %497 : vector<8xf32> to vector<8x1xf32>
    %499 = vector.broadcast %498 : vector<8x1xf32> to vector<8x9xf32>
    %500 = arith.subf %496, %499 : vector<8x9xf32>
    %501 = math.exp %500 : vector<8x9xf32>
    %cst_164 = arith.constant dense<0.000000e+00> : vector<8xf32>
    %502 = vector.multi_reduction <add>, %501, %cst_164 [1] : vector<8x9xf32> to vector<8xf32>
    %503 = vector.shape_cast %502 : vector<8xf32> to vector<8x1xf32>
    %504 = tpu.reciprocal %503 : vector<8x1xf32> -> vector<8x1xf32>
    %505 = vector.broadcast %504 : vector<8x1xf32> to vector<8x9xf32>
    %506 = arith.mulf %501, %505 : vector<8x9xf32>
    %cst_165 = arith.constant dense<0.000000e+00> : vector<8x32xf32>
    %507 = tpu.matmul %506, %453, %cst_165 {dimension_numbers = #tpu.dot_dimension_numbers<[1], [0], [0], [1], [0, 0, 1, 1], [], []>} : vector<8x9xf32>, vector<9x32xf32>, vector<8x32xf32> -> vector<8x32xf32>
    %508 = vector.extract_strided_slice %449 {offsets = [0, 96], sizes = [8, 32], strides = [1, 1]} : vector<8x128xf32> to vector<8x32xf32>
    %cst_166 = arith.constant dense<0.000000e+00> : vector<8x9xf32>
    %509 = tpu.matmul %508, %451, %cst_166 {dimension_numbers = #tpu.dot_dimension_numbers<[1], [1], [0], [0], [0, 0, 1, 0], [], []>} : vector<8x32xf32>, vector<9x32xf32>, vector<8x9xf32> -> vector<8x9xf32>
    %510 = vector.extract_strided_slice %1 {offsets = [3, 0, 0], sizes = [1, 8, 9], strides = [1, 1, 1]} : vector<4x8x9xf32> to vector<1x8x9xf32>
    %511 = vector.shape_cast %510 : vector<1x8x9xf32> to vector<8x9xf32>
    %512 = arith.addf %509, %511 : vector<8x9xf32>
    %cst_167 = arith.constant -3.40282347E+38 : f32
    %513 = vector.broadcast %cst_167 : f32 to vector<8x9xf32>
    %514 = arith.select %13, %513, %512 : vector<8x9xi1>, vector<8x9xf32>
    %cst_168 = arith.constant dense<0xFF800000> : vector<8xf32>
    %515 = vector.multi_reduction <maximumf>, %514, %cst_168 [1] : vector<8x9xf32> to vector<8xf32>
    %516 = vector.shape_cast %515 : vector<8xf32> to vector<8x1xf32>
    %517 = vector.broadcast %516 : vector<8x1xf32> to vector<8x9xf32>
    %518 = arith.subf %514, %517 : vector<8x9xf32>
    %519 = math.exp %518 : vector<8x9xf32>
    %cst_169 = arith.constant dense<0.000000e+00> : vector<8xf32>
    %520 = vector.multi_reduction <add>, %519, %cst_169 [1] : vector<8x9xf32> to vector<8xf32>
    %521 = vector.shape_cast %520 : vector<8xf32> to vector<8x1xf32>
    %522 = tpu.reciprocal %521 : vector<8x1xf32> -> vector<8x1xf32>
    %523 = vector.broadcast %522 : vector<8x1xf32> to vector<8x9xf32>
    %524 = arith.mulf %519, %523 : vector<8x9xf32>
    %cst_170 = arith.constant dense<0.000000e+00> : vector<8x32xf32>
    %525 = tpu.matmul %524, %453, %cst_170 {dimension_numbers = #tpu.dot_dimension_numbers<[1], [0], [0], [1], [0, 0, 1, 1], [], []>} : vector<8x9xf32>, vector<9x32xf32>, vector<8x32xf32> -> vector<8x32xf32>
    %526 = tpu.concatenate %471, %489, %507, %525 in 1 : vector<8x32xf32>, vector<8x32xf32>, vector<8x32xf32>, vector<8x32xf32> -> vector<8x128xf32>
    %527 = tpu.concatenate %448, %526 in 0 : vector<8x128xf32>, vector<8x128xf32> -> vector<16x128xf32>
    %c1_171 = arith.constant 1 : index
    %c0_172 = arith.constant 0 : index
    %c0_173 = arith.constant 0 : index
    %528 = vector.load %arg9[%c1_171, %c0_172, %c0_173] : memref<2x128x32xf32, #tpu.memory_space<vmem>>, vector<1x128x32xf32>
    %529 = vector.shape_cast %528 : vector<1x128x32xf32> to vector<128x32xf32>
    %cst_174 = arith.constant dense<0.000000e+00> : vector<16x32xf32>
    %530 = tpu.matmul %527, %529, %cst_174 {dimension_numbers = #tpu.dot_dimension_numbers<[1], [0], [0], [1], [0, 0, 1, 1], [], []>} : vector<16x128xf32>, vector<128x32xf32>, vector<16x32xf32> -> vector<16x32xf32>
    %c1_175 = arith.constant 1 : index
    %c0_176 = arith.constant 0 : index
    %c0_177 = arith.constant 0 : index
    %531 = vector.load %arg10[%c1_175, %c0_176, %c0_177] : memref<2x1x32xf32, #tpu.memory_space<vmem>>, vector<1x1x32xf32>
    %532 = vector.shape_cast %531 : vector<1x1x32xf32> to vector<1x32xf32>
    %cst_178 = arith.constant dense<0.000000e+00> : vector<16xf32>
    %533 = vector.multi_reduction <add>, %530, %cst_178 [1] : vector<16x32xf32> to vector<16xf32>
    %534 = vector.shape_cast %533 : vector<16xf32> to vector<16x1xf32>
    %cst_179 = arith.constant 3.200000e+01 : f32
    %535 = vector.broadcast %cst_179 : f32 to vector<16x1xf32>
    %536 = arith.divf %534, %535 : vector<16x1xf32>
    %537 = vector.broadcast %536 : vector<16x1xf32> to vector<16x32xf32>
    %538 = arith.subf %530, %537 : vector<16x32xf32>
    %539 = arith.mulf %538, %538 : vector<16x32xf32>
    %cst_180 = arith.constant dense<0.000000e+00> : vector<16xf32>
    %540 = vector.multi_reduction <add>, %539, %cst_180 [1] : vector<16x32xf32> to vector<16xf32>
    %541 = vector.shape_cast %540 : vector<16xf32> to vector<16x1xf32>
    %cst_181 = arith.constant 3.200000e+01 : f32
    %542 = vector.broadcast %cst_181 : f32 to vector<16x1xf32>
    %543 = arith.divf %541, %542 : vector<16x1xf32>
    %544 = vector.broadcast %536 : vector<16x1xf32> to vector<16x32xf32>
    %545 = arith.subf %530, %544 : vector<16x32xf32>
    %cst_182 = arith.constant 9.99999974E-6 : f32
    %546 = vector.broadcast %cst_182 : f32 to vector<16x1xf32>
    %547 = arith.addf %543, %546 : vector<16x1xf32>
    %548 = math.rsqrt %547 : vector<16x1xf32>
    %549 = vector.broadcast %548 : vector<16x1xf32> to vector<16x32xf32>
    %550 = arith.mulf %545, %549 : vector<16x32xf32>
    %551 = vector.broadcast %532 : vector<1x32xf32> to vector<16x32xf32>
    %552 = arith.mulf %550, %551 : vector<16x32xf32>
    %553 = arith.addf %302, %552 : vector<16x32xf32>
    %c1_183 = arith.constant 1 : index
    %c0_184 = arith.constant 0 : index
    %c0_185 = arith.constant 0 : index
    %554 = vector.load %arg11[%c1_183, %c0_184, %c0_185] : memref<2x1x32xf32, #tpu.memory_space<vmem>>, vector<1x1x32xf32>
    %555 = vector.shape_cast %554 : vector<1x1x32xf32> to vector<1x32xf32>
    %cst_186 = arith.constant dense<0.000000e+00> : vector<16xf32>
    %556 = vector.multi_reduction <add>, %553, %cst_186 [1] : vector<16x32xf32> to vector<16xf32>
    %557 = vector.shape_cast %556 : vector<16xf32> to vector<16x1xf32>
    %cst_187 = arith.constant 3.200000e+01 : f32
    %558 = vector.broadcast %cst_187 : f32 to vector<16x1xf32>
    %559 = arith.divf %557, %558 : vector<16x1xf32>
    %560 = vector.broadcast %559 : vector<16x1xf32> to vector<16x32xf32>
    %561 = arith.subf %553, %560 : vector<16x32xf32>
    %562 = arith.mulf %561, %561 : vector<16x32xf32>
    %cst_188 = arith.constant dense<0.000000e+00> : vector<16xf32>
    %563 = vector.multi_reduction <add>, %562, %cst_188 [1] : vector<16x32xf32> to vector<16xf32>
    %564 = vector.shape_cast %563 : vector<16xf32> to vector<16x1xf32>
    %cst_189 = arith.constant 3.200000e+01 : f32
    %565 = vector.broadcast %cst_189 : f32 to vector<16x1xf32>
    %566 = arith.divf %564, %565 : vector<16x1xf32>
    %567 = vector.broadcast %559 : vector<16x1xf32> to vector<16x32xf32>
    %568 = arith.subf %553, %567 : vector<16x32xf32>
    %cst_190 = arith.constant 9.99999974E-6 : f32
    %569 = vector.broadcast %cst_190 : f32 to vector<16x1xf32>
    %570 = arith.addf %566, %569 : vector<16x1xf32>
    %571 = math.rsqrt %570 : vector<16x1xf32>
    %572 = vector.broadcast %571 : vector<16x1xf32> to vector<16x32xf32>
    %573 = arith.mulf %568, %572 : vector<16x32xf32>
    %574 = vector.broadcast %555 : vector<1x32xf32> to vector<16x32xf32>
    %575 = arith.mulf %573, %574 : vector<16x32xf32>
    %c1_191 = arith.constant 1 : index
    %c0_192 = arith.constant 0 : index
    %c0_193 = arith.constant 0 : index
    %576 = vector.load %arg12[%c1_191, %c0_192, %c0_193] : memref<2x32x256xf32, #tpu.memory_space<vmem>>, vector<1x32x256xf32>
    %577 = vector.shape_cast %576 : vector<1x32x256xf32> to vector<32x256xf32>
    %cst_194 = arith.constant dense<0.000000e+00> : vector<16x256xf32>
    %578 = tpu.matmul %575, %577, %cst_194 {dimension_numbers = #tpu.dot_dimension_numbers<[1], [0], [0], [1], [0, 0, 1, 1], [], []>} : vector<16x32xf32>, vector<32x256xf32>, vector<16x256xf32> -> vector<16x256xf32>
    %579 = vector.extract_strided_slice %578 {offsets = [0, 0], sizes = [16, 128], strides = [1, 1]} : vector<16x256xf32> to vector<16x128xf32>
    %580 = vector.extract_strided_slice %578 {offsets = [0, 128], sizes = [16, 128], strides = [1, 1]} : vector<16x256xf32> to vector<16x128xf32>
    %581 = arith.negf %580 : vector<16x128xf32>
    %582 = math.exp %581 : vector<16x128xf32>
    %cst_195 = arith.constant 1.000000e+00 : f32
    %583 = vector.broadcast %cst_195 : f32 to vector<16x128xf32>
    %584 = arith.addf %583, %582 : vector<16x128xf32>
    %585 = arith.divf %583, %584 : vector<16x128xf32>
    %586 = arith.mulf %580, %585 : vector<16x128xf32>
    %587 = arith.mulf %579, %586 : vector<16x128xf32>
    %c1_196 = arith.constant 1 : index
    %c0_197 = arith.constant 0 : index
    %c0_198 = arith.constant 0 : index
    %588 = vector.load %arg13[%c1_196, %c0_197, %c0_198] : memref<2x128x32xf32, #tpu.memory_space<vmem>>, vector<1x128x32xf32>
    %589 = vector.shape_cast %588 : vector<1x128x32xf32> to vector<128x32xf32>
    %cst_199 = arith.constant dense<0.000000e+00> : vector<16x32xf32>
    %590 = tpu.matmul %587, %589, %cst_199 {dimension_numbers = #tpu.dot_dimension_numbers<[1], [0], [0], [1], [0, 0, 1, 1], [], []>} : vector<16x128xf32>, vector<128x32xf32>, vector<16x32xf32> -> vector<16x32xf32>
    %591 = arith.addf %553, %590 : vector<16x32xf32>
    %cst_200 = arith.constant dense<0xFF800000> : vector<16xf32>
    %592 = vector.multi_reduction <maximumf>, %591, %cst_200 [1] : vector<16x32xf32> to vector<16xf32>
    %593 = vector.shape_cast %592 : vector<16xf32> to vector<16x1xf32>
    %594 = vector.broadcast %593 : vector<16x1xf32> to vector<16x32xf32>
    %595 = arith.divf %591, %594 : vector<16x32xf32>
    %c0_201 = arith.constant 0 : index
    %c0_202 = arith.constant 0 : index
    %596 = vector.load %arg14[%c0_201, %c0_202] : memref<1x32xf32, #tpu.memory_space<vmem>>, vector<1x32xf32>
    %cst_203 = arith.constant dense<0.000000e+00> : vector<16xf32>
    %597 = vector.multi_reduction <add>, %595, %cst_203 [1] : vector<16x32xf32> to vector<16xf32>
    %598 = vector.shape_cast %597 : vector<16xf32> to vector<16x1xf32>
    %cst_204 = arith.constant 3.200000e+01 : f32
    %599 = vector.broadcast %cst_204 : f32 to vector<16x1xf32>
    %600 = arith.divf %598, %599 : vector<16x1xf32>
    %601 = vector.broadcast %600 : vector<16x1xf32> to vector<16x32xf32>
    %602 = arith.subf %595, %601 : vector<16x32xf32>
    %603 = arith.mulf %602, %602 : vector<16x32xf32>
    %cst_205 = arith.constant dense<0.000000e+00> : vector<16xf32>
    %604 = vector.multi_reduction <add>, %603, %cst_205 [1] : vector<16x32xf32> to vector<16xf32>
    %605 = vector.shape_cast %604 : vector<16xf32> to vector<16x1xf32>
    %cst_206 = arith.constant 3.200000e+01 : f32
    %606 = vector.broadcast %cst_206 : f32 to vector<16x1xf32>
    %607 = arith.divf %605, %606 : vector<16x1xf32>
    %608 = vector.broadcast %600 : vector<16x1xf32> to vector<16x32xf32>
    %609 = arith.subf %595, %608 : vector<16x32xf32>
    %cst_207 = arith.constant 9.99999974E-6 : f32
    %610 = vector.broadcast %cst_207 : f32 to vector<16x1xf32>
    %611 = arith.addf %607, %610 : vector<16x1xf32>
    %612 = math.rsqrt %611 : vector<16x1xf32>
    %613 = vector.broadcast %612 : vector<16x1xf32> to vector<16x32xf32>
    %614 = arith.mulf %609, %613 : vector<16x32xf32>
    %615 = vector.broadcast %596 : vector<1x32xf32> to vector<16x32xf32>
    %616 = arith.mulf %614, %615 : vector<16x32xf32>
    %c0_208 = arith.constant 0 : index
    %c0_209 = arith.constant 0 : index
    %617 = vector.load %arg15[%c0_208, %c0_209] : memref<32x32xf32, #tpu.memory_space<vmem>>, vector<32x32xf32>
    %cst_210 = arith.constant dense<0.000000e+00> : vector<16x32xf32>
    %618 = tpu.matmul %616, %617, %cst_210 {dimension_numbers = #tpu.dot_dimension_numbers<[1], [0], [0], [1], [0, 0, 1, 1], [], []>} : vector<16x32xf32>, vector<32x32xf32>, vector<16x32xf32> -> vector<16x32xf32>
    %c0_211 = arith.constant 0 : index
    %c0_212 = arith.constant 0 : index
    %619 = vector.load %arg16[%c0_211, %c0_212] : memref<16x32xf32, #tpu.memory_space<vmem>>, vector<16x32xf32>
    tpu.vector_store %arg16[%c0_211, %c0_212], %618 {strides = array<i32>} : memref<16x32xf32, #tpu.memory_space<vmem>>, vector<16x32xf32>,
    return
  }
}

</mosaic_0001>

<llo_original>
// kernel: causal_transformer_forward.1
$region0: #{causal_transformer_forward.1}
  #allocation0 [shape = 'u32[]', space=smem, size = 0x4, offset = 0x4, fixed_abs, tag = 'smem constant byte address 0x4 - core index']
  #allocation1 [shape = 'u32[144,128]{1,0:T(1,128)}', space=vmem, size = 0x12000, scoped, tag = 'internal scratch']
  %s0 = inlined_call_operand.vmem [shape: f32[16,32], index: 0, kind: input, shape index: {}]
  %s1 = inlined_call_operand.vmem [shape: f32[4,8,9], index: 1, kind: input, shape index: {}]
  %s2 = inlined_call_operand.vmem [shape: f32[16,128], index: 2, kind: input, shape index: {}]
  %s3 = inlined_call_operand.vmem [shape: f32[16,128], index: 3, kind: input, shape index: {}]
  %s4 = inlined_call_operand.vmem [shape: f32[128,128], index: 4, kind: input, shape index: {}]
  %s5 = inlined_call_operand.vmem [shape: f32[128,128], index: 5, kind: input, shape index: {}]
  %s6 = inlined_call_operand.vmem [shape: f32[2,1,32], index: 6, kind: input, shape index: {}]
  %s7 = inlined_call_operand.vmem [shape: f32[2,32,192], index: 7, kind: input, shape index: {}]
  %s8 = inlined_call_operand.vmem [shape: f32[2,2,32], index: 8, kind: input, shape index: {}]
  %s9 = inlined_call_operand.vmem [shape: f32[2,128,32], index: 9, kind: input, shape index: {}]
  %s10 = inlined_call_operand.vmem [shape: f32[2,1,32], index: 10, kind: input, shape index: {}]
  %s11 = inlined_call_operand.vmem [shape: f32[2,1,32], index: 11, kind: input, shape index: {}]
  %s12 = inlined_call_operand.vmem [shape: f32[2,32,256], index: 12, kind: input, shape index: {}]
  %s13 = inlined_call_operand.vmem [shape: f32[2,128,32], index: 13, kind: input, shape index: {}]
  %s14 = inlined_call_operand.vmem [shape: f32[1,32], index: 14, kind: input, shape index: {}]
  %s15 = inlined_call_operand.vmem [shape: f32[32,32], index: 15, kind: input, shape index: {}]
  %s16 = inlined_call_operand.hbm [shape: f32[16,32], index: 16, kind: output, shape index: {}]
  %s17 = sld [smem:[#allocation0]]
  $region74: #{causal_transformer_forward.1} parent=0
    _
  %s19 = ssub.s32 1, %s17
  %s20 = scalar_select 0, %s19, %s17
  $region1: #{causal_transformer_forward.1} parent=0
    #allocation2 [shape = 'u8[8192]{0}', space=vmem, size = 0x2000, scoped, tag = 'output window, operand 0, single buffered']
    #allocation3 [shape = 's32[1]{0}', space=sflag, size = 0x4, scoped, tag = 'scoped memory for causal_transformer_forward.1']
    %21 = vsyncpa [#allocation3], 0
    // Predicated region
    $region2: #{causal_transformer_forward.1} parent=1 // pred_check
      _
    $region3: #{causal_transformer_forward.1} parent=1 // pred_check_branch
      %23 = sbr.rel (0) target = $region5
    $region4: #{causal_transformer_forward.1} parent=1 // pred_region
      _
    $region5: #{causal_transformer_forward.1} parent=1 // pred_fallthru
      _
    // Predicated region
    $region6: #{causal_transformer_forward.1} parent=1 // pred_check
      _
    $region7: #{causal_transformer_forward.1} parent=1 // pred_check_branch
      %25 = sbr.rel (0) target = $region9
    $region8: #{causal_transformer_forward.1} parent=1 // pred_region
      _
    $region9: #{causal_transformer_forward.1} parent=1 // pred_fallthru
      _
    // Predicated region
    $region10: #{causal_transformer_forward.1} parent=1 // pred_check
      _
    $region11: #{causal_transformer_forward.1} parent=1 // pred_check_branch
      %27 = sbr.rel (0) target = $region13
    $region12: #{causal_transformer_forward.1} parent=1 // pred_region
      _
    $region13: #{causal_transformer_forward.1} parent=1 // pred_fallthru
      _
    // Predicated region
    $region14: #{causal_transformer_forward.1} parent=1 // pred_check
      _
    $region15: #{causal_transformer_forward.1} parent=1 // pred_check_branch
      %29 = sbr.rel (0) target = $region17
    $region16: #{causal_transformer_forward.1} parent=1 // pred_region
      _
    $region17: #{causal_transformer_forward.1} parent=1 // pred_fallthru
      _
    // Predicated region
    $region18: #{causal_transformer_forward.1} parent=1 // pred_check
      _
    $region19: #{causal_transformer_forward.1} parent=1 // pred_check_branch
      %31 = sbr.rel (0) target = $region21
    $region20: #{causal_transformer_forward.1} parent=1 // pred_region
      _
    $region21: #{causal_transformer_forward.1} parent=1 // pred_fallthru
      _
    // Predicated region
    $region22: #{causal_transformer_forward.1} parent=1 // pred_check
      _
    $region23: #{causal_transformer_forward.1} parent=1 // pred_check_branch
      %33 = sbr.rel (0) target = $region25
    $region24: #{causal_transformer_forward.1} parent=1 // pred_region
      _
    $region25: #{causal_transformer_forward.1} parent=1 // pred_fallthru
      _
    // Predicated region
    $region26: #{causal_transformer_forward.1} parent=1 // pred_check
      _
    $region27: #{causal_transformer_forward.1} parent=1 // pred_check_branch
      %35 = sbr.rel (0) target = $region29
    $region28: #{causal_transformer_forward.1} parent=1 // pred_region
      _
    $region29: #{causal_transformer_forward.1} parent=1 // pred_fallthru
      _
    // Predicated region
    $region30: #{causal_transformer_forward.1} parent=1 // pred_check
      _
    $region31: #{causal_transformer_forward.1} parent=1 // pred_check_branch
      %37 = sbr.rel (0) target = $region33
    $region32: #{causal_transformer_forward.1} parent=1 // pred_region
      _
    $region33: #{causal_transformer_forward.1} parent=1 // pred_fallthru
      _
    // Predicated region
    $region34: #{causal_transformer_forward.1} parent=1 // pred_check
      _
    $region35: #{causal_transformer_forward.1} parent=1 // pred_check_branch
      %39 = sbr.rel (0) target = $region37
    $region36: #{causal_transformer_forward.1} parent=1 // pred_region
      _
    $region37: #{causal_transformer_forward.1} parent=1 // pred_fallthru
      _
    // Predicated region
    $region38: #{causal_transformer_forward.1} parent=1 // pred_check
      _
    $region39: #{causal_transformer_forward.1} parent=1 // pred_check_branch
      %41 = sbr.rel (0) target = $region41
    $region40: #{causal_transformer_forward.1} parent=1 // pred_region
      _
    $region41: #{causal_transformer_forward.1} parent=1 // pred_fallthru
      _
    // Predicated region
    $region42: #{causal_transformer_forward.1} parent=1 // pred_check
      _
    $region43: #{causal_transformer_forward.1} parent=1 // pred_check_branch
      %43 = sbr.rel (0) target = $region45
    $region44: #{causal_transformer_forward.1} parent=1 // pred_region
      _
    $region45: #{causal_transformer_forward.1} parent=1 // pred_fallthru
      _
    // Predicated region
    $region46: #{causal_transformer_forward.1} parent=1 // pred_check
      _
    $region47: #{causal_transformer_forward.1} parent=1 // pred_check_branch
      %45 = sbr.rel (0) target = $region49
    $region48: #{causal_transformer_forward.1} parent=1 // pred_region
      _
    $region49: #{causal_transformer_forward.1} parent=1 // pred_fallthru
      _
    // Predicated region
    $region50: #{causal_transformer_forward.1} parent=1 // pred_check
      _
    $region51: #{causal_transformer_forward.1} parent=1 // pred_check_branch
      %47 = sbr.rel (0) target = $region53
    $region52: #{causal_transformer_forward.1} parent=1 // pred_region
      _
    $region53: #{causal_transformer_forward.1} parent=1 // pred_fallthru
      _
    // Predicated region
    $region54: #{causal_transformer_forward.1} parent=1 // pred_check
      _
    $region55: #{causal_transformer_forward.1} parent=1 // pred_check_branch
      %49 = sbr.rel (0) target = $region57
    $region56: #{causal_transformer_forward.1} parent=1 // pred_region
      _
    $region57: #{causal_transformer_forward.1} parent=1 // pred_fallthru
      _
    // Predicated region
    $region58: #{causal_transformer_forward.1} parent=1 // pred_check
      _
    $region59: #{causal_transformer_forward.1} parent=1 // pred_check_branch
      %51 = sbr.rel (0) target = $region61
    $region60: #{causal_transformer_forward.1} parent=1 // pred_region
      _
    $region61: #{causal_transformer_forward.1} parent=1 // pred_fallthru
      _
    // Predicated region
    $region62: #{causal_transformer_forward.1} parent=1 // pred_check
      _
    $region63: #{causal_transformer_forward.1} parent=1 // pred_check_branch
      %53 = sbr.rel (0) target = $region65
    $region64: #{causal_transformer_forward.1} parent=1 // pred_region
      _
    $region65: #{causal_transformer_forward.1} parent=1 // pred_fallthru
      _
    %v54 = vld [vmem:[%s0] sm:$0xff]
    %v55 = vld [vmem:[%s0 + $0x8] sm:$0xff]
    %v56 = vld [vmem:[%s1] sm:$0xff]
    %v57 = vld [vmem:[%s1 + $0x8] sm:$0xff]
    %v58 = vld [vmem:[%s1 + $0x10] sm:$0xff]
    %v59 = vld [vmem:[%s1 + $0x18] sm:$0xff]
    %v60 = vld [vmem:[%s2] sm:$0xff]
    %v61 = vld [vmem:[%s2 + $0x8] sm:$0xff]
    %v62 = vld [vmem:[%s3] sm:$0xff]
    %v63 = vld [vmem:[%s3 + $0x8] sm:$0xff]
    %v64 = vld [vmem:[%s4] sm:$0xff]
    %v65 = vld [vmem:[%s4 + $0x8] sm:$0xff]
    %v66 = vld [vmem:[%s4 + $0x10] sm:$0xff]
    %v67 = vld [vmem:[%s4 + $0x18] sm:$0xff]
    %v68 = vld [vmem:[%s4 + $0x20] sm:$0xff]
    %v69 = vld [vmem:[%s4 + $0x28] sm:$0xff]
    %v70 = vld [vmem:[%s4 + $0x30] sm:$0xff]
    %v71 = vld [vmem:[%s4 + $0x38] sm:$0xff]
    %v72 = vld [vmem:[%s4 + $0x40] sm:$0xff]
    %v73 = vld [vmem:[%s4 + $0x48] sm:$0xff]
    %v74 = vld [vmem:[%s4 + $0x50] sm:$0xff]
    %v75 = vld [vmem:[%s4 + $0x58] sm:$0xff]
    %v76 = vld [vmem:[%s4 + $0x60] sm:$0xff]
    %v77 = vld [vmem:[%s4 + $0x68] sm:$0xff]
    %v78 = vld [vmem:[%s4 + $0x70] sm:$0xff]
    %v79 = vld [vmem:[%s4 + $0x78] sm:$0xff]
    %v80 = vld [vmem:[%s5] sm:$0xff]
    %v81 = vld [vmem:[%s5 + $0x8] sm:$0xff]
    %v82 = vld [vmem:[%s5 + $0x10] sm:$0xff]
    %v83 = vld [vmem:[%s5 + $0x18] sm:$0xff]
    %v84 = vld [vmem:[%s5 + $0x20] sm:$0xff]
    %v85 = vld [vmem:[%s5 + $0x28] sm:$0xff]
    %v86 = vld [vmem:[%s5 + $0x30] sm:$0xff]
    %v87 = vld [vmem:[%s5 + $0x38] sm:$0xff]
    %v88 = vld [vmem:[%s5 + $0x40] sm:$0xff]
    %v89 = vld [vmem:[%s5 + $0x48] sm:$0xff]
    %v90 = vld [vmem:[%s5 + $0x50] sm:$0xff]
    %v91 = vld [vmem:[%s5 + $0x58] sm:$0xff]
    %v92 = vld [vmem:[%s5 + $0x60] sm:$0xff]
    %v93 = vld [vmem:[%s5 + $0x68] sm:$0xff]
    %v94 = vld [vmem:[%s5 + $0x70] sm:$0xff]
    %v95 = vld [vmem:[%s5 + $0x78] sm:$0xff]
    %v96 = vlaneseq
    %v97 = vshrl.u32 %v96, 7
    %v98 = vlaneseq
    %v99 = vand.u32 %v98, 127
    %v100 = vadd.s32 %v97, 1
    %vm101 = vcmp.gt.s32.totalorder %v99, %v100
    %v102 = vld [vmem:[%s6] sm:$0x1]
    %vm103 = vcmask 261120
    %v104 = vsel %vm103, %v54, 0.0
    %105 = vadd.xlane.f32.xlu0 %v104
    %v106 = vpop.xlane.xlu0 %105
    %v107 = vsel %vm103, %v55, 0.0
    %108 = vadd.xlane.f32.xlu0 %v107
    %v109 = vpop.xlane.xlu0 %108
    %v110 = vrcp.pop 32.0
    %v111 = vmul.f32 %v106, %v110
    %v112 = vmul.f32 %v109, %v110
    %v113 = vsub.f32 %v54, %v111
    %v114 = vsub.f32 %v55, %v112
    %v115 = vmul.f32 %v113, %v113
    %v116 = vmul.f32 %v114, %v114
    %v117 = vsel %vm103, %v115, 0.0
    %118 = vadd.xlane.f32.xlu0 %v117
    %v119 = vpop.xlane.xlu0 %118
    %v120 = vsel %vm103, %v116, 0.0
    %121 = vadd.xlane.f32.xlu0 %v120
    %v122 = vpop.xlane.xlu0 %121
    %v123 = vmul.f32 %v119, %v110
    %v124 = vmul.f32 %v122, %v110
    %v125 = vadd.f32 %v123, 1e-05
    %v126 = vadd.f32 %v124, 1e-05
    %v127 = vrsqrt.pop %v125
    %v128 = vrsqrt.pop %v126
    %v129 = vmul.f32 %v113, %v127
    %v130 = vmul.f32 %v114, %v128
    %v132 = vlaneseq
    %v133 = vshrl.u32 %v132, 7
    %v134 = vsub.s32 0, %v133
    %v135 = vrot.slane %v102, %v134
    %v137 = vmul.f32 %v129, %v135
    %v138 = vmul.f32 %v130, %v135
    %v139 = vld [vmem:[%s7] sm:$0xff]
    %v140 = vld [vmem:[%s7 + $0x8] sm:$0xff]
    %v141 = vld [vmem:[%s7 + $0x10] sm:$0xff]
    %v142 = vld [vmem:[%s7 + $0x18] sm:$0xff]
    %v143 = vld [vmem:[%s7 + $0x20] sm:$0xff]
    %v144 = vld [vmem:[%s7 + $0x28] sm:$0xff]
    %v145 = vld [vmem:[%s7 + $0x30] sm:$0xff]
    %v146 = vld [vmem:[%s7 + $0x38] sm:$0xff]
    %v148 = vsel %vm103, %v137, 0
    %v151 = vsel %vm103, %v138, 0
    %153 = vmatprep.subr.mxu0 %v140
    %154 = vmatpush1.msra.mxu0 %v139
    %155 = vmatprep.subr.mxu0 %v142
    %156 = vmatpush1.msra.mxu0 %v141
    %157 = vmatprep.subr.mxu0 %v144
    %158 = vmatpush1.msra.mxu0 %v143
    %159 = vmatprep.subr.mxu0 %v146
    %160 = vmatpush1.msra.mxu0 %v145
    %161 = vmatprep.subr.mxu0 0.0
    %162 = vmatpush1.msra.mxu0 0.0
    %163 = vmatprep.subr.mxu0 0.0
    %164 = vmatpush1.msra.mxu0 0.0
    %165 = vmatprep.subr.mxu0 0.0
    %166 = vmatpush1.msra.mxu0 0.0
    %167 = vmatprep.subr.mxu0 0.0
    %168 = vmatpush1.msra.mxu0 0.0
    %169 = vmatprep.subr.mxu0 0.0
    %170 = vmatpush1.msra.mxu0 0.0
    %171 = vmatprep.subr.mxu0 0.0
    %172 = vmatpush1.msra.mxu0 0.0
    %173 = vmatprep.subr.mxu0 0.0
    %174 = vmatpush1.msra.mxu0 0.0
    %175 = vmatprep.subr.mxu0 0.0
    %176 = vmatpush1.msra.mxu0 0.0
    %177 = vmatprep.subr.mxu0 0.0
    %178 = vmatpush1.msra.mxu0 0.0
    %179 = vmatprep.subr.mxu0 0.0
    %180 = vmatpush1.msra.mxu0 0.0
    %181 = vmatprep.subr.mxu0 0.0
    %182 = vmatpush1.msra.mxu0 0.0
    %183 = vmatprep.subr.mxu0 0.0
    %184 = vmatpush1.msra.mxu0 0.0
    %185 = vmatprep.subr.mxu0 0.0
    %186 = vmatpush1.msra.mxu0 0.0
    %187 = vmatprep.subr.mxu0 0.0
    %188 = vmatpush1.msra.mxu0 0.0
    %189 = vmatprep.subr.mxu0 0.0
    %190 = vmatpush1.msra.mxu0 0.0
    %191 = vmatprep.subr.mxu0 0.0
    %192 = vmatpush1.msra.mxu0 0.0
    %193 = vmatprep.subr.mxu0 0.0
    %194 = vmatpush1.msra.mxu0 0.0
    %195 = vmatprep.subr.mxu0 0.0
    %196 = vmatpush1.msra.mxu0 0.0
    %197 = vmatprep.subr.mxu0 0.0
    %198 = vmatpush1.msra.mxu0 0.0
    %199 = vmatprep.subr.mxu0 0.0
    %200 = vmatpush1.msra.mxu0 0.0
    %201 = vmatprep.subr.mxu0 0.0
    %202 = vmatpush1.msra.mxu0 0.0
    %203 = vmatprep.subr.mxu0 0.0
    %204 = vmatpush1.msra.mxu0 0.0
    %205 = vmatprep.subr.mxu0 0.0
    %206 = vmatpush1.msra.mxu0 0.0
    %207 = vmatprep.subr.mxu0 0.0
    %208 = vmatpush1.msra.mxu0 0.0
    %209 = vmatprep.subr.mxu0 0.0
    %210 = vmatpush1.msra.mxu0 0.0
    %211 = vmatprep.subr.mxu0 0.0
    %212 = vmatpush1.msra.mxu0 0.0
    %213 = vmatprep.subr.mxu0 0.0
    %214 = vmatpush1.msra.mxu0 0.0
    %215 = vmatprep.subr.mxu0 0.0
    %216 = vmatpush1.msra.mxu0 0.0
    %217 = vmatprep.mubr.f32.mxu0 0.0
    %218 = vmatmul.mubr.f32.gmra.mrb[0].mxu0 %v148
    %v219 = vpop.f32.mrb[0].mxu0
    %v220 = vadd.f32 0.0, %v219
    %v221 = vpop.f32.mrb[0].mxu0
    %v222 = vadd.f32 0.0, %v221
    %223 = vmatprep.mubr.f32.mxu0 0.0
    %224 = vmatmul.mubr.f32.gmra.mrb[0].mxu0 %v151
    %v225 = vpop.f32.mrb[0].mxu0
    %v226 = vadd.f32 0.0, %v225
    %v227 = vpop.f32.mrb[0].mxu0
    %v228 = vadd.f32 0.0, %v227
    %229 = vdwg.mxu0
    %v230 = vmul.f32 %v220, %v60
    %v231 = vmul.f32 %v226, %v61
    %232 = vmatprep.subr.mxu0 0.0
    %233 = vmatpush1.msra.mxu0 %v64
    %234 = vmatprep.subr.mxu0 0.0
    %235 = vmatpush1.msra.mxu0 %v65
    %236 = vmatprep.subr.mxu0 0.0
    %237 = vmatpush1.msra.mxu0 %v66
    %238 = vmatprep.subr.mxu0 0.0
    %239 = vmatpush1.msra.mxu0 %v67
    %240 = vmatprep.subr.mxu0 0.0
    %241 = vmatpush1.msra.mxu0 %v68
    %242 = vmatprep.subr.mxu0 0.0
    %243 = vmatpush1.msra.mxu0 %v69
    %244 = vmatprep.subr.mxu0 0.0
    %245 = vmatpush1.msra.mxu0 %v70
    %246 = vmatprep.subr.mxu0 0.0
    %247 = vmatpush1.msra.mxu0 %v71
    %248 = vmatprep.subr.mxu0 0.0
    %249 = vmatpush1.msra.mxu0 %v72
    %250 = vmatprep.subr.mxu0 0.0
    %251 = vmatpush1.msra.mxu0 %v73
    %252 = vmatprep.subr.mxu0 0.0
    %253 = vmatpush1.msra.mxu0 %v74
    %254 = vmatprep.subr.mxu0 0.0
    %255 = vmatpush1.msra.mxu0 %v75
    %256 = vmatprep.subr.mxu0 0.0
    %257 = vmatpush1.msra.mxu0 %v76
    %258 = vmatprep.subr.mxu0 0.0
    %259 = vmatpush1.msra.mxu0 %v77
    %260 = vmatprep.subr.mxu0 0.0
    %261 = vmatpush1.msra.mxu0 %v78
    %262 = vmatprep.subr.mxu0 0.0
    %263 = vmatpush1.msra.mxu0 %v79
    %264 = vmatprep.subr.mxu0 0.0
    %265 = vmatpush1.msra.mxu0 0.0
    %266 = vmatprep.subr.mxu0 0.0
    %267 = vmatpush1.msra.mxu0 0.0
    %268 = vmatprep.subr.mxu0 0.0
    %269 = vmatpush1.msra.mxu0 0.0
    %270 = vmatprep.subr.mxu0 0.0
    %271 = vmatpush1.msra.mxu0 0.0
    %272 = vmatprep.subr.mxu0 0.0
    %273 = vmatpush1.msra.mxu0 0.0
    %274 = vmatprep.subr.mxu0 0.0
    %275 = vmatpush1.msra.mxu0 0.0
    %276 = vmatprep.subr.mxu0 0.0
    %277 = vmatpush1.msra.mxu0 0.0
    %278 = vmatprep.subr.mxu0 0.0
    %279 = vmatpush1.msra.mxu0 0.0
    %280 = vmatprep.subr.mxu0 0.0
    %281 = vmatpush1.msra.mxu0 0.0
    %282 = vmatprep.subr.mxu0 0.0
    %283 = vmatpush1.msra.mxu0 0.0
    %284 = vmatprep.subr.mxu0 0.0
    %285 = vmatpush1.msra.mxu0 0.0
    %286 = vmatprep.subr.mxu0 0.0
    %287 = vmatpush1.msra.mxu0 0.0
    %288 = vmatprep.subr.mxu0 0.0
    %289 = vmatpush1.msra.mxu0 0.0
    %290 = vmatprep.subr.mxu0 0.0
    %291 = vmatpush1.msra.mxu0 0.0
    %292 = vmatprep.subr.mxu0 0.0
    %293 = vmatpush1.msra.mxu0 0.0
    %294 = vmatprep.subr.mxu0 0.0
    %295 = vmatpush1.msra.mxu0 0.0
    %296 = vmatprep.mubr.f32.mxu0 0.0
    %297 = vmatmul.mubr.f32.gmra.mrb[0].mxu0 %v220
    %v298 = vpop.f32.mrb[0].mxu0
    %v299 = vadd.f32 0.0, %v298
    %v300 = vpop.f32.mrb[0].mxu0
    %301 = vmatprep.mubr.f32.mxu0 0.0
    %302 = vmatmul.mubr.f32.gmra.mrb[0].mxu0 %v226
    %v303 = vpop.f32.mrb[0].mxu0
    %v304 = vadd.f32 0.0, %v303
    %v305 = vpop.f32.mrb[0].mxu0
    %306 = vdwg.mxu0
    %v307 = vmul.f32 %v299, %v62
    %v308 = vmul.f32 %v304, %v63
    %v309 = vadd.f32 %v230, %v307
    %v310 = vadd.f32 %v231, %v308
    %v311 = vmul.f32 %v222, %v60
    %v312 = vmul.f32 %v228, %v61
    %v314 = vsel %vm103, %v222, 0
    %v317 = vsel %vm103, %v228, 0
    %319 = vmatprep.subr.mxu0 0.0
    %320 = vmatpush1.msra.mxu0 %v64
    %321 = vmatprep.subr.mxu0 0.0
    %322 = vmatpush1.msra.mxu0 %v65
    %323 = vmatprep.subr.mxu0 0.0
    %324 = vmatpush1.msra.mxu0 %v66
    %325 = vmatprep.subr.mxu0 0.0
    %326 = vmatpush1.msra.mxu0 %v67
    %327 = vmatprep.subr.mxu0 0.0
    %328 = vmatpush1.msra.mxu0 0.0
    %329 = vmatprep.subr.mxu0 0.0
    %330 = vmatpush1.msra.mxu0 0.0
    %331 = vmatprep.subr.mxu0 0.0
    %332 = vmatpush1.msra.mxu0 0.0
    %333 = vmatprep.subr.mxu0 0.0
    %334 = vmatpush1.msra.mxu0 0.0
    %335 = vmatprep.subr.mxu0 0.0
    %336 = vmatpush1.msra.mxu0 0.0
    %337 = vmatprep.subr.mxu0 0.0
    %338 = vmatpush1.msra.mxu0 0.0
    %339 = vmatprep.subr.mxu0 0.0
    %340 = vmatpush1.msra.mxu0 0.0
    %341 = vmatprep.subr.mxu0 0.0
    %342 = vmatpush1.msra.mxu0 0.0
    %343 = vmatprep.subr.mxu0 0.0
    %344 = vmatpush1.msra.mxu0 0.0
    %345 = vmatprep.subr.mxu0 0.0
    %346 = vmatpush1.msra.mxu0 0.0
    %347 = vmatprep.subr.mxu0 0.0
    %348 = vmatpush1.msra.mxu0 0.0
    %349 = vmatprep.subr.mxu0 0.0
    %350 = vmatpush1.msra.mxu0 0.0
    %351 = vmatprep.subr.mxu0 0.0
    %352 = vmatpush1.msra.mxu0 0.0
    %353 = vmatprep.subr.mxu0 0.0
    %354 = vmatpush1.msra.mxu0 0.0
    %355 = vmatprep.subr.mxu0 0.0
    %356 = vmatpush1.msra.mxu0 0.0
    %357 = vmatprep.subr.mxu0 0.0
    %358 = vmatpush1.msra.mxu0 0.0
    %359 = vmatprep.subr.mxu0 0.0
    %360 = vmatpush1.msra.mxu0 0.0
    %361 = vmatprep.subr.mxu0 0.0
    %362 = vmatpush1.msra.mxu0 0.0
    %363 = vmatprep.subr.mxu0 0.0
    %364 = vmatpush1.msra.mxu0 0.0
    %365 = vmatprep.subr.mxu0 0.0
    %366 = vmatpush1.msra.mxu0 0.0
    %367 = vmatprep.subr.mxu0 0.0
    %368 = vmatpush1.msra.mxu0 0.0
    %369 = vmatprep.subr.mxu0 0.0
    %370 = vmatpush1.msra.mxu0 0.0
    %371 = vmatprep.subr.mxu0 0.0
    %372 = vmatpush1.msra.mxu0 0.0
    %373 = vmatprep.subr.mxu0 0.0
    %374 = vmatpush1.msra.mxu0 0.0
    %375 = vmatprep.subr.mxu0 0.0
    %376 = vmatpush1.msra.mxu0 0.0
    %377 = vmatprep.subr.mxu0 0.0
    %378 = vmatpush1.msra.mxu0 0.0
    %379 = vmatprep.subr.mxu0 0.0
    %380 = vmatpush1.msra.mxu0 0.0
    %381 = vmatprep.subr.mxu0 0.0
    %382 = vmatpush1.msra.mxu0 0.0
    %383 = vmatprep.mubr.f32.mxu0 0.0
    %384 = vmatmul.mubr.f32.gmra.mrb[0].mxu0 %v314
    %v385 = vpop.f32.mrb[0].mxu0
    %v386 = vadd.f32 0.0, %v385
    %v387 = vpop.f32.mrb[0].mxu0
    %388 = vmatprep.mubr.f32.mxu0 0.0
    %389 = vmatmul.mubr.f32.gmra.mrb[0].mxu0 %v317
    %v390 = vpop.f32.mrb[0].mxu0
    %v391 = vadd.f32 0.0, %v390
    %v392 = vpop.f32.mrb[0].mxu0
    %393 = vdwg.mxu0
    %v394 = vmul.f32 %v386, %v62
    %v395 = vmul.f32 %v391, %v63
    %v396 = vadd.f32 %v311, %v394
    %v397 = vadd.f32 %v312, %v395
    %v398 = vmul.f32 %v309, %v309
    %v399 = vmul.f32 %v310, %v310
    %400 = vmatprep.subr.mxu0 0.0
    %401 = vmatpush1.msra.mxu0 %v80
    %402 = vmatprep.subr.mxu0 0.0
    %403 = vmatpush1.msra.mxu0 %v81
    %404 = vmatprep.subr.mxu0 0.0
    %405 = vmatpush1.msra.mxu0 %v82
    %406 = vmatprep.subr.mxu0 0.0
    %407 = vmatpush1.msra.mxu0 %v83
    %408 = vmatprep.subr.mxu0 0.0
    %409 = vmatpush1.msra.mxu0 %v84
    %410 = vmatprep.subr.mxu0 0.0
    %411 = vmatpush1.msra.mxu0 %v85
    %412 = vmatprep.subr.mxu0 0.0
    %413 = vmatpush1.msra.mxu0 %v86
    %414 = vmatprep.subr.mxu0 0.0
    %415 = vmatpush1.msra.mxu0 %v87
    %416 = vmatprep.subr.mxu0 0.0
    %417 = vmatpush1.msra.mxu0 %v88
    %418 = vmatprep.subr.mxu0 0.0
    %419 = vmatpush1.msra.mxu0 %v89
    %420 = vmatprep.subr.mxu0 0.0
    %421 = vmatpush1.msra.mxu0 %v90
    %422 = vmatprep.subr.mxu0 0.0
    %423 = vmatpush1.msra.mxu0 %v91
    %424 = vmatprep.subr.mxu0 0.0
    %425 = vmatpush1.msra.mxu0 %v92
    %426 = vmatprep.subr.mxu0 0.0
    %427 = vmatpush1.msra.mxu0 %v93
    %428 = vmatprep.subr.mxu0 0.0
    %429 = vmatpush1.msra.mxu0 %v94
    %430 = vmatprep.subr.mxu0 0.0
    %431 = vmatpush1.msra.mxu0 %v95
    %432 = vmatprep.subr.mxu0 0.0
    %433 = vmatpush1.msra.mxu0 0.0
    %434 = vmatprep.subr.mxu0 0.0
    %435 = vmatpush1.msra.mxu0 0.0
    %436 = vmatprep.subr.mxu0 0.0
    %437 = vmatpush1.msra.mxu0 0.0
    %438 = vmatprep.subr.mxu0 0.0
    %439 = vmatpush1.msra.mxu0 0.0
    %440 = vmatprep.subr.mxu0 0.0
    %441 = vmatpush1.msra.mxu0 0.0
    %442 = vmatprep.subr.mxu0 0.0
    %443 = vmatpush1.msra.mxu0 0.0
    %444 = vmatprep.subr.mxu0 0.0
    %445 = vmatpush1.msra.mxu0 0.0
    %446 = vmatprep.subr.mxu0 0.0
    %447 = vmatpush1.msra.mxu0 0.0
    %448 = vmatprep.subr.mxu0 0.0
    %449 = vmatpush1.msra.mxu0 0.0
    %450 = vmatprep.subr.mxu0 0.0
    %451 = vmatpush1.msra.mxu0 0.0
    %452 = vmatprep.subr.mxu0 0.0
    %453 = vmatpush1.msra.mxu0 0.0
    %454 = vmatprep.subr.mxu0 0.0
    %455 = vmatpush1.msra.mxu0 0.0
    %456 = vmatprep.subr.mxu0 0.0
    %457 = vmatpush1.msra.mxu0 0.0
    %458 = vmatprep.subr.mxu0 0.0
    %459 = vmatpush1.msra.mxu0 0.0
    %460 = vmatprep.subr.mxu0 0.0
    %461 = vmatpush1.msra.mxu0 0.0
    %462 = vmatprep.subr.mxu0 0.0
    %463 = vmatpush1.msra.mxu0 0.0
    %464 = vmatprep.mubr.f32.mxu0 0.0
    %465 = vmatmul.mubr.f32.gmra.mrb[0].mxu0 %v398
    %v466 = vpop.f32.mrb[0].mxu0
    %v467 = vadd.f32 0.0, %v466
    %v468 = vpop.f32.mrb[0].mxu0
    %469 = vmatprep.mubr.f32.mxu0 0.0
    %470 = vmatmul.mubr.f32.gmra.mrb[0].mxu0 %v399
    %v471 = vpop.f32.mrb[0].mxu0
    %v472 = vadd.f32 0.0, %v471
    %v473 = vpop.f32.mrb[0].mxu0
    %474 = vdwg.mxu0
    %v475 = vmax.f32 %v467, 1e-24
    %v476 = vmax.f32 %v472, 1e-24
    %v477 = vrsqrt.pop %v475
    %v478 = vrsqrt.pop %v476
    %v479 = vmul.f32 %v309, %v477
    %v480 = vmul.f32 %v310, %v478
    %v481 = vmul.f32 %v479, 4.0
    %v482 = vmul.f32 %v480, 4.0
    %v483 = vmul.f32 %v396, %v396
    %v484 = vmul.f32 %v397, %v397
    %v485 = vsel %vm103, %v483, 0.0
    %486 = vadd.xlane.f32.xlu0 %v485
    %v487 = vpop.xlane.xlu0 %486
    %v488 = vsel %vm103, %v484, 0.0
    %489 = vadd.xlane.f32.xlu0 %v488
    %v490 = vpop.xlane.xlu0 %489
    %v491 = vmax.f32 %v487, 1e-24
    %v492 = vmax.f32 %v490, 1e-24
    %v493 = vrsqrt.pop %v491
    %v494 = vrsqrt.pop %v492
    %v495 = vmul.f32 %v396, %v493
    %v496 = vmul.f32 %v397, %v494
    %v497 = vmul.f32 %v495, 4.0
    %v498 = vmul.f32 %v496, 4.0
    %v499 = vld [vmem:[%s8] sm:$0x3]
    %v500 = vmul.f32 %v499, %v499
    %vm501 = vcmask 253952
    %v502 = vsel %vm501, %v500, 0.0
    %503 = vadd.xlane.f32.xlu0 %v502
    %v504 = vpop.xlane.xlu0 %503
    %v505 = vmax.f32 %v504, 1e-24
    %v506 = vrsqrt.pop %v505
    %v507 = vmul.f32 %v499, %v506
    %v508 = vmul.f32 %v507, 4.0
    %v510 = vrot.slane %v497, 7
    %vm512 = vcmask 1040384
    %v513 = vsel %vm512, %v508, %v510
    %v515 = vrot.slane %v499, 1
    %v517 = vrot.slane %v222, 7
    %518 = vrot.lane.b32.xlu0 %v517, 96
    %v519 = vpop.permute.xlu0 %518
    %v521 = vsel %vm512, %v515, %v519
    %v523 = vsel %vm103, %v481, 0
    %v526 = vsel %vm103, %v513, 0
    %v528 = vsel %vm103, %v510, 0
    %530 = vmatprep.subr.mxu0 0.0
    %531 = vmatpush1.xpose.msra.mxu0 %v526
    %532 = vmatprep.subr.mxu0 0.0
    %533 = vmatpush1.xpose.msra.mxu0 %v528
    %534 = vmatprep.subr.mxu0 0.0
    %535 = vmatpush1.xpose.msra.mxu0 0.0
    %536 = vmatprep.subr.mxu0 0.0
    %537 = vmatpush1.xpose.msra.mxu0 0.0
    %538 = vmatprep.subr.mxu0 0.0
    %539 = vmatpush1.xpose.msra.mxu0 0.0
    %540 = vmatprep.subr.mxu0 0.0
    %541 = vmatpush1.xpose.msra.mxu0 0.0
    %542 = vmatprep.subr.mxu0 0.0
    %543 = vmatpush1.xpose.msra.mxu0 0.0
    %544 = vmatprep.subr.mxu0 0.0
    %545 = vmatpush1.xpose.msra.mxu0 0.0
    %546 = vmatprep.subr.mxu0 0.0
    %547 = vmatpush1.xpose.msra.mxu0 0.0
    %548 = vmatprep.subr.mxu0 0.0
    %549 = vmatpush1.xpose.msra.mxu0 0.0
    %550 = vmatprep.subr.mxu0 0.0
    %551 = vmatpush1.xpose.msra.mxu0 0.0
    %552 = vmatprep.subr.mxu0 0.0
    %553 = vmatpush1.xpose.msra.mxu0 0.0
    %554 = vmatprep.subr.mxu0 0.0
    %555 = vmatpush1.xpose.msra.mxu0 0.0
    %556 = vmatprep.subr.mxu0 0.0
    %557 = vmatpush1.xpose.msra.mxu0 0.0
    %558 = vmatprep.subr.mxu0 0.0
    %559 = vmatpush1.xpose.msra.mxu0 0.0
    %560 = vmatprep.subr.mxu0 0.0
    %561 = vmatpush1.xpose.msra.mxu0 0.0
    %562 = vmatprep.subr.mxu0 0.0
    %563 = vmatpush1.xpose.msra.mxu0 0.0
    %564 = vmatprep.subr.mxu0 0.0
    %565 = vmatpush1.xpose.msra.mxu0 0.0
    %566 = vmatprep.subr.mxu0 0.0
    %567 = vmatpush1.xpose.msra.mxu0 0.0
    %568 = vmatprep.subr.mxu0 0.0
    %569 = vmatpush1.xpose.msra.mxu0 0.0
    %570 = vmatprep.subr.mxu0 0.0
    %571 = vmatpush1.xpose.msra.mxu0 0.0
    %572 = vmatprep.subr.mxu0 0.0
    %573 = vmatpush1.xpose.msra.mxu0 0.0
    %574 = vmatprep.subr.mxu0 0.0
    %575 = vmatpush1.xpose.msra.mxu0 0.0
    %576 = vmatprep.subr.mxu0 0.0
    %577 = vmatpush1.xpose.msra.mxu0 0.0
    %578 = vmatprep.subr.mxu0 0.0
    %579 = vmatpush1.xpose.msra.mxu0 0.0
    %580 = vmatprep.subr.mxu0 0.0
    %581 = vmatpush1.xpose.msra.mxu0 0.0
    %582 = vmatprep.subr.mxu0 0.0
    %583 = vmatpush1.xpose.msra.mxu0 0.0
    %584 = vmatprep.subr.mxu0 0.0
    %585 = vmatpush1.xpose.msra.mxu0 0.0
    %586 = vmatprep.subr.mxu0 0.0
    %587 = vmatpush1.xpose.msra.mxu0 0.0
    %588 = vmatprep.subr.mxu0 0.0
    %589 = vmatpush1.xpose.msra.mxu0 0.0
    %590 = vmatprep.subr.mxu0 0.0
    %591 = vmatpush1.xpose.msra.mxu0 0.0
    %592 = vmatprep.subr.mxu0 0.0
    %593 = vmatpush1.xpose.msra.mxu0 0.0
    %594 = vmatprep.mubr.f32.mxu0 0.0
    %595 = vmatmul.mubr.f32.gmra.mrb[0].mxu0 %v523
    %v596 = vpop.f32.mrb[0].mxu0
    %v597 = vadd.f32 %v56, %v596
    %v598 = vpop.f32.mrb[0].mxu0
    %599 = vdwg.mxu0
    %v600 = vsel %vm101, -3.4028235e+38, %v597
    %vm601 = vcmask 72704
    %v602 = vsel %vm601, %v600, -inf
    %603 = vmax.xlane.f32.xlu0 %v602
    %v604 = vpop.xlane.xlu0 %603
    %v605 = vsub.f32 %v600, %v604
    %v606 = vmul.f32 %v605, 1.442695
    %v607 = vpow.pop %v606
    %v608 = vsel %vm601, %v607, 0.0
    %609 = vadd.xlane.f32.xlu0 %v608
    %v610 = vpop.xlane.xlu0 %609
    %v611 = vrcp.pop %v610
    %v612 = vmul.f32 %v607, %v611
    %v614 = vsel %vm601, %v612, 0
    %v616 = vsel %vm512, %v519, 0
    %618 = vmatprep.subr.mxu0 0.0
    %619 = vmatpush1.msra.mxu0 %v521
    %620 = vmatprep.subr.mxu0 0.0
    %621 = vmatpush1.msra.mxu0 %v616
    %622 = vmatprep.subr.mxu0 0.0
    %623 = vmatpush1.msra.mxu0 0.0
    %624 = vmatprep.subr.mxu0 0.0
    %625 = vmatpush1.msra.mxu0 0.0
    %626 = vmatprep.subr.mxu0 0.0
    %627 = vmatpush1.msra.mxu0 0.0
    %628 = vmatprep.subr.mxu0 0.0
    %629 = vmatpush1.msra.mxu0 0.0
    %630 = vmatprep.subr.mxu0 0.0
    %631 = vmatpush1.msra.mxu0 0.0
    %632 = vmatprep.subr.mxu0 0.0
    %633 = vmatpush1.msra.mxu0 0.0
    %634 = vmatprep.subr.mxu0 0.0
    %635 = vmatpush1.msra.mxu0 0.0
    %636 = vmatprep.subr.mxu0 0.0
    %637 = vmatpush1.msra.mxu0 0.0
    %638 = vmatprep.subr.mxu0 0.0
    %639 = vmatpush1.msra.mxu0 0.0
    %640 = vmatprep.subr.mxu0 0.0
    %641 = vmatpush1.msra.mxu0 0.0
    %642 = vmatprep.subr.mxu0 0.0
    %643 = vmatpush1.msra.mxu0 0.0
    %644 = vmatprep.subr.mxu0 0.0
    %645 = vmatpush1.msra.mxu0 0.0
    %646 = vmatprep.subr.mxu0 0.0
    %647 = vmatpush1.msra.mxu0 0.0
    %648 = vmatprep.subr.mxu0 0.0
    %649 = vmatpush1.msra.mxu0 0.0
    %650 = vmatprep.subr.mxu0 0.0
    %651 = vmatpush1.msra.mxu0 0.0
    %652 = vmatprep.subr.mxu0 0.0
    %653 = vmatpush1.msra.mxu0 0.0
    %654 = vmatprep.subr.mxu0 0.0
    %655 = vmatpush1.msra.mxu0 0.0
    %656 = vmatprep.subr.mxu0 0.0
    %657 = vmatpush1.msra.mxu0 0.0
    %658 = vmatprep.subr.mxu0 0.0
    %659 = vmatpush1.msra.mxu0 0.0
    %660 = vmatprep.subr.mxu0 0.0
    %661 = vmatpush1.msra.mxu0 0.0
    %662 = vmatprep.subr.mxu0 0.0
    %663 = vmatpush1.msra.mxu0 0.0
    %664 = vmatprep.subr.mxu0 0.0
    %665 = vmatpush1.msra.mxu0 0.0
    %666 = vmatprep.subr.mxu0 0.0
    %667 = vmatpush1.msra.mxu0 0.0
    %668 = vmatprep.subr.mxu0 0.0
    %669 = vmatpush1.msra.mxu0 0.0
    %670 = vmatprep.subr.mxu0 0.0
    %671 = vmatpush1.msra.mxu0 0.0
    %672 = vmatprep.subr.mxu0 0.0
    %673 = vmatpush1.msra.mxu0 0.0
    %674 = vmatprep.subr.mxu0 0.0
    %675 = vmatpush1.msra.mxu0 0.0
    %676 = vmatprep.subr.mxu0 0.0
    %677 = vmatpush1.msra.mxu0 0.0
    %678 = vmatprep.subr.mxu0 0.0
    %679 = vmatpush1.msra.mxu0 0.0
    %680 = vmatprep.subr.mxu0 0.0
    %681 = vmatpush1.msra.mxu0 0.0
    %682 = vmatprep.mubr.f32.mxu0 0.0
    %683 = vmatmul.mubr.f32.gmra.mrb[0].mxu0 %v614
    %v684 = vpop.f32.mrb[0].mxu0
    %v685 = vadd.f32 0.0, %v684
    %v686 = vpop.f32.mrb[0].mxu0
    %687 = vdwg.mxu0
    %688 = vrot.lane.b32.xlu0 %v481, 96
    %v689 = vpop.permute.xlu0 %688
    %v690 = vsel %vm103, %v689, 0
    %692 = vmatprep.subr.mxu0 0.0
    %693 = vmatpush1.xpose.msra.mxu0 %v526
    %694 = vmatprep.subr.mxu0 0.0
    %695 = vmatpush1.xpose.msra.mxu0 %v528
    %696 = vmatprep.subr.mxu0 0.0
    %697 = vmatpush1.xpose.msra.mxu0 0.0
    %698 = vmatprep.subr.mxu0 0.0
    %699 = vmatpush1.xpose.msra.mxu0 0.0
    %700 = vmatprep.subr.mxu0 0.0
    %701 = vmatpush1.xpose.msra.mxu0 0.0
    %702 = vmatprep.subr.mxu0 0.0
    %703 = vmatpush1.xpose.msra.mxu0 0.0
    %704 = vmatprep.subr.mxu0 0.0
    %705 = vmatpush1.xpose.msra.mxu0 0.0
    %706 = vmatprep.subr.mxu0 0.0
    %707 = vmatpush1.xpose.msra.mxu0 0.0
    %708 = vmatprep.subr.mxu0 0.0
    %709 = vmatpush1.xpose.msra.mxu0 0.0
    %710 = vmatprep.subr.mxu0 0.0
    %711 = vmatpush1.xpose.msra.mxu0 0.0
    %712 = vmatprep.subr.mxu0 0.0
    %713 = vmatpush1.xpose.msra.mxu0 0.0
    %714 = vmatprep.subr.mxu0 0.0
    %715 = vmatpush1.xpose.msra.mxu0 0.0
    %716 = vmatprep.subr.mxu0 0.0
    %717 = vmatpush1.xpose.msra.mxu0 0.0
    %718 = vmatprep.subr.mxu0 0.0
    %719 = vmatpush1.xpose.msra.mxu0 0.0
    %720 = vmatprep.subr.mxu0 0.0
    %721 = vmatpush1.xpose.msra.mxu0 0.0
    %722 = vmatprep.subr.mxu0 0.0
    %723 = vmatpush1.xpose.msra.mxu0 0.0
    %724 = vmatprep.subr.mxu0 0.0
    %725 = vmatpush1.xpose.msra.mxu0 0.0
    %726 = vmatprep.subr.mxu0 0.0
    %727 = vmatpush1.xpose.msra.mxu0 0.0
    %728 = vmatprep.subr.mxu0 0.0
    %729 = vmatpush1.xpose.msra.mxu0 0.0
    %730 = vmatprep.subr.mxu0 0.0
    %731 = vmatpush1.xpose.msra.mxu0 0.0
    %732 = vmatprep.subr.mxu0 0.0
    %733 = vmatpush1.xpose.msra.mxu0 0.0
    %734 = vmatprep.subr.mxu0 0.0
    %735 = vmatpush1.xpose.msra.mxu0 0.0
    %736 = vmatprep.subr.mxu0 0.0
    %737 = vmatpush1.xpose.msra.mxu0 0.0
    %738 = vmatprep.subr.mxu0 0.0
    %739 = vmatpush1.xpose.msra.mxu0 0.0
    %740 = vmatprep.subr.mxu0 0.0
    %741 = vmatpush1.xpose.msra.mxu0 0.0
    %742 = vmatprep.subr.mxu0 0.0
    %743 = vmatpush1.xpose.msra.mxu0 0.0
    %744 = vmatprep.subr.mxu0 0.0
    %745 = vmatpush1.xpose.msra.mxu0 0.0
    %746 = vmatprep.subr.mxu0 0.0
    %747 = vmatpush1.xpose.msra.mxu0 0.0
    %748 = vmatprep.subr.mxu0 0.0
    %749 = vmatpush1.xpose.msra.mxu0 0.0
    %750 = vmatprep.subr.mxu0 0.0
    %751 = vmatpush1.xpose.msra.mxu0 0.0
    %752 = vmatprep.subr.mxu0 0.0
    %753 = vmatpush1.xpose.msra.mxu0 0.0
    %754 = vmatprep.subr.mxu0 0.0
    %755 = vmatpush1.xpose.msra.mxu0 0.0
    %756 = vmatprep.mubr.f32.mxu0 0.0
    %757 = vmatmul.mubr.f32.gmra.mrb[0].mxu0 %v690
    %v758 = vpop.f32.mrb[0].mxu0
    %v759 = vadd.f32 %v57, %v758
    %v760 = vpop.f32.mrb[0].mxu0
    %761 = vdwg.mxu0
    %v762 = vsel %vm101, -3.4028235e+38, %v759
    %v763 = vsel %vm601, %v762, -inf
    %764 = vmax.xlane.f32.xlu0 %v763
    %v765 = vpop.xlane.xlu0 %764
    %v766 = vsub.f32 %v762, %v765
    %v767 = vmul.f32 %v766, 1.442695
    %v768 = vpow.pop %v767
    %v769 = vsel %vm601, %v768, 0.0
    %770 = vadd.xlane.f32.xlu0 %v769
    %v771 = vpop.xlane.xlu0 %770
    %v772 = vrcp.pop %v771
    %v773 = vmul.f32 %v768, %v772
    %v775 = vsel %vm601, %v773, 0
    %777 = vmatprep.subr.mxu0 0.0
    %778 = vmatpush1.msra.mxu0 %v521
    %779 = vmatprep.subr.mxu0 0.0
    %780 = vmatpush1.msra.mxu0 %v616
    %781 = vmatprep.subr.mxu0 0.0
    %782 = vmatpush1.msra.mxu0 0.0
    %783 = vmatprep.subr.mxu0 0.0
    %784 = vmatpush1.msra.mxu0 0.0
    %785 = vmatprep.subr.mxu0 0.0
    %786 = vmatpush1.msra.mxu0 0.0
    %787 = vmatprep.subr.mxu0 0.0
    %788 = vmatpush1.msra.mxu0 0.0
    %789 = vmatprep.subr.mxu0 0.0
    %790 = vmatpush1.msra.mxu0 0.0
    %791 = vmatprep.subr.mxu0 0.0
    %792 = vmatpush1.msra.mxu0 0.0
    %793 = vmatprep.subr.mxu0 0.0
    %794 = vmatpush1.msra.mxu0 0.0
    %795 = vmatprep.subr.mxu0 0.0
    %796 = vmatpush1.msra.mxu0 0.0
    %797 = vmatprep.subr.mxu0 0.0
    %798 = vmatpush1.msra.mxu0 0.0
    %799 = vmatprep.subr.mxu0 0.0
    %800 = vmatpush1.msra.mxu0 0.0
    %801 = vmatprep.subr.mxu0 0.0
    %802 = vmatpush1.msra.mxu0 0.0
    %803 = vmatprep.subr.mxu0 0.0
    %804 = vmatpush1.msra.mxu0 0.0
    %805 = vmatprep.subr.mxu0 0.0
    %806 = vmatpush1.msra.mxu0 0.0
    %807 = vmatprep.subr.mxu0 0.0
    %808 = vmatpush1.msra.mxu0 0.0
    %809 = vmatprep.subr.mxu0 0.0
    %810 = vmatpush1.msra.mxu0 0.0
    %811 = vmatprep.subr.mxu0 0.0
    %812 = vmatpush1.msra.mxu0 0.0
    %813 = vmatprep.subr.mxu0 0.0
    %814 = vmatpush1.msra.mxu0 0.0
    %815 = vmatprep.subr.mxu0 0.0
    %816 = vmatpush1.msra.mxu0 0.0
    %817 = vmatprep.subr.mxu0 0.0
    %818 = vmatpush1.msra.mxu0 0.0
    %819 = vmatprep.subr.mxu0 0.0
    %820 = vmatpush1.msra.mxu0 0.0
    %821 = vmatprep.subr.mxu0 0.0
    %822 = vmatpush1.msra.mxu0 0.0
    %823 = vmatprep.subr.mxu0 0.0
    %824 = vmatpush1.msra.mxu0 0.0
    %825 = vmatprep.subr.mxu0 0.0
    %826 = vmatpush1.msra.mxu0 0.0
    %827 = vmatprep.subr.mxu0 0.0
    %828 = vmatpush1.msra.mxu0 0.0
    %829 = vmatprep.subr.mxu0 0.0
    %830 = vmatpush1.msra.mxu0 0.0
    %831 = vmatprep.subr.mxu0 0.0
    %832 = vmatpush1.msra.mxu0 0.0
    %833 = vmatprep.subr.mxu0 0.0
    %834 = vmatpush1.msra.mxu0 0.0
    %835 = vmatprep.subr.mxu0 0.0
    %836 = vmatpush1.msra.mxu0 0.0
    %837 = vmatprep.subr.mxu0 0.0
    %838 = vmatpush1.msra.mxu0 0.0
    %839 = vmatprep.subr.mxu0 0.0
    %840 = vmatpush1.msra.mxu0 0.0
    %841 = vmatprep.mubr.f32.mxu0 0.0
    %842 = vmatmul.mubr.f32.gmra.mrb[0].mxu0 %v775
    %v843 = vpop.f32.mrb[0].mxu0
    %v844 = vadd.f32 0.0, %v843
    %v845 = vpop.f32.mrb[0].mxu0
    %846 = vdwg.mxu0
    %847 = vrot.lane.b32.xlu0 %v481, 64
    %v848 = vpop.permute.xlu0 %847
    %v849 = vsel %vm103, %v848, 0
    %851 = vmatprep.subr.mxu0 0.0
    %852 = vmatpush1.xpose.msra.mxu0 %v526
    %853 = vmatprep.subr.mxu0 0.0
    %854 = vmatpush1.xpose.msra.mxu0 %v528
    %855 = vmatprep.subr.mxu0 0.0
    %856 = vmatpush1.xpose.msra.mxu0 0.0
    %857 = vmatprep.subr.mxu0 0.0
    %858 = vmatpush1.xpose.msra.mxu0 0.0
    %859 = vmatprep.subr.mxu0 0.0
    %860 = vmatpush1.xpose.msra.mxu0 0.0
    %861 = vmatprep.subr.mxu0 0.0
    %862 = vmatpush1.xpose.msra.mxu0 0.0
    %863 = vmatprep.subr.mxu0 0.0
    %864 = vmatpush1.xpose.msra.mxu0 0.0
    %865 = vmatprep.subr.mxu0 0.0
    %866 = vmatpush1.xpose.msra.mxu0 0.0
    %867 = vmatprep.subr.mxu0 0.0
    %868 = vmatpush1.xpose.msra.mxu0 0.0
    %869 = vmatprep.subr.mxu0 0.0
    %870 = vmatpush1.xpose.msra.mxu0 0.0
    %871 = vmatprep.subr.mxu0 0.0
    %872 = vmatpush1.xpose.msra.mxu0 0.0
    %873 = vmatprep.subr.mxu0 0.0
    %874 = vmatpush1.xpose.msra.mxu0 0.0
    %875 = vmatprep.subr.mxu0 0.0
    %876 = vmatpush1.xpose.msra.mxu0 0.0
    %877 = vmatprep.subr.mxu0 0.0
    %878 = vmatpush1.xpose.msra.mxu0 0.0
    %879 = vmatprep.subr.mxu0 0.0
    %880 = vmatpush1.xpose.msra.mxu0 0.0
    %881 = vmatprep.subr.mxu0 0.0
    %882 = vmatpush1.xpose.msra.mxu0 0.0
    %883 = vmatprep.subr.mxu0 0.0
    %884 = vmatpush1.xpose.msra.mxu0 0.0
    %885 = vmatprep.subr.mxu0 0.0
    %886 = vmatpush1.xpose.msra.mxu0 0.0
    %887 = vmatprep.subr.mxu0 0.0
    %888 = vmatpush1.xpose.msra.mxu0 0.0
    %889 = vmatprep.subr.mxu0 0.0
    %890 = vmatpush1.xpose.msra.mxu0 0.0
    %891 = vmatprep.subr.mxu0 0.0
    %892 = vmatpush1.xpose.msra.mxu0 0.0
    %893 = vmatprep.subr.mxu0 0.0
    %894 = vmatpush1.xpose.msra.mxu0 0.0
    %895 = vmatprep.subr.mxu0 0.0
    %896 = vmatpush1.xpose.msra.mxu0 0.0
    %897 = vmatprep.subr.mxu0 0.0
    %898 = vmatpush1.xpose.msra.mxu0 0.0
    %899 = vmatprep.subr.mxu0 0.0
    %900 = vmatpush1.xpose.msra.mxu0 0.0
    %901 = vmatprep.subr.mxu0 0.0
    %902 = vmatpush1.xpose.msra.mxu0 0.0
    %903 = vmatprep.subr.mxu0 0.0
    %904 = vmatpush1.xpose.msra.mxu0 0.0
    %905 = vmatprep.subr.mxu0 0.0
    %906 = vmatpush1.xpose.msra.mxu0 0.0
    %907 = vmatprep.subr.mxu0 0.0
    %908 = vmatpush1.xpose.msra.mxu0 0.0
    %909 = vmatprep.subr.mxu0 0.0
    %910 = vmatpush1.xpose.msra.mxu0 0.0
    %911 = vmatprep.subr.mxu0 0.0
    %912 = vmatpush1.xpose.msra.mxu0 0.0
    %913 = vmatprep.subr.mxu0 0.0
    %914 = vmatpush1.xpose.msra.mxu0 0.0
    %915 = vmatprep.mubr.f32.mxu0 0.0
    %916 = vmatmul.mubr.f32.gmra.mrb[0].mxu0 %v849
    %v917 = vpop.f32.mrb[0].mxu0
    %v918 = vadd.f32 %v58, %v917
    %v919 = vpop.f32.mrb[0].mxu0
    %920 = vdwg.mxu0
    %v921 = vsel %vm101, -3.4028235e+38, %v918
    %v922 = vsel %vm601, %v921, -inf
    %923 = vmax.xlane.f32.xlu0 %v922
    %v924 = vpop.xlane.xlu0 %923
    %v925 = vsub.f32 %v921, %v924
    %v926 = vmul.f32 %v925, 1.442695
    %v927 = vpow.pop %v926
    %v928 = vsel %vm601, %v927, 0.0
    %929 = vadd.xlane.f32.xlu0 %v928
    %v930 = vpop.xlane.xlu0 %929
    %v931 = vrcp.pop %v930
    %v932 = vmul.f32 %v927, %v931
    %v934 = vsel %vm601, %v932, 0
    %936 = vmatprep.subr.mxu0 0.0
    %937 = vmatpush1.msra.mxu0 %v521
    %938 = vmatprep.subr.mxu0 0.0
    %939 = vmatpush1.msra.mxu0 %v616
    %940 = vmatprep.subr.mxu0 0.0
    %941 = vmatpush1.msra.mxu0 0.0
    %942 = vmatprep.subr.mxu0 0.0
    %943 = vmatpush1.msra.mxu0 0.0
    %944 = vmatprep.subr.mxu0 0.0
    %945 = vmatpush1.msra.mxu0 0.0
    %946 = vmatprep.subr.mxu0 0.0
    %947 = vmatpush1.msra.mxu0 0.0
    %948 = vmatprep.subr.mxu0 0.0
    %949 = vmatpush1.msra.mxu0 0.0
    %950 = vmatprep.subr.mxu0 0.0
    %951 = vmatpush1.msra.mxu0 0.0
    %952 = vmatprep.subr.mxu0 0.0
    %953 = vmatpush1.msra.mxu0 0.0
    %954 = vmatprep.subr.mxu0 0.0
    %955 = vmatpush1.msra.mxu0 0.0
    %956 = vmatprep.subr.mxu0 0.0
    %957 = vmatpush1.msra.mxu0 0.0
    %958 = vmatprep.subr.mxu0 0.0
    %959 = vmatpush1.msra.mxu0 0.0
    %960 = vmatprep.subr.mxu0 0.0
    %961 = vmatpush1.msra.mxu0 0.0
    %962 = vmatprep.subr.mxu0 0.0
    %963 = vmatpush1.msra.mxu0 0.0
    %964 = vmatprep.subr.mxu0 0.0
    %965 = vmatpush1.msra.mxu0 0.0
    %966 = vmatprep.subr.mxu0 0.0
    %967 = vmatpush1.msra.mxu0 0.0
    %968 = vmatprep.subr.mxu0 0.0
    %969 = vmatpush1.msra.mxu0 0.0
    %970 = vmatprep.subr.mxu0 0.0
    %971 = vmatpush1.msra.mxu0 0.0
    %972 = vmatprep.subr.mxu0 0.0
    %973 = vmatpush1.msra.mxu0 0.0
    %974 = vmatprep.subr.mxu0 0.0
    %975 = vmatpush1.msra.mxu0 0.0
    %976 = vmatprep.subr.mxu0 0.0
    %977 = vmatpush1.msra.mxu0 0.0
    %978 = vmatprep.subr.mxu0 0.0
    %979 = vmatpush1.msra.mxu0 0.0
    %980 = vmatprep.subr.mxu0 0.0
    %981 = vmatpush1.msra.mxu0 0.0
    %982 = vmatprep.subr.mxu0 0.0
    %983 = vmatpush1.msra.mxu0 0.0
    %984 = vmatprep.subr.mxu0 0.0
    %985 = vmatpush1.msra.mxu0 0.0
    %986 = vmatprep.subr.mxu0 0.0
    %987 = vmatpush1.msra.mxu0 0.0
    %988 = vmatprep.subr.mxu0 0.0
    %989 = vmatpush1.msra.mxu0 0.0
    %990 = vmatprep.subr.mxu0 0.0
    %991 = vmatpush1.msra.mxu0 0.0
    %992 = vmatprep.subr.mxu0 0.0
    %993 = vmatpush1.msra.mxu0 0.0
    %994 = vmatprep.subr.mxu0 0.0
    %995 = vmatpush1.msra.mxu0 0.0
    %996 = vmatprep.subr.mxu0 0.0
    %997 = vmatpush1.msra.mxu0 0.0
    %998 = vmatprep.subr.mxu0 0.0
    %999 = vmatpush1.msra.mxu0 0.0
    %1000 = vmatprep.mubr.f32.mxu0 0.0
    %1001 = vmatmul.mubr.f32.gmra.mrb[0].mxu0 %v934
    %v1002 = vpop.f32.mrb[0].mxu0
    %v1003 = vadd.f32 0.0, %v1002
    %v1004 = vpop.f32.mrb[0].mxu0
    %1005 = vdwg.mxu0
    %1006 = vrot.lane.b32.xlu0 %v481, 32
    %v1007 = vpop.permute.xlu0 %1006
    %v1008 = vsel %vm103, %v1007, 0
    %1010 = vmatprep.subr.mxu0 0.0
    %1011 = vmatpush1.xpose.msra.mxu0 %v526
    %1012 = vmatprep.subr.mxu0 0.0
    %1013 = vmatpush1.xpose.msra.mxu0 %v528
    %1014 = vmatprep.subr.mxu0 0.0
    %1015 = vmatpush1.xpose.msra.mxu0 0.0
    %1016 = vmatprep.subr.mxu0 0.0
    %1017 = vmatpush1.xpose.msra.mxu0 0.0
    %1018 = vmatprep.subr.mxu0 0.0
    %1019 = vmatpush1.xpose.msra.mxu0 0.0
    %1020 = vmatprep.subr.mxu0 0.0
    %1021 = vmatpush1.xpose.msra.mxu0 0.0
    %1022 = vmatprep.subr.mxu0 0.0
    %1023 = vmatpush1.xpose.msra.mxu0 0.0
    %1024 = vmatprep.subr.mxu0 0.0
    %1025 = vmatpush1.xpose.msra.mxu0 0.0
    %1026 = vmatprep.subr.mxu0 0.0
    %1027 = vmatpush1.xpose.msra.mxu0 0.0
    %1028 = vmatprep.subr.mxu0 0.0
    %1029 = vmatpush1.xpose.msra.mxu0 0.0
    %1030 = vmatprep.subr.mxu0 0.0
    %1031 = vmatpush1.xpose.msra.mxu0 0.0
    %1032 = vmatprep.subr.mxu0 0.0
    %1033 = vmatpush1.xpose.msra.mxu0 0.0
    %1034 = vmatprep.subr.mxu0 0.0
    %1035 = vmatpush1.xpose.msra.mxu0 0.0
    %1036 = vmatprep.subr.mxu0 0.0
    %1037 = vmatpush1.xpose.msra.mxu0 0.0
    %1038 = vmatprep.subr.mxu0 0.0
    %1039 = vmatpush1.xpose.msra.mxu0 0.0
    %1040 = vmatprep.subr.mxu0 0.0
    %1041 = vmatpush1.xpose.msra.mxu0 0.0
    %1042 = vmatprep.subr.mxu0 0.0
    %1043 = vmatpush1.xpose.msra.mxu0 0.0
    %1044 = vmatprep.subr.mxu0 0.0
    %1045 = vmatpush1.xpose.msra.mxu0 0.0
    %1046 = vmatprep.subr.mxu0 0.0
    %1047 = vmatpush1.xpose.msra.mxu0 0.0
    %1048 = vmatprep.subr.mxu0 0.0
    %1049 = vmatpush1.xpose.msra.mxu0 0.0
    %1050 = vmatprep.subr.mxu0 0.0
    %1051 = vmatpush1.xpose.msra.mxu0 0.0
    %1052 = vmatprep.subr.mxu0 0.0
    %1053 = vmatpush1.xpose.msra.mxu0 0.0
    %1054 = vmatprep.subr.mxu0 0.0
    %1055 = vmatpush1.xpose.msra.mxu0 0.0
    %1056 = vmatprep.subr.mxu0 0.0
    %1057 = vmatpush1.xpose.msra.mxu0 0.0
    %1058 = vmatprep.subr.mxu0 0.0
    %1059 = vmatpush1.xpose.msra.mxu0 0.0
    %1060 = vmatprep.subr.mxu0 0.0
    %1061 = vmatpush1.xpose.msra.mxu0 0.0
    %1062 = vmatprep.subr.mxu0 0.0
    %1063 = vmatpush1.xpose.msra.mxu0 0.0
    %1064 = vmatprep.subr.mxu0 0.0
    %1065 = vmatpush1.xpose.msra.mxu0 0.0
    %1066 = vmatprep.subr.mxu0 0.0
    %1067 = vmatpush1.xpose.msra.mxu0 0.0
    %1068 = vmatprep.subr.mxu0 0.0
    %1069 = vmatpush1.xpose.msra.mxu0 0.0
    %1070 = vmatprep.subr.mxu0 0.0
    %1071 = vmatpush1.xpose.msra.mxu0 0.0
    %1072 = vmatprep.subr.mxu0 0.0
    %1073 = vmatpush1.xpose.msra.mxu0 0.0
    %1074 = vmatprep.mubr.f32.mxu0 0.0
    %1075 = vmatmul.mubr.f32.gmra.mrb[0].mxu0 %v1008
    %v1076 = vpop.f32.mrb[0].mxu0
    %v1077 = vadd.f32 %v59, %v1076
    %v1078 = vpop.f32.mrb[0].mxu0
    %1079 = vdwg.mxu0
    %v1080 = vsel %vm101, -3.4028235e+38, %v1077
    %v1081 = vsel %vm601, %v1080, -inf
    %1082 = vmax.xlane.f32.xlu0 %v1081
    %v1083 = vpop.xlane.xlu0 %1082
    %v1084 = vsub.f32 %v1080, %v1083
    %v1085 = vmul.f32 %v1084, 1.442695
    %v1086 = vpow.pop %v1085
    %v1087 = vsel %vm601, %v1086, 0.0
    %1088 = vadd.xlane.f32.xlu0 %v1087
    %v1089 = vpop.xlane.xlu0 %1088
    %v1090 = vrcp.pop %v1089
    %v1091 = vmul.f32 %v1086, %v1090
    %v1093 = vsel %vm601, %v1091, 0
    %1095 = vmatprep.subr.mxu0 0.0
    %1096 = vmatpush1.msra.mxu0 %v521
    %1097 = vmatprep.subr.mxu0 0.0
    %1098 = vmatpush1.msra.mxu0 %v616
    %1099 = vmatprep.subr.mxu0 0.0
    %1100 = vmatpush1.msra.mxu0 0.0
    %1101 = vmatprep.subr.mxu0 0.0
    %1102 = vmatpush1.msra.mxu0 0.0
    %1103 = vmatprep.subr.mxu0 0.0
    %1104 = vmatpush1.msra.mxu0 0.0
    %1105 = vmatprep.subr.mxu0 0.0
    %1106 = vmatpush1.msra.mxu0 0.0
    %1107 = vmatprep.subr.mxu0 0.0
    %1108 = vmatpush1.msra.mxu0 0.0
    %1109 = vmatprep.subr.mxu0 0.0
    %1110 = vmatpush1.msra.mxu0 0.0
    %1111 = vmatprep.subr.mxu0 0.0
    %1112 = vmatpush1.msra.mxu0 0.0
    %1113 = vmatprep.subr.mxu0 0.0
    %1114 = vmatpush1.msra.mxu0 0.0
    %1115 = vmatprep.subr.mxu0 0.0
    %1116 = vmatpush1.msra.mxu0 0.0
    %1117 = vmatprep.subr.mxu0 0.0
    %1118 = vmatpush1.msra.mxu0 0.0
    %1119 = vmatprep.subr.mxu0 0.0
    %1120 = vmatpush1.msra.mxu0 0.0
    %1121 = vmatprep.subr.mxu0 0.0
    %1122 = vmatpush1.msra.mxu0 0.0
    %1123 = vmatprep.subr.mxu0 0.0
    %1124 = vmatpush1.msra.mxu0 0.0
    %1125 = vmatprep.subr.mxu0 0.0
    %1126 = vmatpush1.msra.mxu0 0.0
    %1127 = vmatprep.subr.mxu0 0.0
    %1128 = vmatpush1.msra.mxu0 0.0
    %1129 = vmatprep.subr.mxu0 0.0
    %1130 = vmatpush1.msra.mxu0 0.0
    %1131 = vmatprep.subr.mxu0 0.0
    %1132 = vmatpush1.msra.mxu0 0.0
    %1133 = vmatprep.subr.mxu0 0.0
    %1134 = vmatpush1.msra.mxu0 0.0
    %1135 = vmatprep.subr.mxu0 0.0
    %1136 = vmatpush1.msra.mxu0 0.0
    %1137 = vmatprep.subr.mxu0 0.0
    %1138 = vmatpush1.msra.mxu0 0.0
    %1139 = vmatprep.subr.mxu0 0.0
    %1140 = vmatpush1.msra.mxu0 0.0
    %1141 = vmatprep.subr.mxu0 0.0
    %1142 = vmatpush1.msra.mxu0 0.0
    %1143 = vmatprep.subr.mxu0 0.0
    %1144 = vmatpush1.msra.mxu0 0.0
    %1145 = vmatprep.subr.mxu0 0.0
    %1146 = vmatpush1.msra.mxu0 0.0
    %1147 = vmatprep.subr.mxu0 0.0
    %1148 = vmatpush1.msra.mxu0 0.0
    %1149 = vmatprep.subr.mxu0 0.0
    %1150 = vmatpush1.msra.mxu0 0.0
    %1151 = vmatprep.subr.mxu0 0.0
    %1152 = vmatpush1.msra.mxu0 0.0
    %1153 = vmatprep.subr.mxu0 0.0
    %1154 = vmatpush1.msra.mxu0 0.0
    %1155 = vmatprep.subr.mxu0 0.0
    %1156 = vmatpush1.msra.mxu0 0.0
    %1157 = vmatprep.subr.mxu0 0.0
    %1158 = vmatpush1.msra.mxu0 0.0
    %1159 = vmatprep.mubr.f32.mxu0 0.0
    %1160 = vmatmul.mubr.f32.gmra.mrb[0].mxu0 %v1093
    %v1161 = vpop.f32.mrb[0].mxu0
    %v1162 = vadd.f32 0.0, %v1161
    %v1163 = vpop.f32.mrb[0].mxu0
    %1164 = vdwg.mxu0
    %1166 = vrot.lane.b32.xlu0 %v844, 32
    %v1167 = vpop.permute.xlu0 %1166
    %1170 = vrot.lane.b32.xlu0 %v1003, 64
    %v1171 = vpop.permute.xlu0 %1170
    %1174 = vrot.lane.b32.xlu0 %v1162, 96
    %v1175 = vpop.permute.xlu0 %1174
    %v1177 = vsel %vm103, %v685, %v1167
    %vm1178 = vcmask 523264
    %v1179 = vsel %vm1178, %v1177, %v1171
    %vm1180 = vcmask 785408
    %v1181 = vsel %vm1180, %v1179, %v1175
    %v1183 = vrot.slane %v498, 7
    %v1185 = vsel %vm512, %v508, %v1183
    %v1186 = vrot.slane %v228, 7
    %1187 = vrot.lane.b32.xlu0 %v1186, 96
    %v1188 = vpop.permute.xlu0 %1187
    %v1190 = vsel %vm512, %v515, %v1188
    %v1192 = vsel %vm103, %v482, 0
    %v1195 = vsel %vm103, %v1185, 0
    %v1197 = vsel %vm103, %v1183, 0
    %1199 = vmatprep.subr.mxu0 0.0
    %1200 = vmatpush1.xpose.msra.mxu0 %v1195
    %1201 = vmatprep.subr.mxu0 0.0
    %1202 = vmatpush1.xpose.msra.mxu0 %v1197
    %1203 = vmatprep.subr.mxu0 0.0
    %1204 = vmatpush1.xpose.msra.mxu0 0.0
    %1205 = vmatprep.subr.mxu0 0.0
    %1206 = vmatpush1.xpose.msra.mxu0 0.0
    %1207 = vmatprep.subr.mxu0 0.0
    %1208 = vmatpush1.xpose.msra.mxu0 0.0
    %1209 = vmatprep.subr.mxu0 0.0
    %1210 = vmatpush1.xpose.msra.mxu0 0.0
    %1211 = vmatprep.subr.mxu0 0.0
    %1212 = vmatpush1.xpose.msra.mxu0 0.0
    %1213 = vmatprep.subr.mxu0 0.0
    %1214 = vmatpush1.xpose.msra.mxu0 0.0
    %1215 = vmatprep.subr.mxu0 0.0
    %1216 = vmatpush1.xpose.msra.mxu0 0.0
    %1217 = vmatprep.subr.mxu0 0.0
    %1218 = vmatpush1.xpose.msra.mxu0 0.0
    %1219 = vmatprep.subr.mxu0 0.0
    %1220 = vmatpush1.xpose.msra.mxu0 0.0
    %1221 = vmatprep.subr.mxu0 0.0
    %1222 = vmatpush1.xpose.msra.mxu0 0.0
    %1223 = vmatprep.subr.mxu0 0.0
    %1224 = vmatpush1.xpose.msra.mxu0 0.0
    %1225 = vmatprep.subr.mxu0 0.0
    %1226 = vmatpush1.xpose.msra.mxu0 0.0
    %1227 = vmatprep.subr.mxu0 0.0
    %1228 = vmatpush1.xpose.msra.mxu0 0.0
    %1229 = vmatprep.subr.mxu0 0.0
    %1230 = vmatpush1.xpose.msra.mxu0 0.0
    %1231 = vmatprep.subr.mxu0 0.0
    %1232 = vmatpush1.xpose.msra.mxu0 0.0
    %1233 = vmatprep.subr.mxu0 0.0
    %1234 = vmatpush1.xpose.msra.mxu0 0.0
    %1235 = vmatprep.subr.mxu0 0.0
    %1236 = vmatpush1.xpose.msra.mxu0 0.0
    %1237 = vmatprep.subr.mxu0 0.0
    %1238 = vmatpush1.xpose.msra.mxu0 0.0
    %1239 = vmatprep.subr.mxu0 0.0
    %1240 = vmatpush1.xpose.msra.mxu0 0.0
    %1241 = vmatprep.subr.mxu0 0.0
    %1242 = vmatpush1.xpose.msra.mxu0 0.0
    %1243 = vmatprep.subr.mxu0 0.0
    %1244 = vmatpush1.xpose.msra.mxu0 0.0
    %1245 = vmatprep.subr.mxu0 0.0
    %1246 = vmatpush1.xpose.msra.mxu0 0.0
    %1247 = vmatprep.subr.mxu0 0.0
    %1248 = vmatpush1.xpose.msra.mxu0 0.0
    %1249 = vmatprep.subr.mxu0 0.0
    %1250 = vmatpush1.xpose.msra.mxu0 0.0
    %1251 = vmatprep.subr.mxu0 0.0
    %1252 = vmatpush1.xpose.msra.mxu0 0.0
    %1253 = vmatprep.subr.mxu0 0.0
    %1254 = vmatpush1.xpose.msra.mxu0 0.0
    %1255 = vmatprep.subr.mxu0 0.0
    %1256 = vmatpush1.xpose.msra.mxu0 0.0
    %1257 = vmatprep.subr.mxu0 0.0
    %1258 = vmatpush1.xpose.msra.mxu0 0.0
    %1259 = vmatprep.subr.mxu0 0.0
    %1260 = vmatpush1.xpose.msra.mxu0 0.0
    %1261 = vmatprep.subr.mxu0 0.0
    %1262 = vmatpush1.xpose.msra.mxu0 0.0
    %1263 = vmatprep.mubr.f32.mxu0 0.0
    %1264 = vmatmul.mubr.f32.gmra.mrb[0].mxu0 %v1192
    %v1265 = vpop.f32.mrb[0].mxu0
    %v1266 = vadd.f32 %v56, %v1265
    %v1267 = vpop.f32.mrb[0].mxu0
    %1268 = vdwg.mxu0
    %v1269 = vsel %vm101, -3.4028235e+38, %v1266
    %v1270 = vsel %vm601, %v1269, -inf
    %1271 = vmax.xlane.f32.xlu0 %v1270
    %v1272 = vpop.xlane.xlu0 %1271
    %v1273 = vsub.f32 %v1269, %v1272
    %v1274 = vmul.f32 %v1273, 1.442695
    %v1275 = vpow.pop %v1274
    %v1276 = vsel %vm601, %v1275, 0.0
    %1277 = vadd.xlane.f32.xlu0 %v1276
    %v1278 = vpop.xlane.xlu0 %1277
    %v1279 = vrcp.pop %v1278
    %v1280 = vmul.f32 %v1275, %v1279
    %v1282 = vsel %vm601, %v1280, 0
    %v1284 = vsel %vm512, %v1188, 0
    %1286 = vmatprep.subr.mxu0 0.0
    %1287 = vmatpush1.msra.mxu0 %v1190
    %1288 = vmatprep.subr.mxu0 0.0
    %1289 = vmatpush1.msra.mxu0 %v1284
    %1290 = vmatprep.subr.mxu0 0.0
    %1291 = vmatpush1.msra.mxu0 0.0
    %1292 = vmatprep.subr.mxu0 0.0
    %1293 = vmatpush1.msra.mxu0 0.0
    %1294 = vmatprep.subr.mxu0 0.0
    %1295 = vmatpush1.msra.mxu0 0.0
    %1296 = vmatprep.subr.mxu0 0.0
    %1297 = vmatpush1.msra.mxu0 0.0
    %1298 = vmatprep.subr.mxu0 0.0
    %1299 = vmatpush1.msra.mxu0 0.0
    %1300 = vmatprep.subr.mxu0 0.0
    %1301 = vmatpush1.msra.mxu0 0.0
    %1302 = vmatprep.subr.mxu0 0.0
    %1303 = vmatpush1.msra.mxu0 0.0
    %1304 = vmatprep.subr.mxu0 0.0
    %1305 = vmatpush1.msra.mxu0 0.0
    %1306 = vmatprep.subr.mxu0 0.0
    %1307 = vmatpush1.msra.mxu0 0.0
    %1308 = vmatprep.subr.mxu0 0.0
    %1309 = vmatpush1.msra.mxu0 0.0
    %1310 = vmatprep.subr.mxu0 0.0
    %1311 = vmatpush1.msra.mxu0 0.0
    %1312 = vmatprep.subr.mxu0 0.0
    %1313 = vmatpush1.msra.mxu0 0.0
    %1314 = vmatprep.subr.mxu0 0.0
    %1315 = vmatpush1.msra.mxu0 0.0
    %1316 = vmatprep.subr.mxu0 0.0
    %1317 = vmatpush1.msra.mxu0 0.0
    %1318 = vmatprep.subr.mxu0 0.0
    %1319 = vmatpush1.msra.mxu0 0.0
    %1320 = vmatprep.subr.mxu0 0.0
    %1321 = vmatpush1.msra.mxu0 0.0
    %1322 = vmatprep.subr.mxu0 0.0
    %1323 = vmatpush1.msra.mxu0 0.0
    %1324 = vmatprep.subr.mxu0 0.0
    %1325 = vmatpush1.msra.mxu0 0.0
    %1326 = vmatprep.subr.mxu0 0.0
    %1327 = vmatpush1.msra.mxu0 0.0
    %1328 = vmatprep.subr.mxu0 0.0
    %1329 = vmatpush1.msra.mxu0 0.0
    %1330 = vmatprep.subr.mxu0 0.0
    %1331 = vmatpush1.msra.mxu0 0.0
    %1332 = vmatprep.subr.mxu0 0.0
    %1333 = vmatpush1.msra.mxu0 0.0
    %1334 = vmatprep.subr.mxu0 0.0
    %1335 = vmatpush1.msra.mxu0 0.0
    %1336 = vmatprep.subr.mxu0 0.0
    %1337 = vmatpush1.msra.mxu0 0.0
    %1338 = vmatprep.subr.mxu0 0.0
    %1339 = vmatpush1.msra.mxu0 0.0
    %1340 = vmatprep.subr.mxu0 0.0
    %1341 = vmatpush1.msra.mxu0 0.0
    %1342 = vmatprep.subr.mxu0 0.0
    %1343 = vmatpush1.msra.mxu0 0.0
    %1344 = vmatprep.subr.mxu0 0.0
    %1345 = vmatpush1.msra.mxu0 0.0
    %1346 = vmatprep.subr.mxu0 0.0
    %1347 = vmatpush1.msra.mxu0 0.0
    %1348 = vmatprep.subr.mxu0 0.0
    %1349 = vmatpush1.msra.mxu0 0.0
    %1350 = vmatprep.mubr.f32.mxu0 0.0
    %1351 = vmatmul.mubr.f32.gmra.mrb[0].mxu0 %v1282
    %v1352 = vpop.f32.mrb[0].mxu0
    %v1353 = vadd.f32 0.0, %v1352
    %v1354 = vpop.f32.mrb[0].mxu0
    %1355 = vdwg.mxu0
    %1356 = vrot.lane.b32.xlu0 %v482, 96
    %v1357 = vpop.permute.xlu0 %1356
    %v1358 = vsel %vm103, %v1357, 0
    %1360 = vmatprep.subr.mxu0 0.0
    %1361 = vmatpush1.xpose.msra.mxu0 %v1195
    %1362 = vmatprep.subr.mxu0 0.0
    %1363 = vmatpush1.xpose.msra.mxu0 %v1197
    %1364 = vmatprep.subr.mxu0 0.0
    %1365 = vmatpush1.xpose.msra.mxu0 0.0
    %1366 = vmatprep.subr.mxu0 0.0
    %1367 = vmatpush1.xpose.msra.mxu0 0.0
    %1368 = vmatprep.subr.mxu0 0.0
    %1369 = vmatpush1.xpose.msra.mxu0 0.0
    %1370 = vmatprep.subr.mxu0 0.0
    %1371 = vmatpush1.xpose.msra.mxu0 0.0
    %1372 = vmatprep.subr.mxu0 0.0
    %1373 = vmatpush1.xpose.msra.mxu0 0.0
    %1374 = vmatprep.subr.mxu0 0.0
    %1375 = vmatpush1.xpose.msra.mxu0 0.0
    %1376 = vmatprep.subr.mxu0 0.0
    %1377 = vmatpush1.xpose.msra.mxu0 0.0
    %1378 = vmatprep.subr.mxu0 0.0
    %1379 = vmatpush1.xpose.msra.mxu0 0.0
    %1380 = vmatprep.subr.mxu0 0.0
    %1381 = vmatpush1.xpose.msra.mxu0 0.0
    %1382 = vmatprep.subr.mxu0 0.0
    %1383 = vmatpush1.xpose.msra.mxu0 0.0
    %1384 = vmatprep.subr.mxu0 0.0
    %1385 = vmatpush1.xpose.msra.mxu0 0.0
    %1386 = vmatprep.subr.mxu0 0.0
    %1387 = vmatpush1.xpose.msra.mxu0 0.0
    %1388 = vmatprep.subr.mxu0 0.0
    %1389 = vmatpush1.xpose.msra.mxu0 0.0
    %1390 = vmatprep.subr.mxu0 0.0
    %1391 = vmatpush1.xpose.msra.mxu0 0.0
    %1392 = vmatprep.subr.mxu0 0.0
    %1393 = vmatpush1.xpose.msra.mxu0 0.0
    %1394 = vmatprep.subr.mxu0 0.0
    %1395 = vmatpush1.xpose.msra.mxu0 0.0
    %1396 = vmatprep.subr.mxu0 0.0
    %1397 = vmatpush1.xpose.msra.mxu0 0.0
    %1398 = vmatprep.subr.mxu0 0.0
    %1399 = vmatpush1.xpose.msra.mxu0 0.0
    %1400 = vmatprep.subr.mxu0 0.0
    %1401 = vmatpush1.xpose.msra.mxu0 0.0
    %1402 = vmatprep.subr.mxu0 0.0
    %1403 = vmatpush1.xpose.msra.mxu0 0.0
    %1404 = vmatprep.subr.mxu0 0.0
    %1405 = vmatpush1.xpose.msra.mxu0 0.0
    %1406 = vmatprep.subr.mxu0 0.0
    %1407 = vmatpush1.xpose.msra.mxu0 0.0
    %1408 = vmatprep.subr.mxu0 0.0
    %1409 = vmatpush1.xpose.msra.mxu0 0.0
    %1410 = vmatprep.subr.mxu0 0.0
    %1411 = vmatpush1.xpose.msra.mxu0 0.0
    %1412 = vmatprep.subr.mxu0 0.0
    %1413 = vmatpush1.xpose.msra.mxu0 0.0
    %1414 = vmatprep.subr.mxu0 0.0
    %1415 = vmatpush1.xpose.msra.mxu0 0.0
    %1416 = vmatprep.subr.mxu0 0.0
    %1417 = vmatpush1.xpose.msra.mxu0 0.0
    %1418 = vmatprep.subr.mxu0 0.0
    %1419 = vmatpush1.xpose.msra.mxu0 0.0
    %1420 = vmatprep.subr.mxu0 0.0
    %1421 = vmatpush1.xpose.msra.mxu0 0.0
    %1422 = vmatprep.subr.mxu0 0.0
    %1423 = vmatpush1.xpose.msra.mxu0 0.0
    %1424 = vmatprep.mubr.f32.mxu0 0.0
    %1425 = vmatmul.mubr.f32.gmra.mrb[0].mxu0 %v1358
    %v1426 = vpop.f32.mrb[0].mxu0
    %v1427 = vadd.f32 %v57, %v1426
    %v1428 = vpop.f32.mrb[0].mxu0
    %1429 = vdwg.mxu0
    %v1430 = vsel %vm101, -3.4028235e+38, %v1427
    %v1431 = vsel %vm601, %v1430, -inf
    %1432 = vmax.xlane.f32.xlu0 %v1431
    %v1433 = vpop.xlane.xlu0 %1432
    %v1434 = vsub.f32 %v1430, %v1433
    %v1435 = vmul.f32 %v1434, 1.442695
    %v1436 = vpow.pop %v1435
    %v1437 = vsel %vm601, %v1436, 0.0
    %1438 = vadd.xlane.f32.xlu0 %v1437
    %v1439 = vpop.xlane.xlu0 %1438
    %v1440 = vrcp.pop %v1439
    %v1441 = vmul.f32 %v1436, %v1440
    %v1443 = vsel %vm601, %v1441, 0
    %1445 = vmatprep.subr.mxu0 0.0
    %1446 = vmatpush1.msra.mxu0 %v1190
    %1447 = vmatprep.subr.mxu0 0.0
    %1448 = vmatpush1.msra.mxu0 %v1284
    %1449 = vmatprep.subr.mxu0 0.0
    %1450 = vmatpush1.msra.mxu0 0.0
    %1451 = vmatprep.subr.mxu0 0.0
    %1452 = vmatpush1.msra.mxu0 0.0
    %1453 = vmatprep.subr.mxu0 0.0
    %1454 = vmatpush1.msra.mxu0 0.0
    %1455 = vmatprep.subr.mxu0 0.0
    %1456 = vmatpush1.msra.mxu0 0.0
    %1457 = vmatprep.subr.mxu0 0.0
    %1458 = vmatpush1.msra.mxu0 0.0
    %1459 = vmatprep.subr.mxu0 0.0
    %1460 = vmatpush1.msra.mxu0 0.0
    %1461 = vmatprep.subr.mxu0 0.0
    %1462 = vmatpush1.msra.mxu0 0.0
    %1463 = vmatprep.subr.mxu0 0.0
    %1464 = vmatpush1.msra.mxu0 0.0
    %1465 = vmatprep.subr.mxu0 0.0
    %1466 = vmatpush1.msra.mxu0 0.0
    %1467 = vmatprep.subr.mxu0 0.0
    %1468 = vmatpush1.msra.mxu0 0.0
    %1469 = vmatprep.subr.mxu0 0.0
    %1470 = vmatpush1.msra.mxu0 0.0
    %1471 = vmatprep.subr.mxu0 0.0
    %1472 = vmatpush1.msra.mxu0 0.0
    %1473 = vmatprep.subr.mxu0 0.0
    %1474 = vmatpush1.msra.mxu0 0.0
    %1475 = vmatprep.subr.mxu0 0.0
    %1476 = vmatpush1.msra.mxu0 0.0
    %1477 = vmatprep.subr.mxu0 0.0
    %1478 = vmatpush1.msra.mxu0 0.0
    %1479 = vmatprep.subr.mxu0 0.0
    %1480 = vmatpush1.msra.mxu0 0.0
    %1481 = vmatprep.subr.mxu0 0.0
    %1482 = vmatpush1.msra.mxu0 0.0
    %1483 = vmatprep.subr.mxu0 0.0
    %1484 = vmatpush1.msra.mxu0 0.0
    %1485 = vmatprep.subr.mxu0 0.0
    %1486 = vmatpush1.msra.mxu0 0.0
    %1487 = vmatprep.subr.mxu0 0.0
    %1488 = vmatpush1.msra.mxu0 0.0
    %1489 = vmatprep.subr.mxu0 0.0
    %1490 = vmatpush1.msra.mxu0 0.0
    %1491 = vmatprep.subr.mxu0 0.0
    %1492 = vmatpush1.msra.mxu0 0.0
    %1493 = vmatprep.subr.mxu0 0.0
    %1494 = vmatpush1.msra.mxu0 0.0
    %1495 = vmatprep.subr.mxu0 0.0
    %1496 = vmatpush1.msra.mxu0 0.0
    %1497 = vmatprep.subr.mxu0 0.0
    %1498 = vmatpush1.msra.mxu0 0.0
    %1499 = vmatprep.subr.mxu0 0.0
    %1500 = vmatpush1.msra.mxu0 0.0
    %1501 = vmatprep.subr.mxu0 0.0
    %1502 = vmatpush1.msra.mxu0 0.0
    %1503 = vmatprep.subr.mxu0 0.0
    %1504 = vmatpush1.msra.mxu0 0.0
    %1505 = vmatprep.subr.mxu0 0.0
    %1506 = vmatpush1.msra.mxu0 0.0
    %1507 = vmatprep.subr.mxu0 0.0
    %1508 = vmatpush1.msra.mxu0 0.0
    %1509 = vmatprep.mubr.f32.mxu0 0.0
    %1510 = vmatmul.mubr.f32.gmra.mrb[0].mxu0 %v1443
    %v1511 = vpop.f32.mrb[0].mxu0
    %v1512 = vadd.f32 0.0, %v1511
    %v1513 = vpop.f32.mrb[0].mxu0
    %1514 = vdwg.mxu0
    %1515 = vrot.lane.b32.xlu0 %v482, 64
    %v1516 = vpop.permute.xlu0 %1515
    %v1517 = vsel %vm103, %v1516, 0
    %1519 = vmatprep.subr.mxu0 0.0
    %1520 = vmatpush1.xpose.msra.mxu0 %v1195
    %1521 = vmatprep.subr.mxu0 0.0
    %1522 = vmatpush1.xpose.msra.mxu0 %v1197
    %1523 = vmatprep.subr.mxu0 0.0
    %1524 = vmatpush1.xpose.msra.mxu0 0.0
    %1525 = vmatprep.subr.mxu0 0.0
    %1526 = vmatpush1.xpose.msra.mxu0 0.0
    %1527 = vmatprep.subr.mxu0 0.0
    %1528 = vmatpush1.xpose.msra.mxu0 0.0
    %1529 = vmatprep.subr.mxu0 0.0
    %1530 = vmatpush1.xpose.msra.mxu0 0.0
    %1531 = vmatprep.subr.mxu0 0.0
    %1532 = vmatpush1.xpose.msra.mxu0 0.0
    %1533 = vmatprep.subr.mxu0 0.0
    %1534 = vmatpush1.xpose.msra.mxu0 0.0
    %1535 = vmatprep.subr.mxu0 0.0
    %1536 = vmatpush1.xpose.msra.mxu0 0.0
    %1537 = vmatprep.subr.mxu0 0.0
    %1538 = vmatpush1.xpose.msra.mxu0 0.0
    %1539 = vmatprep.subr.mxu0 0.0
    %1540 = vmatpush1.xpose.msra.mxu0 0.0
    %1541 = vmatprep.subr.mxu0 0.0
    %1542 = vmatpush1.xpose.msra.mxu0 0.0
    %1543 = vmatprep.subr.mxu0 0.0
    %1544 = vmatpush1.xpose.msra.mxu0 0.0
    %1545 = vmatprep.subr.mxu0 0.0
    %1546 = vmatpush1.xpose.msra.mxu0 0.0
    %1547 = vmatprep.subr.mxu0 0.0
    %1548 = vmatpush1.xpose.msra.mxu0 0.0
    %1549 = vmatprep.subr.mxu0 0.0
    %1550 = vmatpush1.xpose.msra.mxu0 0.0
    %1551 = vmatprep.subr.mxu0 0.0
    %1552 = vmatpush1.xpose.msra.mxu0 0.0
    %1553 = vmatprep.subr.mxu0 0.0
    %1554 = vmatpush1.xpose.msra.mxu0 0.0
    %1555 = vmatprep.subr.mxu0 0.0
    %1556 = vmatpush1.xpose.msra.mxu0 0.0
    %1557 = vmatprep.subr.mxu0 0.0
    %1558 = vmatpush1.xpose.msra.mxu0 0.0
    %1559 = vmatprep.subr.mxu0 0.0
    %1560 = vmatpush1.xpose.msra.mxu0 0.0
    %1561 = vmatprep.subr.mxu0 0.0
    %1562 = vmatpush1.xpose.msra.mxu0 0.0
    %1563 = vmatprep.subr.mxu0 0.0
    %1564 = vmatpush1.xpose.msra.mxu0 0.0
    %1565 = vmatprep.subr.mxu0 0.0
    %1566 = vmatpush1.xpose.msra.mxu0 0.0
    %1567 = vmatprep.subr.mxu0 0.0
    %1568 = vmatpush1.xpose.msra.mxu0 0.0
    %1569 = vmatprep.subr.mxu0 0.0
    %1570 = vmatpush1.xpose.msra.mxu0 0.0
    %1571 = vmatprep.subr.mxu0 0.0
    %1572 = vmatpush1.xpose.msra.mxu0 0.0
    %1573 = vmatprep.subr.mxu0 0.0
    %1574 = vmatpush1.xpose.msra.mxu0 0.0
    %1575 = vmatprep.subr.mxu0 0.0
    %1576 = vmatpush1.xpose.msra.mxu0 0.0
    %1577 = vmatprep.subr.mxu0 0.0
    %1578 = vmatpush1.xpose.msra.mxu0 0.0
    %1579 = vmatprep.subr.mxu0 0.0
    %1580 = vmatpush1.xpose.msra.mxu0 0.0
    %1581 = vmatprep.subr.mxu0 0.0
    %1582 = vmatpush1.xpose.msra.mxu0 0.0
    %1583 = vmatprep.mubr.f32.mxu0 0.0
    %1584 = vmatmul.mubr.f32.gmra.mrb[0].mxu0 %v1517
    %v1585 = vpop.f32.mrb[0].mxu0
    %v1586 = vadd.f32 %v58, %v1585
    %v1587 = vpop.f32.mrb[0].mxu0
    %1588 = vdwg.mxu0
    %v1589 = vsel %vm101, -3.4028235e+38, %v1586
    %v1590 = vsel %vm601, %v1589, -inf
    %1591 = vmax.xlane.f32.xlu0 %v1590
    %v1592 = vpop.xlane.xlu0 %1591
    %v1593 = vsub.f32 %v1589, %v1592
    %v1594 = vmul.f32 %v1593, 1.442695
    %v1595 = vpow.pop %v1594
    %v1596 = vsel %vm601, %v1595, 0.0
    %1597 = vadd.xlane.f32.xlu0 %v1596
    %v1598 = vpop.xlane.xlu0 %1597
    %v1599 = vrcp.pop %v1598
    %v1600 = vmul.f32 %v1595, %v1599
    %v1602 = vsel %vm601, %v1600, 0
    %1604 = vmatprep.subr.mxu0 0.0
    %1605 = vmatpush1.msra.mxu0 %v1190
    %1606 = vmatprep.subr.mxu0 0.0
    %1607 = vmatpush1.msra.mxu0 %v1284
    %1608 = vmatprep.subr.mxu0 0.0
    %1609 = vmatpush1.msra.mxu0 0.0
    %1610 = vmatprep.subr.mxu0 0.0
    %1611 = vmatpush1.msra.mxu0 0.0
    %1612 = vmatprep.subr.mxu0 0.0
    %1613 = vmatpush1.msra.mxu0 0.0
    %1614 = vmatprep.subr.mxu0 0.0
    %1615 = vmatpush1.msra.mxu0 0.0
    %1616 = vmatprep.subr.mxu0 0.0
    %1617 = vmatpush1.msra.mxu0 0.0
    %1618 = vmatprep.subr.mxu0 0.0
    %1619 = vmatpush1.msra.mxu0 0.0
    %1620 = vmatprep.subr.mxu0 0.0
    %1621 = vmatpush1.msra.mxu0 0.0
    %1622 = vmatprep.subr.mxu0 0.0
    %1623 = vmatpush1.msra.mxu0 0.0
    %1624 = vmatprep.subr.mxu0 0.0
    %1625 = vmatpush1.msra.mxu0 0.0
    %1626 = vmatprep.subr.mxu0 0.0
    %1627 = vmatpush1.msra.mxu0 0.0
    %1628 = vmatprep.subr.mxu0 0.0
    %1629 = vmatpush1.msra.mxu0 0.0
    %1630 = vmatprep.subr.mxu0 0.0
    %1631 = vmatpush1.msra.mxu0 0.0
    %1632 = vmatprep.subr.mxu0 0.0
    %1633 = vmatpush1.msra.mxu0 0.0
    %1634 = vmatprep.subr.mxu0 0.0
    %1635 = vmatpush1.msra.mxu0 0.0
    %1636 = vmatprep.subr.mxu0 0.0
    %1637 = vmatpush1.msra.mxu0 0.0
    %1638 = vmatprep.subr.mxu0 0.0
    %1639 = vmatpush1.msra.mxu0 0.0
    %1640 = vmatprep.subr.mxu0 0.0
    %1641 = vmatpush1.msra.mxu0 0.0
    %1642 = vmatprep.subr.mxu0 0.0
    %1643 = vmatpush1.msra.mxu0 0.0
    %1644 = vmatprep.subr.mxu0 0.0
    %1645 = vmatpush1.msra.mxu0 0.0
    %1646 = vmatprep.subr.mxu0 0.0
    %1647 = vmatpush1.msra.mxu0 0.0
    %1648 = vmatprep.subr.mxu0 0.0
    %1649 = vmatpush1.msra.mxu0 0.0
    %1650 = vmatprep.subr.mxu0 0.0
    %1651 = vmatpush1.msra.mxu0 0.0
    %1652 = vmatprep.subr.mxu0 0.0
    %1653 = vmatpush1.msra.mxu0 0.0
    %1654 = vmatprep.subr.mxu0 0.0
    %1655 = vmatpush1.msra.mxu0 0.0
    %1656 = vmatprep.subr.mxu0 0.0
    %1657 = vmatpush1.msra.mxu0 0.0
    %1658 = vmatprep.subr.mxu0 0.0
    %1659 = vmatpush1.msra.mxu0 0.0
    %1660 = vmatprep.subr.mxu0 0.0
    %1661 = vmatpush1.msra.mxu0 0.0
    %1662 = vmatprep.subr.mxu0 0.0
    %1663 = vmatpush1.msra.mxu0 0.0
    %1664 = vmatprep.subr.mxu0 0.0
    %1665 = vmatpush1.msra.mxu0 0.0
    %1666 = vmatprep.subr.mxu0 0.0
    %1667 = vmatpush1.msra.mxu0 0.0
    %1668 = vmatprep.mubr.f32.mxu0 0.0
    %1669 = vmatmul.mubr.f32.gmra.mrb[0].mxu0 %v1602
    %v1670 = vpop.f32.mrb[0].mxu0
    %v1671 = vadd.f32 0.0, %v1670
    %v1672 = vpop.f32.mrb[0].mxu0
    %1673 = vdwg.mxu0
    %1674 = vrot.lane.b32.xlu0 %v482, 32
    %v1675 = vpop.permute.xlu0 %1674
    %v1676 = vsel %vm103, %v1675, 0
    %1678 = vmatprep.subr.mxu0 0.0
    %1679 = vmatpush1.xpose.msra.mxu0 %v1195
    %1680 = vmatprep.subr.mxu0 0.0
    %1681 = vmatpush1.xpose.msra.mxu0 %v1197
    %1682 = vmatprep.subr.mxu0 0.0
    %1683 = vmatpush1.xpose.msra.mxu0 0.0
    %1684 = vmatprep.subr.mxu0 0.0
    %1685 = vmatpush1.xpose.msra.mxu0 0.0
    %1686 = vmatprep.subr.mxu0 0.0
    %1687 = vmatpush1.xpose.msra.mxu0 0.0
    %1688 = vmatprep.subr.mxu0 0.0
    %1689 = vmatpush1.xpose.msra.mxu0 0.0
    %1690 = vmatprep.subr.mxu0 0.0
    %1691 = vmatpush1.xpose.msra.mxu0 0.0
    %1692 = vmatprep.subr.mxu0 0.0
    %1693 = vmatpush1.xpose.msra.mxu0 0.0
    %1694 = vmatprep.subr.mxu0 0.0
    %1695 = vmatpush1.xpose.msra.mxu0 0.0
    %1696 = vmatprep.subr.mxu0 0.0
    %1697 = vmatpush1.xpose.msra.mxu0 0.0
    %1698 = vmatprep.subr.mxu0 0.0
    %1699 = vmatpush1.xpose.msra.mxu0 0.0
    %1700 = vmatprep.subr.mxu0 0.0
    %1701 = vmatpush1.xpose.msra.mxu0 0.0
    %1702 = vmatprep.subr.mxu0 0.0
    %1703 = vmatpush1.xpose.msra.mxu0 0.0
    %1704 = vmatprep.subr.mxu0 0.0
    %1705 = vmatpush1.xpose.msra.mxu0 0.0
    %1706 = vmatprep.subr.mxu0 0.0
    %1707 = vmatpush1.xpose.msra.mxu0 0.0
    %1708 = vmatprep.subr.mxu0 0.0
    %1709 = vmatpush1.xpose.msra.mxu0 0.0
    %1710 = vmatprep.subr.mxu0 0.0
    %1711 = vmatpush1.xpose.msra.mxu0 0.0
    %1712 = vmatprep.subr.mxu0 0.0
    %1713 = vmatpush1.xpose.msra.mxu0 0.0
    %1714 = vmatprep.subr.mxu0 0.0
    %1715 = vmatpush1.xpose.msra.mxu0 0.0
    %1716 = vmatprep.subr.mxu0 0.0
    %1717 = vmatpush1.xpose.msra.mxu0 0.0
    %1718 = vmatprep.subr.mxu0 0.0
    %1719 = vmatpush1.xpose.msra.mxu0 0.0
    %1720 = vmatprep.subr.mxu0 0.0
    %1721 = vmatpush1.xpose.msra.mxu0 0.0
    %1722 = vmatprep.subr.mxu0 0.0
    %1723 = vmatpush1.xpose.msra.mxu0 0.0
    %1724 = vmatprep.subr.mxu0 0.0
    %1725 = vmatpush1.xpose.msra.mxu0 0.0
    %1726 = vmatprep.subr.mxu0 0.0
    %1727 = vmatpush1.xpose.msra.mxu0 0.0
    %1728 = vmatprep.subr.mxu0 0.0
    %1729 = vmatpush1.xpose.msra.mxu0 0.0
    %1730 = vmatprep.subr.mxu0 0.0
    %1731 = vmatpush1.xpose.msra.mxu0 0.0
    %1732 = vmatprep.subr.mxu0 0.0
    %1733 = vmatpush1.xpose.msra.mxu0 0.0
    %1734 = vmatprep.subr.mxu0 0.0
    %1735 = vmatpush1.xpose.msra.mxu0 0.0
    %1736 = vmatprep.subr.mxu0 0.0
    %1737 = vmatpush1.xpose.msra.mxu0 0.0
    %1738 = vmatprep.subr.mxu0 0.0
    %1739 = vmatpush1.xpose.msra.mxu0 0.0
    %1740 = vmatprep.subr.mxu0 0.0
    %1741 = vmatpush1.xpose.msra.mxu0 0.0
    %1742 = vmatprep.mubr.f32.mxu0 0.0
    %1743 = vmatmul.mubr.f32.gmra.mrb[0].mxu0 %v1676
    %v1744 = vpop.f32.mrb[0].mxu0
    %v1745 = vadd.f32 %v59, %v1744
    %v1746 = vpop.f32.mrb[0].mxu0
    %1747 = vdwg.mxu0
    %v1748 = vsel %vm101, -3.4028235e+38, %v1745
    %v1749 = vsel %vm601, %v1748, -inf
    %1750 = vmax.xlane.f32.xlu0 %v1749
    %v1751 = vpop.xlane.xlu0 %1750
    %v1752 = vsub.f32 %v1748, %v1751
    %v1753 = vmul.f32 %v1752, 1.442695
    %v1754 = vpow.pop %v1753
    %v1755 = vsel %vm601, %v1754, 0.0
    %1756 = vadd.xlane.f32.xlu0 %v1755
    %v1757 = vpop.xlane.xlu0 %1756
    %v1758 = vrcp.pop %v1757
    %v1759 = vmul.f32 %v1754, %v1758
    %v1761 = vsel %vm601, %v1759, 0
    %1763 = vmatprep.subr.mxu0 0.0
    %1764 = vmatpush1.msra.mxu0 %v1190
    %1765 = vmatprep.subr.mxu0 0.0
    %1766 = vmatpush1.msra.mxu0 %v1284
    %1767 = vmatprep.subr.mxu0 0.0
    %1768 = vmatpush1.msra.mxu0 0.0
    %1769 = vmatprep.subr.mxu0 0.0
    %1770 = vmatpush1.msra.mxu0 0.0
    %1771 = vmatprep.subr.mxu0 0.0
    %1772 = vmatpush1.msra.mxu0 0.0
    %1773 = vmatprep.subr.mxu0 0.0
    %1774 = vmatpush1.msra.mxu0 0.0
    %1775 = vmatprep.subr.mxu0 0.0
    %1776 = vmatpush1.msra.mxu0 0.0
    %1777 = vmatprep.subr.mxu0 0.0
    %1778 = vmatpush1.msra.mxu0 0.0
    %1779 = vmatprep.subr.mxu0 0.0
    %1780 = vmatpush1.msra.mxu0 0.0
    %1781 = vmatprep.subr.mxu0 0.0
    %1782 = vmatpush1.msra.mxu0 0.0
    %1783 = vmatprep.subr.mxu0 0.0
    %1784 = vmatpush1.msra.mxu0 0.0
    %1785 = vmatprep.subr.mxu0 0.0
    %1786 = vmatpush1.msra.mxu0 0.0
    %1787 = vmatprep.subr.mxu0 0.0
    %1788 = vmatpush1.msra.mxu0 0.0
    %1789 = vmatprep.subr.mxu0 0.0
    %1790 = vmatpush1.msra.mxu0 0.0
    %1791 = vmatprep.subr.mxu0 0.0
    %1792 = vmatpush1.msra.mxu0 0.0
    %1793 = vmatprep.subr.mxu0 0.0
    %1794 = vmatpush1.msra.mxu0 0.0
    %1795 = vmatprep.subr.mxu0 0.0
    %1796 = vmatpush1.msra.mxu0 0.0
    %1797 = vmatprep.subr.mxu0 0.0
    %1798 = vmatpush1.msra.mxu0 0.0
    %1799 = vmatprep.subr.mxu0 0.0
    %1800 = vmatpush1.msra.mxu0 0.0
    %1801 = vmatprep.subr.mxu0 0.0
    %1802 = vmatpush1.msra.mxu0 0.0
    %1803 = vmatprep.subr.mxu0 0.0
    %1804 = vmatpush1.msra.mxu0 0.0
    %1805 = vmatprep.subr.mxu0 0.0
    %1806 = vmatpush1.msra.mxu0 0.0
    %1807 = vmatprep.subr.mxu0 0.0
    %1808 = vmatpush1.msra.mxu0 0.0
    %1809 = vmatprep.subr.mxu0 0.0
    %1810 = vmatpush1.msra.mxu0 0.0
    %1811 = vmatprep.subr.mxu0 0.0
    %1812 = vmatpush1.msra.mxu0 0.0
    %1813 = vmatprep.subr.mxu0 0.0
    %1814 = vmatpush1.msra.mxu0 0.0
    %1815 = vmatprep.subr.mxu0 0.0
    %1816 = vmatpush1.msra.mxu0 0.0
    %1817 = vmatprep.subr.mxu0 0.0
    %1818 = vmatpush1.msra.mxu0 0.0
    %1819 = vmatprep.subr.mxu0 0.0
    %1820 = vmatpush1.msra.mxu0 0.0
    %1821 = vmatprep.subr.mxu0 0.0
    %1822 = vmatpush1.msra.mxu0 0.0
    %1823 = vmatprep.subr.mxu0 0.0
    %1824 = vmatpush1.msra.mxu0 0.0
    %1825 = vmatprep.subr.mxu0 0.0
    %1826 = vmatpush1.msra.mxu0 0.0
    %1827 = vmatprep.mubr.f32.mxu0 0.0
    %1828 = vmatmul.mubr.f32.gmra.mrb[0].mxu0 %v1761
    %v1829 = vpop.f32.mrb[0].mxu0
    %v1830 = vadd.f32 0.0, %v1829
    %v1831 = vpop.f32.mrb[0].mxu0
    %1832 = vdwg.mxu0
    %1834 = vrot.lane.b32.xlu0 %v1512, 32
    %v1835 = vpop.permute.xlu0 %1834
    %1838 = vrot.lane.b32.xlu0 %v1671, 64
    %v1839 = vpop.permute.xlu0 %1838
    %1842 = vrot.lane.b32.xlu0 %v1830, 96
    %v1843 = vpop.permute.xlu0 %1842
    %v1845 = vsel %vm103, %v1353, %v1835
    %v1846 = vsel %vm1178, %v1845, %v1839
    %v1847 = vsel %vm1180, %v1846, %v1843
    %v1848 = vld [vmem:[%s9] sm:$0xff]
    %v1849 = vld [vmem:[%s9 + $0x8] sm:$0xff]
    %v1850 = vld [vmem:[%s9 + $0x10] sm:$0xff]
    %v1851 = vld [vmem:[%s9 + $0x18] sm:$0xff]
    %v1852 = vld [vmem:[%s9 + $0x20] sm:$0xff]
    %v1853 = vld [vmem:[%s9 + $0x28] sm:$0xff]
    %v1854 = vld [vmem:[%s9 + $0x30] sm:$0xff]
    %v1855 = vld [vmem:[%s9 + $0x38] sm:$0xff]
    %v1856 = vld [vmem:[%s9 + $0x40] sm:$0xff]
    %v1857 = vld [vmem:[%s9 + $0x48] sm:$0xff]
    %v1858 = vld [vmem:[%s9 + $0x50] sm:$0xff]
    %v1859 = vld [vmem:[%s9 + $0x58] sm:$0xff]
    %v1860 = vld [vmem:[%s9 + $0x60] sm:$0xff]
    %v1861 = vld [vmem:[%s9 + $0x68] sm:$0xff]
    %v1862 = vld [vmem:[%s9 + $0x70] sm:$0xff]
    %v1863 = vld [vmem:[%s9 + $0x78] sm:$0xff]
    %1864 = vmatprep.subr.mxu0 0.0
    %1865 = vmatpush1.msra.mxu0 %v1848
    %1866 = vmatprep.subr.mxu0 0.0
    %1867 = vmatpush1.msra.mxu0 %v1849
    %1868 = vmatprep.subr.mxu0 0.0
    %1869 = vmatpush1.msra.mxu0 %v1850
    %1870 = vmatprep.subr.mxu0 0.0
    %1871 = vmatpush1.msra.mxu0 %v1851
    %1872 = vmatprep.subr.mxu0 0.0
    %1873 = vmatpush1.msra.mxu0 %v1852
    %1874 = vmatprep.subr.mxu0 0.0
    %1875 = vmatpush1.msra.mxu0 %v1853
    %1876 = vmatprep.subr.mxu0 0.0
    %1877 = vmatpush1.msra.mxu0 %v1854
    %1878 = vmatprep.subr.mxu0 0.0
    %1879 = vmatpush1.msra.mxu0 %v1855
    %1880 = vmatprep.subr.mxu0 0.0
    %1881 = vmatpush1.msra.mxu0 %v1856
    %1882 = vmatprep.subr.mxu0 0.0
    %1883 = vmatpush1.msra.mxu0 %v1857
    %1884 = vmatprep.subr.mxu0 0.0
    %1885 = vmatpush1.msra.mxu0 %v1858
    %1886 = vmatprep.subr.mxu0 0.0
    %1887 = vmatpush1.msra.mxu0 %v1859
    %1888 = vmatprep.subr.mxu0 0.0
    %1889 = vmatpush1.msra.mxu0 %v1860
    %1890 = vmatprep.subr.mxu0 0.0
    %1891 = vmatpush1.msra.mxu0 %v1861
    %1892 = vmatprep.subr.mxu0 0.0
    %1893 = vmatpush1.msra.mxu0 %v1862
    %1894 = vmatprep.subr.mxu0 0.0
    %1895 = vmatpush1.msra.mxu0 %v1863
    %1896 = vmatprep.subr.mxu0 0.0
    %1897 = vmatpush1.msra.mxu0 0.0
    %1898 = vmatprep.subr.mxu0 0.0
    %1899 = vmatpush1.msra.mxu0 0.0
    %1900 = vmatprep.subr.mxu0 0.0
    %1901 = vmatpush1.msra.mxu0 0.0
    %1902 = vmatprep.subr.mxu0 0.0
    %1903 = vmatpush1.msra.mxu0 0.0
    %1904 = vmatprep.subr.mxu0 0.0
    %1905 = vmatpush1.msra.mxu0 0.0
    %1906 = vmatprep.subr.mxu0 0.0
    %1907 = vmatpush1.msra.mxu0 0.0
    %1908 = vmatprep.subr.mxu0 0.0
    %1909 = vmatpush1.msra.mxu0 0.0
    %1910 = vmatprep.subr.mxu0 0.0
    %1911 = vmatpush1.msra.mxu0 0.0
    %1912 = vmatprep.subr.mxu0 0.0
    %1913 = vmatpush1.msra.mxu0 0.0
    %1914 = vmatprep.subr.mxu0 0.0
    %1915 = vmatpush1.msra.mxu0 0.0
    %1916 = vmatprep.subr.mxu0 0.0
    %1917 = vmatpush1.msra.mxu0 0.0
    %1918 = vmatprep.subr.mxu0 0.0
    %1919 = vmatpush1.msra.mxu0 0.0
    %1920 = vmatprep.subr.mxu0 0.0
    %1921 = vmatpush1.msra.mxu0 0.0
    %1922 = vmatprep.subr.mxu0 0.0
    %1923 = vmatpush1.msra.mxu0 0.0
    %1924 = vmatprep.subr.mxu0 0.0
    %1925 = vmatpush1.msra.mxu0 0.0
    %1926 = vmatprep.subr.mxu0 0.0
    %1927 = vmatpush1.msra.mxu0 0.0
    %1928 = vmatprep.mubr.f32.mxu0 0.0
    %1929 = vmatmul.mubr.f32.gmra.mrb[0].mxu0 %v1181
    %v1930 = vpop.f32.mrb[0].mxu0
    %v1931 = vadd.f32 0.0, %v1930
    %v1932 = vpop.f32.mrb[0].mxu0
    %1933 = vmatprep.mubr.f32.mxu0 0.0
    %1934 = vmatmul.mubr.f32.gmra.mrb[0].mxu0 %v1847
    %v1935 = vpop.f32.mrb[0].mxu0
    %v1936 = vadd.f32 0.0, %v1935
    %v1937 = vpop.f32.mrb[0].mxu0
    %1938 = vdwg.mxu0
    %v1939 = vld [vmem:[%s10] sm:$0x1]
    %v1940 = vsel %vm103, %v1931, 0.0
    %1941 = vadd.xlane.f32.xlu0 %v1940
    %v1942 = vpop.xlane.xlu0 %1941
    %v1943 = vsel %vm103, %v1936, 0.0
    %1944 = vadd.xlane.f32.xlu0 %v1943
    %v1945 = vpop.xlane.xlu0 %1944
    %v1946 = vmul.f32 %v1942, %v110
    %v1947 = vmul.f32 %v1945, %v110
    %v1948 = vsub.f32 %v1931, %v1946
    %v1949 = vsub.f32 %v1936, %v1947
    %v1950 = vmul.f32 %v1948, %v1948
    %v1951 = vmul.f32 %v1949, %v1949
    %v1952 = vsel %vm103, %v1950, 0.0
    %1953 = vadd.xlane.f32.xlu0 %v1952
    %v1954 = vpop.xlane.xlu0 %1953
    %v1955 = vsel %vm103, %v1951, 0.0
    %1956 = vadd.xlane.f32.xlu0 %v1955
    %v1957 = vpop.xlane.xlu0 %1956
    %v1958 = vmul.f32 %v1954, %v110
    %v1959 = vmul.f32 %v1957, %v110
    %v1960 = vadd.f32 %v1958, 1e-05
    %v1961 = vadd.f32 %v1959, 1e-05
    %v1962 = vrsqrt.pop %v1960
    %v1963 = vrsqrt.pop %v1961
    %v1964 = vmul.f32 %v1948, %v1962
    %v1965 = vmul.f32 %v1949, %v1963
    %v1967 = vlaneseq
    %v1968 = vshrl.u32 %v1967, 7
    %v1969 = vsub.s32 0, %v1968
    %v1970 = vrot.slane %v1939, %v1969
    %v1972 = vmul.f32 %v1964, %v1970
    %v1973 = vmul.f32 %v1965, %v1970
    %v1974 = vadd.f32 %v54, %v1972
    %v1975 = vadd.f32 %v55, %v1973
    %v1976 = vld [vmem:[%s11] sm:$0x1]
    %v1977 = vsel %vm103, %v1974, 0.0
    %1978 = vadd.xlane.f32.xlu0 %v1977
    %v1979 = vpop.xlane.xlu0 %1978
    %v1980 = vsel %vm103, %v1975, 0.0
    %1981 = vadd.xlane.f32.xlu0 %v1980
    %v1982 = vpop.xlane.xlu0 %1981
    %v1983 = vmul.f32 %v1979, %v110
    %v1984 = vmul.f32 %v1982, %v110
    %v1985 = vsub.f32 %v1974, %v1983
    %v1986 = vsub.f32 %v1975, %v1984
    %v1987 = vmul.f32 %v1985, %v1985
    %v1988 = vmul.f32 %v1986, %v1986
    %v1989 = vsel %vm103, %v1987, 0.0
    %1990 = vadd.xlane.f32.xlu0 %v1989
    %v1991 = vpop.xlane.xlu0 %1990
    %v1992 = vsel %vm103, %v1988, 0.0
    %1993 = vadd.xlane.f32.xlu0 %v1992
    %v1994 = vpop.xlane.xlu0 %1993
    %v1995 = vmul.f32 %v1991, %v110
    %v1996 = vmul.f32 %v1994, %v110
    %v1997 = vadd.f32 %v1995, 1e-05
    %v1998 = vadd.f32 %v1996, 1e-05
    %v1999 = vrsqrt.pop %v1997
    %v2000 = vrsqrt.pop %v1998
    %v2001 = vmul.f32 %v1985, %v1999
    %v2002 = vmul.f32 %v1986, %v2000
    %v2004 = vlaneseq
    %v2005 = vshrl.u32 %v2004, 7
    %v2006 = vsub.s32 0, %v2005
    %v2007 = vrot.slane %v1976, %v2006
    %v2009 = vmul.f32 %v2001, %v2007
    %v2010 = vmul.f32 %v2002, %v2007
    %v2011 = vld [vmem:[%s12] sm:$0xff]
    %v2012 = vld [vmem:[%s12 + $0x8] sm:$0xff]
    %v2013 = vld [vmem:[%s12 + $0x10] sm:$0xff]
    %v2014 = vld [vmem:[%s12 + $0x18] sm:$0xff]
    %v2015 = vld [vmem:[%s12 + $0x20] sm:$0xff]
    %v2016 = vld [vmem:[%s12 + $0x28] sm:$0xff]
    %v2017 = vld [vmem:[%s12 + $0x30] sm:$0xff]
    %v2018 = vld [vmem:[%s12 + $0x38] sm:$0xff]
    %v2020 = vsel %vm103, %v2009, 0
    %v2023 = vsel %vm103, %v2010, 0
    %2025 = vmatprep.subr.mxu0 %v2012
    %2026 = vmatpush1.msra.mxu0 %v2011
    %2027 = vmatprep.subr.mxu0 %v2014
    %2028 = vmatpush1.msra.mxu0 %v2013
    %2029 = vmatprep.subr.mxu0 %v2016
    %2030 = vmatpush1.msra.mxu0 %v2015
    %2031 = vmatprep.subr.mxu0 %v2018
    %2032 = vmatpush1.msra.mxu0 %v2017
    %2033 = vmatprep.subr.mxu0 0.0
    %2034 = vmatpush1.msra.mxu0 0.0
    %2035 = vmatprep.subr.mxu0 0.0
    %2036 = vmatpush1.msra.mxu0 0.0
    %2037 = vmatprep.subr.mxu0 0.0
    %2038 = vmatpush1.msra.mxu0 0.0
    %2039 = vmatprep.subr.mxu0 0.0
    %2040 = vmatpush1.msra.mxu0 0.0
    %2041 = vmatprep.subr.mxu0 0.0
    %2042 = vmatpush1.msra.mxu0 0.0
    %2043 = vmatprep.subr.mxu0 0.0
    %2044 = vmatpush1.msra.mxu0 0.0
    %2045 = vmatprep.subr.mxu0 0.0
    %2046 = vmatpush1.msra.mxu0 0.0
    %2047 = vmatprep.subr.mxu0 0.0
    %2048 = vmatpush1.msra.mxu0 0.0
    %2049 = vmatprep.subr.mxu0 0.0
    %2050 = vmatpush1.msra.mxu0 0.0
    %2051 = vmatprep.subr.mxu0 0.0
    %2052 = vmatpush1.msra.mxu0 0.0
    %2053 = vmatprep.subr.mxu0 0.0
    %2054 = vmatpush1.msra.mxu0 0.0
    %2055 = vmatprep.subr.mxu0 0.0
    %2056 = vmatpush1.msra.mxu0 0.0
    %2057 = vmatprep.subr.mxu0 0.0
    %2058 = vmatpush1.msra.mxu0 0.0
    %2059 = vmatprep.subr.mxu0 0.0
    %2060 = vmatpush1.msra.mxu0 0.0
    %2061 = vmatprep.subr.mxu0 0.0
    %2062 = vmatpush1.msra.mxu0 0.0
    %2063 = vmatprep.subr.mxu0 0.0
    %2064 = vmatpush1.msra.mxu0 0.0
    %2065 = vmatprep.subr.mxu0 0.0
    %2066 = vmatpush1.msra.mxu0 0.0
    %2067 = vmatprep.subr.mxu0 0.0
    %2068 = vmatpush1.msra.mxu0 0.0
    %2069 = vmatprep.subr.mxu0 0.0
    %2070 = vmatpush1.msra.mxu0 0.0
    %2071 = vmatprep.subr.mxu0 0.0
    %2072 = vmatpush1.msra.mxu0 0.0
    %2073 = vmatprep.subr.mxu0 0.0
    %2074 = vmatpush1.msra.mxu0 0.0
    %2075 = vmatprep.subr.mxu0 0.0
    %2076 = vmatpush1.msra.mxu0 0.0
    %2077 = vmatprep.subr.mxu0 0.0
    %2078 = vmatpush1.msra.mxu0 0.0
    %2079 = vmatprep.subr.mxu0 0.0
    %2080 = vmatpush1.msra.mxu0 0.0
    %2081 = vmatprep.subr.mxu0 0.0
    %2082 = vmatpush1.msra.mxu0 0.0
    %2083 = vmatprep.subr.mxu0 0.0
    %2084 = vmatpush1.msra.mxu0 0.0
    %2085 = vmatprep.subr.mxu0 0.0
    %2086 = vmatpush1.msra.mxu0 0.0
    %2087 = vmatprep.subr.mxu0 0.0
    %2088 = vmatpush1.msra.mxu0 0.0
    %2089 = vmatprep.mubr.f32.mxu0 0.0
    %2090 = vmatmul.mubr.f32.gmra.mrb[0].mxu0 %v2020
    %v2091 = vpop.f32.mrb[0].mxu0
    %v2092 = vadd.f32 0.0, %v2091
    %v2093 = vpop.f32.mrb[0].mxu0
    %v2094 = vadd.f32 0.0, %v2093
    %2095 = vmatprep.mubr.f32.mxu0 0.0
    %2096 = vmatmul.mubr.f32.gmra.mrb[0].mxu0 %v2023
    %v2097 = vpop.f32.mrb[0].mxu0
    %v2098 = vadd.f32 0.0, %v2097
    %v2099 = vpop.f32.mrb[0].mxu0
    %v2100 = vadd.f32 0.0, %v2099
    %2101 = vdwg.mxu0
    %v2102 = vxor.u32 %v2094, 2147483648
    %v2103 = vxor.u32 %v2100, 2147483648
    %v2104 = vmul.f32 %v2102, 1.442695
    %v2105 = vpow.pop %v2104
    %v2106 = vmul.f32 %v2103, 1.442695
    %v2107 = vpow.pop %v2106
    %v2108 = vadd.f32 %v2105, 1.0
    %v2109 = vadd.f32 %v2107, 1.0
    %v2110 = vrcp.pop %v2108
    %v2111 = vmul.f32 1.0, %v2110
    %v2112 = vrcp.pop %v2109
    %v2113 = vmul.f32 1.0, %v2112
    %v2114 = vmul.f32 %v2094, %v2111
    %v2115 = vmul.f32 %v2100, %v2113
    %v2116 = vmul.f32 %v2092, %v2114
    %v2117 = vmul.f32 %v2098, %v2115
    %v2118 = vld [vmem:[%s13] sm:$0xff]
    %v2119 = vld [vmem:[%s13 + $0x8] sm:$0xff]
    %v2120 = vld [vmem:[%s13 + $0x10] sm:$0xff]
    %v2121 = vld [vmem:[%s13 + $0x18] sm:$0xff]
    %v2122 = vld [vmem:[%s13 + $0x20] sm:$0xff]
    %v2123 = vld [vmem:[%s13 + $0x28] sm:$0xff]
    %v2124 = vld [vmem:[%s13 + $0x30] sm:$0xff]
    %v2125 = vld [vmem:[%s13 + $0x38] sm:$0xff]
    %v2126 = vld [vmem:[%s13 + $0x40] sm:$0xff]
    %v2127 = vld [vmem:[%s13 + $0x48] sm:$0xff]
    %v2128 = vld [vmem:[%s13 + $0x50] sm:$0xff]
    %v2129 = vld [vmem:[%s13 + $0x58] sm:$0xff]
    %v2130 = vld [vmem:[%s13 + $0x60] sm:$0xff]
    %v2131 = vld [vmem:[%s13 + $0x68] sm:$0xff]
    %v2132 = vld [vmem:[%s13 + $0x70] sm:$0xff]
    %v2133 = vld [vmem:[%s13 + $0x78] sm:$0xff]
    %2134 = vmatprep.subr.mxu0 0.0
    %2135 = vmatpush1.msra.mxu0 %v2118
    %2136 = vmatprep.subr.mxu0 0.0
    %2137 = vmatpush1.msra.mxu0 %v2119
    %2138 = vmatprep.subr.mxu0 0.0
    %2139 = vmatpush1.msra.mxu0 %v2120
    %2140 = vmatprep.subr.mxu0 0.0
    %2141 = vmatpush1.msra.mxu0 %v2121
    %2142 = vmatprep.subr.mxu0 0.0
    %2143 = vmatpush1.msra.mxu0 %v2122
    %2144 = vmatprep.subr.mxu0 0.0
    %2145 = vmatpush1.msra.mxu0 %v2123
    %2146 = vmatprep.subr.mxu0 0.0
    %2147 = vmatpush1.msra.mxu0 %v2124
    %2148 = vmatprep.subr.mxu0 0.0
    %2149 = vmatpush1.msra.mxu0 %v2125
    %2150 = vmatprep.subr.mxu0 0.0
    %2151 = vmatpush1.msra.mxu0 %v2126
    %2152 = vmatprep.subr.mxu0 0.0
    %2153 = vmatpush1.msra.mxu0 %v2127
    %2154 = vmatprep.subr.mxu0 0.0
    %2155 = vmatpush1.msra.mxu0 %v2128
    %2156 = vmatprep.subr.mxu0 0.0
    %2157 = vmatpush1.msra.mxu0 %v2129
    %2158 = vmatprep.subr.mxu0 0.0
    %2159 = vmatpush1.msra.mxu0 %v2130
    %2160 = vmatprep.subr.mxu0 0.0
    %2161 = vmatpush1.msra.mxu0 %v2131
    %2162 = vmatprep.subr.mxu0 0.0
    %2163 = vmatpush1.msra.mxu0 %v2132
    %2164 = vmatprep.subr.mxu0 0.0
    %2165 = vmatpush1.msra.mxu0 %v2133
    %2166 = vmatprep.subr.mxu0 0.0
    %2167 = vmatpush1.msra.mxu0 0.0
    %2168 = vmatprep.subr.mxu0 0.0
    %2169 = vmatpush1.msra.mxu0 0.0
    %2170 = vmatprep.subr.mxu0 0.0
    %2171 = vmatpush1.msra.mxu0 0.0
    %2172 = vmatprep.subr.mxu0 0.0
    %2173 = vmatpush1.msra.mxu0 0.0
    %2174 = vmatprep.subr.mxu0 0.0
    %2175 = vmatpush1.msra.mxu0 0.0
    %2176 = vmatprep.subr.mxu0 0.0
    %2177 = vmatpush1.msra.mxu0 0.0
    %2178 = vmatprep.subr.mxu0 0.0
    %2179 = vmatpush1.msra.mxu0 0.0
    %2180 = vmatprep.subr.mxu0 0.0
    %2181 = vmatpush1.msra.mxu0 0.0
    %2182 = vmatprep.subr.mxu0 0.0
    %2183 = vmatpush1.msra.mxu0 0.0
    %2184 = vmatprep.subr.mxu0 0.0
    %2185 = vmatpush1.msra.mxu0 0.0
    %2186 = vmatprep.subr.mxu0 0.0
    %2187 = vmatpush1.msra.mxu0 0.0
    %2188 = vmatprep.subr.mxu0 0.0
    %2189 = vmatpush1.msra.mxu0 0.0
    %2190 = vmatprep.subr.mxu0 0.0
    %2191 = vmatpush1.msra.mxu0 0.0
    %2192 = vmatprep.subr.mxu0 0.0
    %2193 = vmatpush1.msra.mxu0 0.0
    %2194 = vmatprep.subr.mxu0 0.0
    %2195 = vmatpush1.msra.mxu0 0.0
    %2196 = vmatprep.subr.mxu0 0.0
    %2197 = vmatpush1.msra.mxu0 0.0
    %2198 = vmatprep.mubr.f32.mxu0 0.0
    %2199 = vmatmul.mubr.f32.gmra.mrb[0].mxu0 %v2116
    %v2200 = vpop.f32.mrb[0].mxu0
    %v2201 = vadd.f32 0.0, %v2200
    %v2202 = vpop.f32.mrb[0].mxu0
    %2203 = vmatprep.mubr.f32.mxu0 0.0
    %2204 = vmatmul.mubr.f32.gmra.mrb[0].mxu0 %v2117
    %v2205 = vpop.f32.mrb[0].mxu0
    %v2206 = vadd.f32 0.0, %v2205
    %v2207 = vpop.f32.mrb[0].mxu0
    %2208 = vdwg.mxu0
    %v2209 = vadd.f32 %v1974, %v2201
    %v2210 = vadd.f32 %v1975, %v2206
    %s2211 = scalar_lea.vmem %s6, 1
    %v2212 = vld [vmem:[%s2211] sm:$0x1]
    %v2213 = vsel %vm103, %v2209, 0.0
    %2214 = vadd.xlane.f32.xlu0 %v2213
    %v2215 = vpop.xlane.xlu0 %2214
    %v2216 = vsel %vm103, %v2210, 0.0
    %2217 = vadd.xlane.f32.xlu0 %v2216
    %v2218 = vpop.xlane.xlu0 %2217
    %v2219 = vmul.f32 %v2215, %v110
    %v2220 = vmul.f32 %v2218, %v110
    %v2221 = vsub.f32 %v2209, %v2219
    %v2222 = vsub.f32 %v2210, %v2220
    %v2223 = vmul.f32 %v2221, %v2221
    %v2224 = vmul.f32 %v2222, %v2222
    %v2225 = vsel %vm103, %v2223, 0.0
    %2226 = vadd.xlane.f32.xlu0 %v2225
    %v2227 = vpop.xlane.xlu0 %2226
    %v2228 = vsel %vm103, %v2224, 0.0
    %2229 = vadd.xlane.f32.xlu0 %v2228
    %v2230 = vpop.xlane.xlu0 %2229
    %v2231 = vmul.f32 %v2227, %v110
    %v2232 = vmul.f32 %v2230, %v110
    %v2233 = vadd.f32 %v2231, 1e-05
    %v2234 = vadd.f32 %v2232, 1e-05
    %v2235 = vrsqrt.pop %v2233
    %v2236 = vrsqrt.pop %v2234
    %v2237 = vmul.f32 %v2221, %v2235
    %v2238 = vmul.f32 %v2222, %v2236
    %v2240 = vlaneseq
    %v2241 = vshrl.u32 %v2240, 7
    %v2242 = vsub.s32 0, %v2241
    %v2243 = vrot.slane %v2212, %v2242
    %v2245 = vmul.f32 %v2237, %v2243
    %v2246 = vmul.f32 %v2238, %v2243
    %s2247 = scalar_lea.vmem %s7, 64
    %v2248 = vld [vmem:[%s2247] sm:$0xff]
    %v2249 = vld [vmem:[%s2247 + $0x8] sm:$0xff]
    %v2250 = vld [vmem:[%s2247 + $0x10] sm:$0xff]
    %v2251 = vld [vmem:[%s2247 + $0x18] sm:$0xff]
    %v2252 = vld [vmem:[%s2247 + $0x20] sm:$0xff]
    %v2253 = vld [vmem:[%s2247 + $0x28] sm:$0xff]
    %v2254 = vld [vmem:[%s2247 + $0x30] sm:$0xff]
    %v2255 = vld [vmem:[%s2247 + $0x38] sm:$0xff]
    %v2257 = vsel %vm103, %v2245, 0
    %v2260 = vsel %vm103, %v2246, 0
    %2262 = vmatprep.subr.mxu0 %v2249
    %2263 = vmatpush1.msra.mxu0 %v2248
    %2264 = vmatprep.subr.mxu0 %v2251
    %2265 = vmatpush1.msra.mxu0 %v2250
    %2266 = vmatprep.subr.mxu0 %v2253
    %2267 = vmatpush1.msra.mxu0 %v2252
    %2268 = vmatprep.subr.mxu0 %v2255
    %2269 = vmatpush1.msra.mxu0 %v2254
    %2270 = vmatprep.subr.mxu0 0.0
    %2271 = vmatpush1.msra.mxu0 0.0
    %2272 = vmatprep.subr.mxu0 0.0
    %2273 = vmatpush1.msra.mxu0 0.0
    %2274 = vmatprep.subr.mxu0 0.0
    %2275 = vmatpush1.msra.mxu0 0.0
    %2276 = vmatprep.subr.mxu0 0.0
    %2277 = vmatpush1.msra.mxu0 0.0
    %2278 = vmatprep.subr.mxu0 0.0
    %2279 = vmatpush1.msra.mxu0 0.0
    %2280 = vmatprep.subr.mxu0 0.0
    %2281 = vmatpush1.msra.mxu0 0.0
    %2282 = vmatprep.subr.mxu0 0.0
    %2283 = vmatpush1.msra.mxu0 0.0
    %2284 = vmatprep.subr.mxu0 0.0
    %2285 = vmatpush1.msra.mxu0 0.0
    %2286 = vmatprep.subr.mxu0 0.0
    %2287 = vmatpush1.msra.mxu0 0.0
    %2288 = vmatprep.subr.mxu0 0.0
    %2289 = vmatpush1.msra.mxu0 0.0
    %2290 = vmatprep.subr.mxu0 0.0
    %2291 = vmatpush1.msra.mxu0 0.0
    %2292 = vmatprep.subr.mxu0 0.0
    %2293 = vmatpush1.msra.mxu0 0.0
    %2294 = vmatprep.subr.mxu0 0.0
    %2295 = vmatpush1.msra.mxu0 0.0
    %2296 = vmatprep.subr.mxu0 0.0
    %2297 = vmatpush1.msra.mxu0 0.0
    %2298 = vmatprep.subr.mxu0 0.0
    %2299 = vmatpush1.msra.mxu0 0.0
    %2300 = vmatprep.subr.mxu0 0.0
    %2301 = vmatpush1.msra.mxu0 0.0
    %2302 = vmatprep.subr.mxu0 0.0
    %2303 = vmatpush1.msra.mxu0 0.0
    %2304 = vmatprep.subr.mxu0 0.0
    %2305 = vmatpush1.msra.mxu0 0.0
    %2306 = vmatprep.subr.mxu0 0.0
    %2307 = vmatpush1.msra.mxu0 0.0
    %2308 = vmatprep.subr.mxu0 0.0
    %2309 = vmatpush1.msra.mxu0 0.0
    %2310 = vmatprep.subr.mxu0 0.0
    %2311 = vmatpush1.msra.mxu0 0.0
    %2312 = vmatprep.subr.mxu0 0.0
    %2313 = vmatpush1.msra.mxu0 0.0
    %2314 = vmatprep.subr.mxu0 0.0
    %2315 = vmatpush1.msra.mxu0 0.0
    %2316 = vmatprep.subr.mxu0 0.0
    %2317 = vmatpush1.msra.mxu0 0.0
    %2318 = vmatprep.subr.mxu0 0.0
    %2319 = vmatpush1.msra.mxu0 0.0
    %2320 = vmatprep.subr.mxu0 0.0
    %2321 = vmatpush1.msra.mxu0 0.0
    %2322 = vmatprep.subr.mxu0 0.0
    %2323 = vmatpush1.msra.mxu0 0.0
    %2324 = vmatprep.subr.mxu0 0.0
    %2325 = vmatpush1.msra.mxu0 0.0
    %2326 = vmatprep.mubr.f32.mxu0 0.0
    %2327 = vmatmul.mubr.f32.gmra.mrb[0].mxu0 %v2257
    %v2328 = vpop.f32.mrb[0].mxu0
    %v2329 = vadd.f32 0.0, %v2328
    %v2330 = vpop.f32.mrb[0].mxu0
    %v2331 = vadd.f32 0.0, %v2330
    %2332 = vmatprep.mubr.f32.mxu0 0.0
    %2333 = vmatmul.mubr.f32.gmra.mrb[0].mxu0 %v2260
    %v2334 = vpop.f32.mrb[0].mxu0
    %v2335 = vadd.f32 0.0, %v2334
    %v2336 = vpop.f32.mrb[0].mxu0
    %v2337 = vadd.f32 0.0, %v2336
    %2338 = vdwg.mxu0
    %v2339 = vmul.f32 %v2329, %v60
    %v2340 = vmul.f32 %v2335, %v61
    %2341 = vmatprep.subr.mxu0 0.0
    %2342 = vmatpush1.msra.mxu0 %v64
    %2343 = vmatprep.subr.mxu0 0.0
    %2344 = vmatpush1.msra.mxu0 %v65
    %2345 = vmatprep.subr.mxu0 0.0
    %2346 = vmatpush1.msra.mxu0 %v66
    %2347 = vmatprep.subr.mxu0 0.0
    %2348 = vmatpush1.msra.mxu0 %v67
    %2349 = vmatprep.subr.mxu0 0.0
    %2350 = vmatpush1.msra.mxu0 %v68
    %2351 = vmatprep.subr.mxu0 0.0
    %2352 = vmatpush1.msra.mxu0 %v69
    %2353 = vmatprep.subr.mxu0 0.0
    %2354 = vmatpush1.msra.mxu0 %v70
    %2355 = vmatprep.subr.mxu0 0.0
    %2356 = vmatpush1.msra.mxu0 %v71
    %2357 = vmatprep.subr.mxu0 0.0
    %2358 = vmatpush1.msra.mxu0 %v72
    %2359 = vmatprep.subr.mxu0 0.0
    %2360 = vmatpush1.msra.mxu0 %v73
    %2361 = vmatprep.subr.mxu0 0.0
    %2362 = vmatpush1.msra.mxu0 %v74
    %2363 = vmatprep.subr.mxu0 0.0
    %2364 = vmatpush1.msra.mxu0 %v75
    %2365 = vmatprep.subr.mxu0 0.0
    %2366 = vmatpush1.msra.mxu0 %v76
    %2367 = vmatprep.subr.mxu0 0.0
    %2368 = vmatpush1.msra.mxu0 %v77
    %2369 = vmatprep.subr.mxu0 0.0
    %2370 = vmatpush1.msra.mxu0 %v78
    %2371 = vmatprep.subr.mxu0 0.0
    %2372 = vmatpush1.msra.mxu0 %v79
    %2373 = vmatprep.subr.mxu0 0.0
    %2374 = vmatpush1.msra.mxu0 0.0
    %2375 = vmatprep.subr.mxu0 0.0
    %2376 = vmatpush1.msra.mxu0 0.0
    %2377 = vmatprep.subr.mxu0 0.0
    %2378 = vmatpush1.msra.mxu0 0.0
    %2379 = vmatprep.subr.mxu0 0.0
    %2380 = vmatpush1.msra.mxu0 0.0
    %2381 = vmatprep.subr.mxu0 0.0
    %2382 = vmatpush1.msra.mxu0 0.0
    %2383 = vmatprep.subr.mxu0 0.0
    %2384 = vmatpush1.msra.mxu0 0.0
    %2385 = vmatprep.subr.mxu0 0.0
    %2386 = vmatpush1.msra.mxu0 0.0
    %2387 = vmatprep.subr.mxu0 0.0
    %2388 = vmatpush1.msra.mxu0 0.0
    %2389 = vmatprep.subr.mxu0 0.0
    %2390 = vmatpush1.msra.mxu0 0.0
    %2391 = vmatprep.subr.mxu0 0.0
    %2392 = vmatpush1.msra.mxu0 0.0
    %2393 = vmatprep.subr.mxu0 0.0
    %2394 = vmatpush1.msra.mxu0 0.0
    %2395 = vmatprep.subr.mxu0 0.0
    %2396 = vmatpush1.msra.mxu0 0.0
    %2397 = vmatprep.subr.mxu0 0.0
    %2398 = vmatpush1.msra.mxu0 0.0
    %2399 = vmatprep.subr.mxu0 0.0
    %2400 = vmatpush1.msra.mxu0 0.0
    %2401 = vmatprep.subr.mxu0 0.0
    %2402 = vmatpush1.msra.mxu0 0.0
    %2403 = vmatprep.subr.mxu0 0.0
    %2404 = vmatpush1.msra.mxu0 0.0
    %2405 = vmatprep.mubr.f32.mxu0 0.0
    %2406 = vmatmul.mubr.f32.gmra.mrb[0].mxu0 %v2329
    %v2407 = vpop.f32.mrb[0].mxu0
    %v2408 = vadd.f32 0.0, %v2407
    %v2409 = vpop.f32.mrb[0].mxu0
    %2410 = vmatprep.mubr.f32.mxu0 0.0
    %2411 = vmatmul.mubr.f32.gmra.mrb[0].mxu0 %v2335
    %v2412 = vpop.f32.mrb[0].mxu0
    %v2413 = vadd.f32 0.0, %v2412
    %v2414 = vpop.f32.mrb[0].mxu0
    %2415 = vdwg.mxu0
    %v2416 = vmul.f32 %v2408, %v62
    %v2417 = vmul.f32 %v2413, %v63
    %v2418 = vadd.f32 %v2339, %v2416
    %v2419 = vadd.f32 %v2340, %v2417
    %v2420 = vmul.f32 %v2331, %v60
    %v2421 = vmul.f32 %v2337, %v61
    %v2423 = vsel %vm103, %v2331, 0
    %v2426 = vsel %vm103, %v2337, 0
    %2428 = vmatprep.subr.mxu0 0.0
    %2429 = vmatpush1.msra.mxu0 %v64
    %2430 = vmatprep.subr.mxu0 0.0
    %2431 = vmatpush1.msra.mxu0 %v65
    %2432 = vmatprep.subr.mxu0 0.0
    %2433 = vmatpush1.msra.mxu0 %v66
    %2434 = vmatprep.subr.mxu0 0.0
    %2435 = vmatpush1.msra.mxu0 %v67
    %2436 = vmatprep.subr.mxu0 0.0
    %2437 = vmatpush1.msra.mxu0 0.0
    %2438 = vmatprep.subr.mxu0 0.0
    %2439 = vmatpush1.msra.mxu0 0.0
    %2440 = vmatprep.subr.mxu0 0.0
    %2441 = vmatpush1.msra.mxu0 0.0
    %2442 = vmatprep.subr.mxu0 0.0
    %2443 = vmatpush1.msra.mxu0 0.0
    %2444 = vmatprep.subr.mxu0 0.0
    %2445 = vmatpush1.msra.mxu0 0.0
    %2446 = vmatprep.subr.mxu0 0.0
    %2447 = vmatpush1.msra.mxu0 0.0
    %2448 = vmatprep.subr.mxu0 0.0
    %2449 = vmatpush1.msra.mxu0 0.0
    %2450 = vmatprep.subr.mxu0 0.0
    %2451 = vmatpush1.msra.mxu0 0.0
    %2452 = vmatprep.subr.mxu0 0.0
    %2453 = vmatpush1.msra.mxu0 0.0
    %2454 = vmatprep.subr.mxu0 0.0
    %2455 = vmatpush1.msra.mxu0 0.0
    %2456 = vmatprep.subr.mxu0 0.0
    %2457 = vmatpush1.msra.mxu0 0.0
    %2458 = vmatprep.subr.mxu0 0.0
    %2459 = vmatpush1.msra.mxu0 0.0
    %2460 = vmatprep.subr.mxu0 0.0
    %2461 = vmatpush1.msra.mxu0 0.0
    %2462 = vmatprep.subr.mxu0 0.0
    %2463 = vmatpush1.msra.mxu0 0.0
    %2464 = vmatprep.subr.mxu0 0.0
    %2465 = vmatpush1.msra.mxu0 0.0
    %2466 = vmatprep.subr.mxu0 0.0
    %2467 = vmatpush1.msra.mxu0 0.0
    %2468 = vmatprep.subr.mxu0 0.0
    %2469 = vmatpush1.msra.mxu0 0.0
    %2470 = vmatprep.subr.mxu0 0.0
    %2471 = vmatpush1.msra.mxu0 0.0
    %2472 = vmatprep.subr.mxu0 0.0
    %2473 = vmatpush1.msra.mxu0 0.0
    %2474 = vmatprep.subr.mxu0 0.0
    %2475 = vmatpush1.msra.mxu0 0.0
    %2476 = vmatprep.subr.mxu0 0.0
    %2477 = vmatpush1.msra.mxu0 0.0
    %2478 = vmatprep.subr.mxu0 0.0
    %2479 = vmatpush1.msra.mxu0 0.0
    %2480 = vmatprep.subr.mxu0 0.0
    %2481 = vmatpush1.msra.mxu0 0.0
    %2482 = vmatprep.subr.mxu0 0.0
    %2483 = vmatpush1.msra.mxu0 0.0
    %2484 = vmatprep.subr.mxu0 0.0
    %2485 = vmatpush1.msra.mxu0 0.0
    %2486 = vmatprep.subr.mxu0 0.0
    %2487 = vmatpush1.msra.mxu0 0.0
    %2488 = vmatprep.subr.mxu0 0.0
    %2489 = vmatpush1.msra.mxu0 0.0
    %2490 = vmatprep.subr.mxu0 0.0
    %2491 = vmatpush1.msra.mxu0 0.0
    %2492 = vmatprep.mubr.f32.mxu0 0.0
    %2493 = vmatmul.mubr.f32.gmra.mrb[0].mxu0 %v2423
    %v2494 = vpop.f32.mrb[0].mxu0
    %v2495 = vadd.f32 0.0, %v2494
    %v2496 = vpop.f32.mrb[0].mxu0
    %2497 = vmatprep.mubr.f32.mxu0 0.0
    %2498 = vmatmul.mubr.f32.gmra.mrb[0].mxu0 %v2426
    %v2499 = vpop.f32.mrb[0].mxu0
    %v2500 = vadd.f32 0.0, %v2499
    %v2501 = vpop.f32.mrb[0].mxu0
    %2502 = vdwg.mxu0
    %v2503 = vmul.f32 %v2495, %v62
    %v2504 = vmul.f32 %v2500, %v63
    %v2505 = vadd.f32 %v2420, %v2503
    %v2506 = vadd.f32 %v2421, %v2504
    %v2507 = vmul.f32 %v2418, %v2418
    %v2508 = vmul.f32 %v2419, %v2419
    %2509 = vmatprep.subr.mxu0 0.0
    %2510 = vmatpush1.msra.mxu0 %v80
    %2511 = vmatprep.subr.mxu0 0.0
    %2512 = vmatpush1.msra.mxu0 %v81
    %2513 = vmatprep.subr.mxu0 0.0
    %2514 = vmatpush1.msra.mxu0 %v82
    %2515 = vmatprep.subr.mxu0 0.0
    %2516 = vmatpush1.msra.mxu0 %v83
    %2517 = vmatprep.subr.mxu0 0.0
    %2518 = vmatpush1.msra.mxu0 %v84
    %2519 = vmatprep.subr.mxu0 0.0
    %2520 = vmatpush1.msra.mxu0 %v85
    %2521 = vmatprep.subr.mxu0 0.0
    %2522 = vmatpush1.msra.mxu0 %v86
    %2523 = vmatprep.subr.mxu0 0.0
    %2524 = vmatpush1.msra.mxu0 %v87
    %2525 = vmatprep.subr.mxu0 0.0
    %2526 = vmatpush1.msra.mxu0 %v88
    %2527 = vmatprep.subr.mxu0 0.0
    %2528 = vmatpush1.msra.mxu0 %v89
    %2529 = vmatprep.subr.mxu0 0.0
    %2530 = vmatpush1.msra.mxu0 %v90
    %2531 = vmatprep.subr.mxu0 0.0
    %2532 = vmatpush1.msra.mxu0 %v91
    %2533 = vmatprep.subr.mxu0 0.0
    %2534 = vmatpush1.msra.mxu0 %v92
    %2535 = vmatprep.subr.mxu0 0.0
    %2536 = vmatpush1.msra.mxu0 %v93
    %2537 = vmatprep.subr.mxu0 0.0
    %2538 = vmatpush1.msra.mxu0 %v94
    %2539 = vmatprep.subr.mxu0 0.0
    %2540 = vmatpush1.msra.mxu0 %v95
    %2541 = vmatprep.subr.mxu0 0.0
    %2542 = vmatpush1.msra.mxu0 0.0
    %2543 = vmatprep.subr.mxu0 0.0
    %2544 = vmatpush1.msra.mxu0 0.0
    %2545 = vmatprep.subr.mxu0 0.0
    %2546 = vmatpush1.msra.mxu0 0.0
    %2547 = vmatprep.subr.mxu0 0.0
    %2548 = vmatpush1.msra.mxu0 0.0
    %2549 = vmatprep.subr.mxu0 0.0
    %2550 = vmatpush1.msra.mxu0 0.0
    %2551 = vmatprep.subr.mxu0 0.0
    %2552 = vmatpush1.msra.mxu0 0.0
    %2553 = vmatprep.subr.mxu0 0.0
    %2554 = vmatpush1.msra.mxu0 0.0
    %2555 = vmatprep.subr.mxu0 0.0
    %2556 = vmatpush1.msra.mxu0 0.0
    %2557 = vmatprep.subr.mxu0 0.0
    %2558 = vmatpush1.msra.mxu0 0.0
    %2559 = vmatprep.subr.mxu0 0.0
    %2560 = vmatpush1.msra.mxu0 0.0
    %2561 = vmatprep.subr.mxu0 0.0
    %2562 = vmatpush1.msra.mxu0 0.0
    %2563 = vmatprep.subr.mxu0 0.0
    %2564 = vmatpush1.msra.mxu0 0.0
    %2565 = vmatprep.subr.mxu0 0.0
    %2566 = vmatpush1.msra.mxu0 0.0
    %2567 = vmatprep.subr.mxu0 0.0
    %2568 = vmatpush1.msra.mxu0 0.0
    %2569 = vmatprep.subr.mxu0 0.0
    %2570 = vmatpush1.msra.mxu0 0.0
    %2571 = vmatprep.subr.mxu0 0.0
    %2572 = vmatpush1.msra.mxu0 0.0
    %2573 = vmatprep.mubr.f32.mxu0 0.0
    %2574 = vmatmul.mubr.f32.gmra.mrb[0].mxu0 %v2507
    %v2575 = vpop.f32.mrb[0].mxu0
    %v2576 = vadd.f32 0.0, %v2575
    %v2577 = vpop.f32.mrb[0].mxu0
    %2578 = vmatprep.mubr.f32.mxu0 0.0
    %2579 = vmatmul.mubr.f32.gmra.mrb[0].mxu0 %v2508
    %v2580 = vpop.f32.mrb[0].mxu0
    %v2581 = vadd.f32 0.0, %v2580
    %v2582 = vpop.f32.mrb[0].mxu0
    %2583 = vdwg.mxu0
    %v2584 = vmax.f32 %v2576, 1e-24
    %v2585 = vmax.f32 %v2581, 1e-24
    %v2586 = vrsqrt.pop %v2584
    %v2587 = vrsqrt.pop %v2585
    %v2588 = vmul.f32 %v2418, %v2586
    %v2589 = vmul.f32 %v2419, %v2587
    %v2590 = vmul.f32 %v2588, 4.0
    %v2591 = vmul.f32 %v2589, 4.0
    %v2592 = vmul.f32 %v2505, %v2505
    %v2593 = vmul.f32 %v2506, %v2506
    %v2594 = vsel %vm103, %v2592, 0.0
    %2595 = vadd.xlane.f32.xlu0 %v2594
    %v2596 = vpop.xlane.xlu0 %2595
    %v2597 = vsel %vm103, %v2593, 0.0
    %2598 = vadd.xlane.f32.xlu0 %v2597
    %v2599 = vpop.xlane.xlu0 %2598
    %v2600 = vmax.f32 %v2596, 1e-24
    %v2601 = vmax.f32 %v2599, 1e-24
    %v2602 = vrsqrt.pop %v2600
    %v2603 = vrsqrt.pop %v2601
    %v2604 = vmul.f32 %v2505, %v2602
    %v2605 = vmul.f32 %v2506, %v2603
    %v2606 = vmul.f32 %v2604, 4.0
    %v2607 = vmul.f32 %v2605, 4.0
    %s2608 = scalar_lea.vmem %s8, 2
    %v2609 = vld [vmem:[%s2608] sm:$0x3]
    %v2610 = vmul.f32 %v2609, %v2609
    %v2611 = vsel %vm501, %v2610, 0.0
    %2612 = vadd.xlane.f32.xlu0 %v2611
    %v2613 = vpop.xlane.xlu0 %2612
    %v2614 = vmax.f32 %v2613, 1e-24
    %v2615 = vrsqrt.pop %v2614
    %v2616 = vmul.f32 %v2609, %v2615
    %v2617 = vmul.f32 %v2616, 4.0
    %v2619 = vrot.slane %v2606, 7
    %v2621 = vsel %vm512, %v2617, %v2619
    %v2623 = vrot.slane %v2609, 1
    %v2625 = vrot.slane %v2331, 7
    %2626 = vrot.lane.b32.xlu0 %v2625, 96
    %v2627 = vpop.permute.xlu0 %2626
    %v2629 = vsel %vm512, %v2623, %v2627
    %v2631 = vsel %vm103, %v2590, 0
    %v2634 = vsel %vm103, %v2621, 0
    %v2636 = vsel %vm103, %v2619, 0
    %2638 = vmatprep.subr.mxu0 0.0
    %2639 = vmatpush1.xpose.msra.mxu0 %v2634
    %2640 = vmatprep.subr.mxu0 0.0
    %2641 = vmatpush1.xpose.msra.mxu0 %v2636
    %2642 = vmatprep.subr.mxu0 0.0
    %2643 = vmatpush1.xpose.msra.mxu0 0.0
    %2644 = vmatprep.subr.mxu0 0.0
    %2645 = vmatpush1.xpose.msra.mxu0 0.0
    %2646 = vmatprep.subr.mxu0 0.0
    %2647 = vmatpush1.xpose.msra.mxu0 0.0
    %2648 = vmatprep.subr.mxu0 0.0
    %2649 = vmatpush1.xpose.msra.mxu0 0.0
    %2650 = vmatprep.subr.mxu0 0.0
    %2651 = vmatpush1.xpose.msra.mxu0 0.0
    %2652 = vmatprep.subr.mxu0 0.0
    %2653 = vmatpush1.xpose.msra.mxu0 0.0
    %2654 = vmatprep.subr.mxu0 0.0
    %2655 = vmatpush1.xpose.msra.mxu0 0.0
    %2656 = vmatprep.subr.mxu0 0.0
    %2657 = vmatpush1.xpose.msra.mxu0 0.0
    %2658 = vmatprep.subr.mxu0 0.0
    %2659 = vmatpush1.xpose.msra.mxu0 0.0
    %2660 = vmatprep.subr.mxu0 0.0
    %2661 = vmatpush1.xpose.msra.mxu0 0.0
    %2662 = vmatprep.subr.mxu0 0.0
    %2663 = vmatpush1.xpose.msra.mxu0 0.0
    %2664 = vmatprep.subr.mxu0 0.0
    %2665 = vmatpush1.xpose.msra.mxu0 0.0
    %2666 = vmatprep.subr.mxu0 0.0
    %2667 = vmatpush1.xpose.msra.mxu0 0.0
    %2668 = vmatprep.subr.mxu0 0.0
    %2669 = vmatpush1.xpose.msra.mxu0 0.0
    %2670 = vmatprep.subr.mxu0 0.0
    %2671 = vmatpush1.xpose.msra.mxu0 0.0
    %2672 = vmatprep.subr.mxu0 0.0
    %2673 = vmatpush1.xpose.msra.mxu0 0.0
    %2674 = vmatprep.subr.mxu0 0.0
    %2675 = vmatpush1.xpose.msra.mxu0 0.0
    %2676 = vmatprep.subr.mxu0 0.0
    %2677 = vmatpush1.xpose.msra.mxu0 0.0
    %2678 = vmatprep.subr.mxu0 0.0
    %2679 = vmatpush1.xpose.msra.mxu0 0.0
    %2680 = vmatprep.subr.mxu0 0.0
    %2681 = vmatpush1.xpose.msra.mxu0 0.0
    %2682 = vmatprep.subr.mxu0 0.0
    %2683 = vmatpush1.xpose.msra.mxu0 0.0
    %2684 = vmatprep.subr.mxu0 0.0
    %2685 = vmatpush1.xpose.msra.mxu0 0.0
    %2686 = vmatprep.subr.mxu0 0.0
    %2687 = vmatpush1.xpose.msra.mxu0 0.0
    %2688 = vmatprep.subr.mxu0 0.0
    %2689 = vmatpush1.xpose.msra.mxu0 0.0
    %2690 = vmatprep.subr.mxu0 0.0
    %2691 = vmatpush1.xpose.msra.mxu0 0.0
    %2692 = vmatprep.subr.mxu0 0.0
    %2693 = vmatpush1.xpose.msra.mxu0 0.0
    %2694 = vmatprep.subr.mxu0 0.0
    %2695 = vmatpush1.xpose.msra.mxu0 0.0
    %2696 = vmatprep.subr.mxu0 0.0
    %2697 = vmatpush1.xpose.msra.mxu0 0.0
    %2698 = vmatprep.subr.mxu0 0.0
    %2699 = vmatpush1.xpose.msra.mxu0 0.0
    %2700 = vmatprep.subr.mxu0 0.0
    %2701 = vmatpush1.xpose.msra.mxu0 0.0
    %2702 = vmatprep.mubr.f32.mxu0 0.0
    %2703 = vmatmul.mubr.f32.gmra.mrb[0].mxu0 %v2631
    %v2704 = vpop.f32.mrb[0].mxu0
    %v2705 = vadd.f32 %v56, %v2704
    %v2706 = vpop.f32.mrb[0].mxu0
    %2707 = vdwg.mxu0
    %v2708 = vsel %vm101, -3.4028235e+38, %v2705
    %v2709 = vsel %vm601, %v2708, -inf
    %2710 = vmax.xlane.f32.xlu0 %v2709
    %v2711 = vpop.xlane.xlu0 %2710
    %v2712 = vsub.f32 %v2708, %v2711
    %v2713 = vmul.f32 %v2712, 1.442695
    %v2714 = vpow.pop %v2713
    %v2715 = vsel %vm601, %v2714, 0.0
    %2716 = vadd.xlane.f32.xlu0 %v2715
    %v2717 = vpop.xlane.xlu0 %2716
    %v2718 = vrcp.pop %v2717
    %v2719 = vmul.f32 %v2714, %v2718
    %v2721 = vsel %vm601, %v2719, 0
    %v2723 = vsel %vm512, %v2627, 0
    %2725 = vmatprep.subr.mxu0 0.0
    %2726 = vmatpush1.msra.mxu0 %v2629
    %2727 = vmatprep.subr.mxu0 0.0
    %2728 = vmatpush1.msra.mxu0 %v2723
    %2729 = vmatprep.subr.mxu0 0.0
    %2730 = vmatpush1.msra.mxu0 0.0
    %2731 = vmatprep.subr.mxu0 0.0
    %2732 = vmatpush1.msra.mxu0 0.0
    %2733 = vmatprep.subr.mxu0 0.0
    %2734 = vmatpush1.msra.mxu0 0.0
    %2735 = vmatprep.subr.mxu0 0.0
    %2736 = vmatpush1.msra.mxu0 0.0
    %2737 = vmatprep.subr.mxu0 0.0
    %2738 = vmatpush1.msra.mxu0 0.0
    %2739 = vmatprep.subr.mxu0 0.0
    %2740 = vmatpush1.msra.mxu0 0.0
    %2741 = vmatprep.subr.mxu0 0.0
    %2742 = vmatpush1.msra.mxu0 0.0
    %2743 = vmatprep.subr.mxu0 0.0
    %2744 = vmatpush1.msra.mxu0 0.0
    %2745 = vmatprep.subr.mxu0 0.0
    %2746 = vmatpush1.msra.mxu0 0.0
    %2747 = vmatprep.subr.mxu0 0.0
    %2748 = vmatpush1.msra.mxu0 0.0
    %2749 = vmatprep.subr.mxu0 0.0
    %2750 = vmatpush1.msra.mxu0 0.0
    %2751 = vmatprep.subr.mxu0 0.0
    %2752 = vmatpush1.msra.mxu0 0.0
    %2753 = vmatprep.subr.mxu0 0.0
    %2754 = vmatpush1.msra.mxu0 0.0
    %2755 = vmatprep.subr.mxu0 0.0
    %2756 = vmatpush1.msra.mxu0 0.0
    %2757 = vmatprep.subr.mxu0 0.0
    %2758 = vmatpush1.msra.mxu0 0.0
    %2759 = vmatprep.subr.mxu0 0.0
    %2760 = vmatpush1.msra.mxu0 0.0
    %2761 = vmatprep.subr.mxu0 0.0
    %2762 = vmatpush1.msra.mxu0 0.0
    %2763 = vmatprep.subr.mxu0 0.0
    %2764 = vmatpush1.msra.mxu0 0.0
    %2765 = vmatprep.subr.mxu0 0.0
    %2766 = vmatpush1.msra.mxu0 0.0
    %2767 = vmatprep.subr.mxu0 0.0
    %2768 = vmatpush1.msra.mxu0 0.0
    %2769 = vmatprep.subr.mxu0 0.0
    %2770 = vmatpush1.msra.mxu0 0.0
    %2771 = vmatprep.subr.mxu0 0.0
    %2772 = vmatpush1.msra.mxu0 0.0
    %2773 = vmatprep.subr.mxu0 0.0
    %2774 = vmatpush1.msra.mxu0 0.0
    %2775 = vmatprep.subr.mxu0 0.0
    %2776 = vmatpush1.msra.mxu0 0.0
    %2777 = vmatprep.subr.mxu0 0.0
    %2778 = vmatpush1.msra.mxu0 0.0
    %2779 = vmatprep.subr.mxu0 0.0
    %2780 = vmatpush1.msra.mxu0 0.0
    %2781 = vmatprep.subr.mxu0 0.0
    %2782 = vmatpush1.msra.mxu0 0.0
    %2783 = vmatprep.subr.mxu0 0.0
    %2784 = vmatpush1.msra.mxu0 0.0
    %2785 = vmatprep.subr.mxu0 0.0
    %2786 = vmatpush1.msra.mxu0 0.0
    %2787 = vmatprep.subr.mxu0 0.0
    %2788 = vmatpush1.msra.mxu0 0.0
    %2789 = vmatprep.mubr.f32.mxu0 0.0
    %2790 = vmatmul.mubr.f32.gmra.mrb[0].mxu0 %v2721
    %v2791 = vpop.f32.mrb[0].mxu0
    %v2792 = vadd.f32 0.0, %v2791
    %v2793 = vpop.f32.mrb[0].mxu0
    %2794 = vdwg.mxu0
    %2795 = vrot.lane.b32.xlu0 %v2590, 96
    %v2796 = vpop.permute.xlu0 %2795
    %v2797 = vsel %vm103, %v2796, 0
    %2799 = vmatprep.subr.mxu0 0.0
    %2800 = vmatpush1.xpose.msra.mxu0 %v2634
    %2801 = vmatprep.subr.mxu0 0.0
    %2802 = vmatpush1.xpose.msra.mxu0 %v2636
    %2803 = vmatprep.subr.mxu0 0.0
    %2804 = vmatpush1.xpose.msra.mxu0 0.0
    %2805 = vmatprep.subr.mxu0 0.0
    %2806 = vmatpush1.xpose.msra.mxu0 0.0
    %2807 = vmatprep.subr.mxu0 0.0
    %2808 = vmatpush1.xpose.msra.mxu0 0.0
    %2809 = vmatprep.subr.mxu0 0.0
    %2810 = vmatpush1.xpose.msra.mxu0 0.0
    %2811 = vmatprep.subr.mxu0 0.0
    %2812 = vmatpush1.xpose.msra.mxu0 0.0
    %2813 = vmatprep.subr.mxu0 0.0
    %2814 = vmatpush1.xpose.msra.mxu0 0.0
    %2815 = vmatprep.subr.mxu0 0.0
    %2816 = vmatpush1.xpose.msra.mxu0 0.0
    %2817 = vmatprep.subr.mxu0 0.0
    %2818 = vmatpush1.xpose.msra.mxu0 0.0
    %2819 = vmatprep.subr.mxu0 0.0
    %2820 = vmatpush1.xpose.msra.mxu0 0.0
    %2821 = vmatprep.subr.mxu0 0.0
    %2822 = vmatpush1.xpose.msra.mxu0 0.0
    %2823 = vmatprep.subr.mxu0 0.0
    %2824 = vmatpush1.xpose.msra.mxu0 0.0
    %2825 = vmatprep.subr.mxu0 0.0
    %2826 = vmatpush1.xpose.msra.mxu0 0.0
    %2827 = vmatprep.subr.mxu0 0.0
    %2828 = vmatpush1.xpose.msra.mxu0 0.0
    %2829 = vmatprep.subr.mxu0 0.0
    %2830 = vmatpush1.xpose.msra.mxu0 0.0
    %2831 = vmatprep.subr.mxu0 0.0
    %2832 = vmatpush1.xpose.msra.mxu0 0.0
    %2833 = vmatprep.subr.mxu0 0.0
    %2834 = vmatpush1.xpose.msra.mxu0 0.0
    %2835 = vmatprep.subr.mxu0 0.0
    %2836 = vmatpush1.xpose.msra.mxu0 0.0
    %2837 = vmatprep.subr.mxu0 0.0
    %2838 = vmatpush1.xpose.msra.mxu0 0.0
    %2839 = vmatprep.subr.mxu0 0.0
    %2840 = vmatpush1.xpose.msra.mxu0 0.0
    %2841 = vmatprep.subr.mxu0 0.0
    %2842 = vmatpush1.xpose.msra.mxu0 0.0
    %2843 = vmatprep.subr.mxu0 0.0
    %2844 = vmatpush1.xpose.msra.mxu0 0.0
    %2845 = vmatprep.subr.mxu0 0.0
    %2846 = vmatpush1.xpose.msra.mxu0 0.0
    %2847 = vmatprep.subr.mxu0 0.0
    %2848 = vmatpush1.xpose.msra.mxu0 0.0
    %2849 = vmatprep.subr.mxu0 0.0
    %2850 = vmatpush1.xpose.msra.mxu0 0.0
    %2851 = vmatprep.subr.mxu0 0.0
    %2852 = vmatpush1.xpose.msra.mxu0 0.0
    %2853 = vmatprep.subr.mxu0 0.0
    %2854 = vmatpush1.xpose.msra.mxu0 0.0
    %2855 = vmatprep.subr.mxu0 0.0
    %2856 = vmatpush1.xpose.msra.mxu0 0.0
    %2857 = vmatprep.subr.mxu0 0.0
    %2858 = vmatpush1.xpose.msra.mxu0 0.0
    %2859 = vmatprep.subr.mxu0 0.0
    %2860 = vmatpush1.xpose.msra.mxu0 0.0
    %2861 = vmatprep.subr.mxu0 0.0
    %2862 = vmatpush1.xpose.msra.mxu0 0.0
    %2863 = vmatprep.mubr.f32.mxu0 0.0
    %2864 = vmatmul.mubr.f32.gmra.mrb[0].mxu0 %v2797
    %v2865 = vpop.f32.mrb[0].mxu0
    %v2866 = vadd.f32 %v57, %v2865
    %v2867 = vpop.f32.mrb[0].mxu0
    %2868 = vdwg.mxu0
    %v2869 = vsel %vm101, -3.4028235e+38, %v2866
    %v2870 = vsel %vm601, %v2869, -inf
    %2871 = vmax.xlane.f32.xlu0 %v2870
    %v2872 = vpop.xlane.xlu0 %2871
    %v2873 = vsub.f32 %v2869, %v2872
    %v2874 = vmul.f32 %v2873, 1.442695
    %v2875 = vpow.pop %v2874
    %v2876 = vsel %vm601, %v2875, 0.0
    %2877 = vadd.xlane.f32.xlu0 %v2876
    %v2878 = vpop.xlane.xlu0 %2877
    %v2879 = vrcp.pop %v2878
    %v2880 = vmul.f32 %v2875, %v2879
    %v2882 = vsel %vm601, %v2880, 0
    %2884 = vmatprep.subr.mxu0 0.0
    %2885 = vmatpush1.msra.mxu0 %v2629
    %2886 = vmatprep.subr.mxu0 0.0
    %2887 = vmatpush1.msra.mxu0 %v2723
    %2888 = vmatprep.subr.mxu0 0.0
    %2889 = vmatpush1.msra.mxu0 0.0
    %2890 = vmatprep.subr.mxu0 0.0
    %2891 = vmatpush1.msra.mxu0 0.0
    %2892 = vmatprep.subr.mxu0 0.0
    %2893 = vmatpush1.msra.mxu0 0.0
    %2894 = vmatprep.subr.mxu0 0.0
    %2895 = vmatpush1.msra.mxu0 0.0
    %2896 = vmatprep.subr.mxu0 0.0
    %2897 = vmatpush1.msra.mxu0 0.0
    %2898 = vmatprep.subr.mxu0 0.0
    %2899 = vmatpush1.msra.mxu0 0.0
    %2900 = vmatprep.subr.mxu0 0.0
    %2901 = vmatpush1.msra.mxu0 0.0
    %2902 = vmatprep.subr.mxu0 0.0
    %2903 = vmatpush1.msra.mxu0 0.0
    %2904 = vmatprep.subr.mxu0 0.0
    %2905 = vmatpush1.msra.mxu0 0.0
    %2906 = vmatprep.subr.mxu0 0.0
    %2907 = vmatpush1.msra.mxu0 0.0
    %2908 = vmatprep.subr.mxu0 0.0
    %2909 = vmatpush1.msra.mxu0 0.0
    %2910 = vmatprep.subr.mxu0 0.0
    %2911 = vmatpush1.msra.mxu0 0.0
    %2912 = vmatprep.subr.mxu0 0.0
    %2913 = vmatpush1.msra.mxu0 0.0
    %2914 = vmatprep.subr.mxu0 0.0
    %2915 = vmatpush1.msra.mxu0 0.0
    %2916 = vmatprep.subr.mxu0 0.0
    %2917 = vmatpush1.msra.mxu0 0.0
    %2918 = vmatprep.subr.mxu0 0.0
    %2919 = vmatpush1.msra.mxu0 0.0
    %2920 = vmatprep.subr.mxu0 0.0
    %2921 = vmatpush1.msra.mxu0 0.0
    %2922 = vmatprep.subr.mxu0 0.0
    %2923 = vmatpush1.msra.mxu0 0.0
    %2924 = vmatprep.subr.mxu0 0.0
    %2925 = vmatpush1.msra.mxu0 0.0
    %2926 = vmatprep.subr.mxu0 0.0
    %2927 = vmatpush1.msra.mxu0 0.0
    %2928 = vmatprep.subr.mxu0 0.0
    %2929 = vmatpush1.msra.mxu0 0.0
    %2930 = vmatprep.subr.mxu0 0.0
    %2931 = vmatpush1.msra.mxu0 0.0
    %2932 = vmatprep.subr.mxu0 0.0
    %2933 = vmatpush1.msra.mxu0 0.0
    %2934 = vmatprep.subr.mxu0 0.0
    %2935 = vmatpush1.msra.mxu0 0.0
    %2936 = vmatprep.subr.mxu0 0.0
    %2937 = vmatpush1.msra.mxu0 0.0
    %2938 = vmatprep.subr.mxu0 0.0
    %2939 = vmatpush1.msra.mxu0 0.0
    %2940 = vmatprep.subr.mxu0 0.0
    %2941 = vmatpush1.msra.mxu0 0.0
    %2942 = vmatprep.subr.mxu0 0.0
    %2943 = vmatpush1.msra.mxu0 0.0
    %2944 = vmatprep.subr.mxu0 0.0
    %2945 = vmatpush1.msra.mxu0 0.0
    %2946 = vmatprep.subr.mxu0 0.0
    %2947 = vmatpush1.msra.mxu0 0.0
    %2948 = vmatprep.mubr.f32.mxu0 0.0
    %2949 = vmatmul.mubr.f32.gmra.mrb[0].mxu0 %v2882
    %v2950 = vpop.f32.mrb[0].mxu0
    %v2951 = vadd.f32 0.0, %v2950
    %v2952 = vpop.f32.mrb[0].mxu0
    %2953 = vdwg.mxu0
    %2954 = vrot.lane.b32.xlu0 %v2590, 64
    %v2955 = vpop.permute.xlu0 %2954
    %v2956 = vsel %vm103, %v2955, 0
    %2958 = vmatprep.subr.mxu0 0.0
    %2959 = vmatpush1.xpose.msra.mxu0 %v2634
    %2960 = vmatprep.subr.mxu0 0.0
    %2961 = vmatpush1.xpose.msra.mxu0 %v2636
    %2962 = vmatprep.subr.mxu0 0.0
    %2963 = vmatpush1.xpose.msra.mxu0 0.0
    %2964 = vmatprep.subr.mxu0 0.0
    %2965 = vmatpush1.xpose.msra.mxu0 0.0
    %2966 = vmatprep.subr.mxu0 0.0
    %2967 = vmatpush1.xpose.msra.mxu0 0.0
    %2968 = vmatprep.subr.mxu0 0.0
    %2969 = vmatpush1.xpose.msra.mxu0 0.0
    %2970 = vmatprep.subr.mxu0 0.0
    %2971 = vmatpush1.xpose.msra.mxu0 0.0
    %2972 = vmatprep.subr.mxu0 0.0
    %2973 = vmatpush1.xpose.msra.mxu0 0.0
    %2974 = vmatprep.subr.mxu0 0.0
    %2975 = vmatpush1.xpose.msra.mxu0 0.0
    %2976 = vmatprep.subr.mxu0 0.0
    %2977 = vmatpush1.xpose.msra.mxu0 0.0
    %2978 = vmatprep.subr.mxu0 0.0
    %2979 = vmatpush1.xpose.msra.mxu0 0.0
    %2980 = vmatprep.subr.mxu0 0.0
    %2981 = vmatpush1.xpose.msra.mxu0 0.0
    %2982 = vmatprep.subr.mxu0 0.0
    %2983 = vmatpush1.xpose.msra.mxu0 0.0
    %2984 = vmatprep.subr.mxu0 0.0
    %2985 = vmatpush1.xpose.msra.mxu0 0.0
    %2986 = vmatprep.subr.mxu0 0.0
    %2987 = vmatpush1.xpose.msra.mxu0 0.0
    %2988 = vmatprep.subr.mxu0 0.0
    %2989 = vmatpush1.xpose.msra.mxu0 0.0
    %2990 = vmatprep.subr.mxu0 0.0
    %2991 = vmatpush1.xpose.msra.mxu0 0.0
    %2992 = vmatprep.subr.mxu0 0.0
    %2993 = vmatpush1.xpose.msra.mxu0 0.0
    %2994 = vmatprep.subr.mxu0 0.0
    %2995 = vmatpush1.xpose.msra.mxu0 0.0
    %2996 = vmatprep.subr.mxu0 0.0
    %2997 = vmatpush1.xpose.msra.mxu0 0.0
    %2998 = vmatprep.subr.mxu0 0.0
    %2999 = vmatpush1.xpose.msra.mxu0 0.0
    %3000 = vmatprep.subr.mxu0 0.0
    %3001 = vmatpush1.xpose.msra.mxu0 0.0
    %3002 = vmatprep.subr.mxu0 0.0
    %3003 = vmatpush1.xpose.msra.mxu0 0.0
    %3004 = vmatprep.subr.mxu0 0.0
    %3005 = vmatpush1.xpose.msra.mxu0 0.0
    %3006 = vmatprep.subr.mxu0 0.0
    %3007 = vmatpush1.xpose.msra.mxu0 0.0
    %3008 = vmatprep.subr.mxu0 0.0
    %3009 = vmatpush1.xpose.msra.mxu0 0.0
    %3010 = vmatprep.subr.mxu0 0.0
    %3011 = vmatpush1.xpose.msra.mxu0 0.0
    %3012 = vmatprep.subr.mxu0 0.0
    %3013 = vmatpush1.xpose.msra.mxu0 0.0
    %3014 = vmatprep.subr.mxu0 0.0
    %3015 = vmatpush1.xpose.msra.mxu0 0.0
    %3016 = vmatprep.subr.mxu0 0.0
    %3017 = vmatpush1.xpose.msra.mxu0 0.0
    %3018 = vmatprep.subr.mxu0 0.0
    %3019 = vmatpush1.xpose.msra.mxu0 0.0
    %3020 = vmatprep.subr.mxu0 0.0
    %3021 = vmatpush1.xpose.msra.mxu0 0.0
    %3022 = vmatprep.mubr.f32.mxu0 0.0
    %3023 = vmatmul.mubr.f32.gmra.mrb[0].mxu0 %v2956
    %v3024 = vpop.f32.mrb[0].mxu0
    %v3025 = vadd.f32 %v58, %v3024
    %v3026 = vpop.f32.mrb[0].mxu0
    %3027 = vdwg.mxu0
    %v3028 = vsel %vm101, -3.4028235e+38, %v3025
    %v3029 = vsel %vm601, %v3028, -inf
    %3030 = vmax.xlane.f32.xlu0 %v3029
    %v3031 = vpop.xlane.xlu0 %3030
    %v3032 = vsub.f32 %v3028, %v3031
    %v3033 = vmul.f32 %v3032, 1.442695
    %v3034 = vpow.pop %v3033
    %v3035 = vsel %vm601, %v3034, 0.0
    %3036 = vadd.xlane.f32.xlu0 %v3035
    %v3037 = vpop.xlane.xlu0 %3036
    %v3038 = vrcp.pop %v3037
    %v3039 = vmul.f32 %v3034, %v3038
    %v3041 = vsel %vm601, %v3039, 0
    %3043 = vmatprep.subr.mxu0 0.0
    %3044 = vmatpush1.msra.mxu0 %v2629
    %3045 = vmatprep.subr.mxu0 0.0
    %3046 = vmatpush1.msra.mxu0 %v2723
    %3047 = vmatprep.subr.mxu0 0.0
    %3048 = vmatpush1.msra.mxu0 0.0
    %3049 = vmatprep.subr.mxu0 0.0
    %3050 = vmatpush1.msra.mxu0 0.0
    %3051 = vmatprep.subr.mxu0 0.0
    %3052 = vmatpush1.msra.mxu0 0.0
    %3053 = vmatprep.subr.mxu0 0.0
    %3054 = vmatpush1.msra.mxu0 0.0
    %3055 = vmatprep.subr.mxu0 0.0
    %3056 = vmatpush1.msra.mxu0 0.0
    %3057 = vmatprep.subr.mxu0 0.0
    %3058 = vmatpush1.msra.mxu0 0.0
    %3059 = vmatprep.subr.mxu0 0.0
    %3060 = vmatpush1.msra.mxu0 0.0
    %3061 = vmatprep.subr.mxu0 0.0
    %3062 = vmatpush1.msra.mxu0 0.0
    %3063 = vmatprep.subr.mxu0 0.0
    %3064 = vmatpush1.msra.mxu0 0.0
    %3065 = vmatprep.subr.mxu0 0.0
    %3066 = vmatpush1.msra.mxu0 0.0
    %3067 = vmatprep.subr.mxu0 0.0
    %3068 = vmatpush1.msra.mxu0 0.0
    %3069 = vmatprep.subr.mxu0 0.0
    %3070 = vmatpush1.msra.mxu0 0.0
    %3071 = vmatprep.subr.mxu0 0.0
    %3072 = vmatpush1.msra.mxu0 0.0
    %3073 = vmatprep.subr.mxu0 0.0
    %3074 = vmatpush1.msra.mxu0 0.0
    %3075 = vmatprep.subr.mxu0 0.0
    %3076 = vmatpush1.msra.mxu0 0.0
    %3077 = vmatprep.subr.mxu0 0.0
    %3078 = vmatpush1.msra.mxu0 0.0
    %3079 = vmatprep.subr.mxu0 0.0
    %3080 = vmatpush1.msra.mxu0 0.0
    %3081 = vmatprep.subr.mxu0 0.0
    %3082 = vmatpush1.msra.mxu0 0.0
    %3083 = vmatprep.subr.mxu0 0.0
    %3084 = vmatpush1.msra.mxu0 0.0
    %3085 = vmatprep.subr.mxu0 0.0
    %3086 = vmatpush1.msra.mxu0 0.0
    %3087 = vmatprep.subr.mxu0 0.0
    %3088 = vmatpush1.msra.mxu0 0.0
    %3089 = vmatprep.subr.mxu0 0.0
    %3090 = vmatpush1.msra.mxu0 0.0
    %3091 = vmatprep.subr.mxu0 0.0
    %3092 = vmatpush1.msra.mxu0 0.0
    %3093 = vmatprep.subr.mxu0 0.0
    %3094 = vmatpush1.msra.mxu0 0.0
    %3095 = vmatprep.subr.mxu0 0.0
    %3096 = vmatpush1.msra.mxu0 0.0
    %3097 = vmatprep.subr.mxu0 0.0
    %3098 = vmatpush1.msra.mxu0 0.0
    %3099 = vmatprep.subr.mxu0 0.0
    %3100 = vmatpush1.msra.mxu0 0.0
    %3101 = vmatprep.subr.mxu0 0.0
    %3102 = vmatpush1.msra.mxu0 0.0
    %3103 = vmatprep.subr.mxu0 0.0
    %3104 = vmatpush1.msra.mxu0 0.0
    %3105 = vmatprep.subr.mxu0 0.0
    %3106 = vmatpush1.msra.mxu0 0.0
    %3107 = vmatprep.mubr.f32.mxu0 0.0
    %3108 = vmatmul.mubr.f32.gmra.mrb[0].mxu0 %v3041
    %v3109 = vpop.f32.mrb[0].mxu0
    %v3110 = vadd.f32 0.0, %v3109
    %v3111 = vpop.f32.mrb[0].mxu0
    %3112 = vdwg.mxu0
    %3113 = vrot.lane.b32.xlu0 %v2590, 32
    %v3114 = vpop.permute.xlu0 %3113
    %v3115 = vsel %vm103, %v3114, 0
    %3117 = vmatprep.subr.mxu0 0.0
    %3118 = vmatpush1.xpose.msra.mxu0 %v2634
    %3119 = vmatprep.subr.mxu0 0.0
    %3120 = vmatpush1.xpose.msra.mxu0 %v2636
    %3121 = vmatprep.subr.mxu0 0.0
    %3122 = vmatpush1.xpose.msra.mxu0 0.0
    %3123 = vmatprep.subr.mxu0 0.0
    %3124 = vmatpush1.xpose.msra.mxu0 0.0
    %3125 = vmatprep.subr.mxu0 0.0
    %3126 = vmatpush1.xpose.msra.mxu0 0.0
    %3127 = vmatprep.subr.mxu0 0.0
    %3128 = vmatpush1.xpose.msra.mxu0 0.0
    %3129 = vmatprep.subr.mxu0 0.0
    %3130 = vmatpush1.xpose.msra.mxu0 0.0
    %3131 = vmatprep.subr.mxu0 0.0
    %3132 = vmatpush1.xpose.msra.mxu0 0.0
    %3133 = vmatprep.subr.mxu0 0.0
    %3134 = vmatpush1.xpose.msra.mxu0 0.0
    %3135 = vmatprep.subr.mxu0 0.0
    %3136 = vmatpush1.xpose.msra.mxu0 0.0
    %3137 = vmatprep.subr.mxu0 0.0
    %3138 = vmatpush1.xpose.msra.mxu0 0.0
    %3139 = vmatprep.subr.mxu0 0.0
    %3140 = vmatpush1.xpose.msra.mxu0 0.0
    %3141 = vmatprep.subr.mxu0 0.0
    %3142 = vmatpush1.xpose.msra.mxu0 0.0
    %3143 = vmatprep.subr.mxu0 0.0
    %3144 = vmatpush1.xpose.msra.mxu0 0.0
    %3145 = vmatprep.subr.mxu0 0.0
    %3146 = vmatpush1.xpose.msra.mxu0 0.0
    %3147 = vmatprep.subr.mxu0 0.0
    %3148 = vmatpush1.xpose.msra.mxu0 0.0
    %3149 = vmatprep.subr.mxu0 0.0
    %3150 = vmatpush1.xpose.msra.mxu0 0.0
    %3151 = vmatprep.subr.mxu0 0.0
    %3152 = vmatpush1.xpose.msra.mxu0 0.0
    %3153 = vmatprep.subr.mxu0 0.0
    %3154 = vmatpush1.xpose.msra.mxu0 0.0
    %3155 = vmatprep.subr.mxu0 0.0
    %3156 = vmatpush1.xpose.msra.mxu0 0.0
    %3157 = vmatprep.subr.mxu0 0.0
    %3158 = vmatpush1.xpose.msra.mxu0 0.0
    %3159 = vmatprep.subr.mxu0 0.0
    %3160 = vmatpush1.xpose.msra.mxu0 0.0
    %3161 = vmatprep.subr.mxu0 0.0
    %3162 = vmatpush1.xpose.msra.mxu0 0.0
    %3163 = vmatprep.subr.mxu0 0.0
    %3164 = vmatpush1.xpose.msra.mxu0 0.0
    %3165 = vmatprep.subr.mxu0 0.0
    %3166 = vmatpush1.xpose.msra.mxu0 0.0
    %3167 = vmatprep.subr.mxu0 0.0
    %3168 = vmatpush1.xpose.msra.mxu0 0.0
    %3169 = vmatprep.subr.mxu0 0.0
    %3170 = vmatpush1.xpose.msra.mxu0 0.0
    %3171 = vmatprep.subr.mxu0 0.0
    %3172 = vmatpush1.xpose.msra.mxu0 0.0
    %3173 = vmatprep.subr.mxu0 0.0
    %3174 = vmatpush1.xpose.msra.mxu0 0.0
    %3175 = vmatprep.subr.mxu0 0.0
    %3176 = vmatpush1.xpose.msra.mxu0 0.0
    %3177 = vmatprep.subr.mxu0 0.0
    %3178 = vmatpush1.xpose.msra.mxu0 0.0
    %3179 = vmatprep.subr.mxu0 0.0
    %3180 = vmatpush1.xpose.msra.mxu0 0.0
    %3181 = vmatprep.mubr.f32.mxu0 0.0
    %3182 = vmatmul.mubr.f32.gmra.mrb[0].mxu0 %v3115
    %v3183 = vpop.f32.mrb[0].mxu0
    %v3184 = vadd.f32 %v59, %v3183
    %v3185 = vpop.f32.mrb[0].mxu0
    %3186 = vdwg.mxu0
    %v3187 = vsel %vm101, -3.4028235e+38, %v3184
    %v3188 = vsel %vm601, %v3187, -inf
    %3189 = vmax.xlane.f32.xlu0 %v3188
    %v3190 = vpop.xlane.xlu0 %3189
    %v3191 = vsub.f32 %v3187, %v3190
    %v3192 = vmul.f32 %v3191, 1.442695
    %v3193 = vpow.pop %v3192
    %v3194 = vsel %vm601, %v3193, 0.0
    %3195 = vadd.xlane.f32.xlu0 %v3194
    %v3196 = vpop.xlane.xlu0 %3195
    %v3197 = vrcp.pop %v3196
    %v3198 = vmul.f32 %v3193, %v3197
    %v3200 = vsel %vm601, %v3198, 0
    %3202 = vmatprep.subr.mxu0 0.0
    %3203 = vmatpush1.msra.mxu0 %v2629
    %3204 = vmatprep.subr.mxu0 0.0
    %3205 = vmatpush1.msra.mxu0 %v2723
    %3206 = vmatprep.subr.mxu0 0.0
    %3207 = vmatpush1.msra.mxu0 0.0
    %3208 = vmatprep.subr.mxu0 0.0
    %3209 = vmatpush1.msra.mxu0 0.0
    %3210 = vmatprep.subr.mxu0 0.0
    %3211 = vmatpush1.msra.mxu0 0.0
    %3212 = vmatprep.subr.mxu0 0.0
    %3213 = vmatpush1.msra.mxu0 0.0
    %3214 = vmatprep.subr.mxu0 0.0
    %3215 = vmatpush1.msra.mxu0 0.0
    %3216 = vmatprep.subr.mxu0 0.0
    %3217 = vmatpush1.msra.mxu0 0.0
    %3218 = vmatprep.subr.mxu0 0.0
    %3219 = vmatpush1.msra.mxu0 0.0
    %3220 = vmatprep.subr.mxu0 0.0
    %3221 = vmatpush1.msra.mxu0 0.0
    %3222 = vmatprep.subr.mxu0 0.0
    %3223 = vmatpush1.msra.mxu0 0.0
    %3224 = vmatprep.subr.mxu0 0.0
    %3225 = vmatpush1.msra.mxu0 0.0
    %3226 = vmatprep.subr.mxu0 0.0
    %3227 = vmatpush1.msra.mxu0 0.0
    %3228 = vmatprep.subr.mxu0 0.0
    %3229 = vmatpush1.msra.mxu0 0.0
    %3230 = vmatprep.subr.mxu0 0.0
    %3231 = vmatpush1.msra.mxu0 0.0
    %3232 = vmatprep.subr.mxu0 0.0
    %3233 = vmatpush1.msra.mxu0 0.0
    %3234 = vmatprep.subr.mxu0 0.0
    %3235 = vmatpush1.msra.mxu0 0.0
    %3236 = vmatprep.subr.mxu0 0.0
    %3237 = vmatpush1.msra.mxu0 0.0
    %3238 = vmatprep.subr.mxu0 0.0
    %3239 = vmatpush1.msra.mxu0 0.0
    %3240 = vmatprep.subr.mxu0 0.0
    %3241 = vmatpush1.msra.mxu0 0.0
    %3242 = vmatprep.subr.mxu0 0.0
    %3243 = vmatpush1.msra.mxu0 0.0
    %3244 = vmatprep.subr.mxu0 0.0
    %3245 = vmatpush1.msra.mxu0 0.0
    %3246 = vmatprep.subr.mxu0 0.0
    %3247 = vmatpush1.msra.mxu0 0.0
    %3248 = vmatprep.subr.mxu0 0.0
    %3249 = vmatpush1.msra.mxu0 0.0
    %3250 = vmatprep.subr.mxu0 0.0
    %3251 = vmatpush1.msra.mxu0 0.0
    %3252 = vmatprep.subr.mxu0 0.0
    %3253 = vmatpush1.msra.mxu0 0.0
    %3254 = vmatprep.subr.mxu0 0.0
    %3255 = vmatpush1.msra.mxu0 0.0
    %3256 = vmatprep.subr.mxu0 0.0
    %3257 = vmatpush1.msra.mxu0 0.0
    %3258 = vmatprep.subr.mxu0 0.0
    %3259 = vmatpush1.msra.mxu0 0.0
    %3260 = vmatprep.subr.mxu0 0.0
    %3261 = vmatpush1.msra.mxu0 0.0
    %3262 = vmatprep.subr.mxu0 0.0
    %3263 = vmatpush1.msra.mxu0 0.0
    %3264 = vmatprep.subr.mxu0 0.0
    %3265 = vmatpush1.msra.mxu0 0.0
    %3266 = vmatprep.mubr.f32.mxu0 0.0
    %3267 = vmatmul.mubr.f32.gmra.mrb[0].mxu0 %v3200
    %v3268 = vpop.f32.mrb[0].mxu0
    %v3269 = vadd.f32 0.0, %v3268
    %v3270 = vpop.f32.mrb[0].mxu0
    %3271 = vdwg.mxu0
    %3273 = vrot.lane.b32.xlu0 %v2951, 32
    %v3274 = vpop.permute.xlu0 %3273
    %3277 = vrot.lane.b32.xlu0 %v3110, 64
    %v3278 = vpop.permute.xlu0 %3277
    %3281 = vrot.lane.b32.xlu0 %v3269, 96
    %v3282 = vpop.permute.xlu0 %3281
    %v3284 = vsel %vm103, %v2792, %v3274
    %v3285 = vsel %vm1178, %v3284, %v3278
    %v3286 = vsel %vm1180, %v3285, %v3282
    %v3288 = vrot.slane %v2607, 7
    %v3290 = vsel %vm512, %v2617, %v3288
    %v3291 = vrot.slane %v2337, 7
    %3292 = vrot.lane.b32.xlu0 %v3291, 96
    %v3293 = vpop.permute.xlu0 %3292
    %v3295 = vsel %vm512, %v2623, %v3293
    %v3297 = vsel %vm103, %v2591, 0
    %v3300 = vsel %vm103, %v3290, 0
    %v3302 = vsel %vm103, %v3288, 0
    %3304 = vmatprep.subr.mxu0 0.0
    %3305 = vmatpush1.xpose.msra.mxu0 %v3300
    %3306 = vmatprep.subr.mxu0 0.0
    %3307 = vmatpush1.xpose.msra.mxu0 %v3302
    %3308 = vmatprep.subr.mxu0 0.0
    %3309 = vmatpush1.xpose.msra.mxu0 0.0
    %3310 = vmatprep.subr.mxu0 0.0
    %3311 = vmatpush1.xpose.msra.mxu0 0.0
    %3312 = vmatprep.subr.mxu0 0.0
    %3313 = vmatpush1.xpose.msra.mxu0 0.0
    %3314 = vmatprep.subr.mxu0 0.0
    %3315 = vmatpush1.xpose.msra.mxu0 0.0
    %3316 = vmatprep.subr.mxu0 0.0
    %3317 = vmatpush1.xpose.msra.mxu0 0.0
    %3318 = vmatprep.subr.mxu0 0.0
    %3319 = vmatpush1.xpose.msra.mxu0 0.0
    %3320 = vmatprep.subr.mxu0 0.0
    %3321 = vmatpush1.xpose.msra.mxu0 0.0
    %3322 = vmatprep.subr.mxu0 0.0
    %3323 = vmatpush1.xpose.msra.mxu0 0.0
    %3324 = vmatprep.subr.mxu0 0.0
    %3325 = vmatpush1.xpose.msra.mxu0 0.0
    %3326 = vmatprep.subr.mxu0 0.0
    %3327 = vmatpush1.xpose.msra.mxu0 0.0
    %3328 = vmatprep.subr.mxu0 0.0
    %3329 = vmatpush1.xpose.msra.mxu0 0.0
    %3330 = vmatprep.subr.mxu0 0.0
    %3331 = vmatpush1.xpose.msra.mxu0 0.0
    %3332 = vmatprep.subr.mxu0 0.0
    %3333 = vmatpush1.xpose.msra.mxu0 0.0
    %3334 = vmatprep.subr.mxu0 0.0
    %3335 = vmatpush1.xpose.msra.mxu0 0.0
    %3336 = vmatprep.subr.mxu0 0.0
    %3337 = vmatpush1.xpose.msra.mxu0 0.0
    %3338 = vmatprep.subr.mxu0 0.0
    %3339 = vmatpush1.xpose.msra.mxu0 0.0
    %3340 = vmatprep.subr.mxu0 0.0
    %3341 = vmatpush1.xpose.msra.mxu0 0.0
    %3342 = vmatprep.subr.mxu0 0.0
    %3343 = vmatpush1.xpose.msra.mxu0 0.0
    %3344 = vmatprep.subr.mxu0 0.0
    %3345 = vmatpush1.xpose.msra.mxu0 0.0
    %3346 = vmatprep.subr.mxu0 0.0
    %3347 = vmatpush1.xpose.msra.mxu0 0.0
    %3348 = vmatprep.subr.mxu0 0.0
    %3349 = vmatpush1.xpose.msra.mxu0 0.0
    %3350 = vmatprep.subr.mxu0 0.0
    %3351 = vmatpush1.xpose.msra.mxu0 0.0
    %3352 = vmatprep.subr.mxu0 0.0
    %3353 = vmatpush1.xpose.msra.mxu0 0.0
    %3354 = vmatprep.subr.mxu0 0.0
    %3355 = vmatpush1.xpose.msra.mxu0 0.0
    %3356 = vmatprep.subr.mxu0 0.0
    %3357 = vmatpush1.xpose.msra.mxu0 0.0
    %3358 = vmatprep.subr.mxu0 0.0
    %3359 = vmatpush1.xpose.msra.mxu0 0.0
    %3360 = vmatprep.subr.mxu0 0.0
    %3361 = vmatpush1.xpose.msra.mxu0 0.0
    %3362 = vmatprep.subr.mxu0 0.0
    %3363 = vmatpush1.xpose.msra.mxu0 0.0
    %3364 = vmatprep.subr.mxu0 0.0
    %3365 = vmatpush1.xpose.msra.mxu0 0.0
    %3366 = vmatprep.subr.mxu0 0.0
    %3367 = vmatpush1.xpose.msra.mxu0 0.0
    %3368 = vmatprep.mubr.f32.mxu0 0.0
    %3369 = vmatmul.mubr.f32.gmra.mrb[0].mxu0 %v3297
    %v3370 = vpop.f32.mrb[0].mxu0
    %v3371 = vadd.f32 %v56, %v3370
    %v3372 = vpop.f32.mrb[0].mxu0
    %3373 = vdwg.mxu0
    %v3374 = vsel %vm101, -3.4028235e+38, %v3371
    %v3375 = vsel %vm601, %v3374, -inf
    %3376 = vmax.xlane.f32.xlu0 %v3375
    %v3377 = vpop.xlane.xlu0 %3376
    %v3378 = vsub.f32 %v3374, %v3377
    %v3379 = vmul.f32 %v3378, 1.442695
    %v3380 = vpow.pop %v3379
    %v3381 = vsel %vm601, %v3380, 0.0
    %3382 = vadd.xlane.f32.xlu0 %v3381
    %v3383 = vpop.xlane.xlu0 %3382
    %v3384 = vrcp.pop %v3383
    %v3385 = vmul.f32 %v3380, %v3384
    %v3387 = vsel %vm601, %v3385, 0
    %v3389 = vsel %vm512, %v3293, 0
    %3391 = vmatprep.subr.mxu0 0.0
    %3392 = vmatpush1.msra.mxu0 %v3295
    %3393 = vmatprep.subr.mxu0 0.0
    %3394 = vmatpush1.msra.mxu0 %v3389
    %3395 = vmatprep.subr.mxu0 0.0
    %3396 = vmatpush1.msra.mxu0 0.0
    %3397 = vmatprep.subr.mxu0 0.0
    %3398 = vmatpush1.msra.mxu0 0.0
    %3399 = vmatprep.subr.mxu0 0.0
    %3400 = vmatpush1.msra.mxu0 0.0
    %3401 = vmatprep.subr.mxu0 0.0
    %3402 = vmatpush1.msra.mxu0 0.0
    %3403 = vmatprep.subr.mxu0 0.0
    %3404 = vmatpush1.msra.mxu0 0.0
    %3405 = vmatprep.subr.mxu0 0.0
    %3406 = vmatpush1.msra.mxu0 0.0
    %3407 = vmatprep.subr.mxu0 0.0
    %3408 = vmatpush1.msra.mxu0 0.0
    %3409 = vmatprep.subr.mxu0 0.0
    %3410 = vmatpush1.msra.mxu0 0.0
    %3411 = vmatprep.subr.mxu0 0.0
    %3412 = vmatpush1.msra.mxu0 0.0
    %3413 = vmatprep.subr.mxu0 0.0
    %3414 = vmatpush1.msra.mxu0 0.0
    %3415 = vmatprep.subr.mxu0 0.0
    %3416 = vmatpush1.msra.mxu0 0.0
    %3417 = vmatprep.subr.mxu0 0.0
    %3418 = vmatpush1.msra.mxu0 0.0
    %3419 = vmatprep.subr.mxu0 0.0
    %3420 = vmatpush1.msra.mxu0 0.0
    %3421 = vmatprep.subr.mxu0 0.0
    %3422 = vmatpush1.msra.mxu0 0.0
    %3423 = vmatprep.subr.mxu0 0.0
    %3424 = vmatpush1.msra.mxu0 0.0
    %3425 = vmatprep.subr.mxu0 0.0
    %3426 = vmatpush1.msra.mxu0 0.0
    %3427 = vmatprep.subr.mxu0 0.0
    %3428 = vmatpush1.msra.mxu0 0.0
    %3429 = vmatprep.subr.mxu0 0.0
    %3430 = vmatpush1.msra.mxu0 0.0
    %3431 = vmatprep.subr.mxu0 0.0
    %3432 = vmatpush1.msra.mxu0 0.0
    %3433 = vmatprep.subr.mxu0 0.0
    %3434 = vmatpush1.msra.mxu0 0.0
    %3435 = vmatprep.subr.mxu0 0.0
    %3436 = vmatpush1.msra.mxu0 0.0
    %3437 = vmatprep.subr.mxu0 0.0
    %3438 = vmatpush1.msra.mxu0 0.0
    %3439 = vmatprep.subr.mxu0 0.0
    %3440 = vmatpush1.msra.mxu0 0.0
    %3441 = vmatprep.subr.mxu0 0.0
    %3442 = vmatpush1.msra.mxu0 0.0
    %3443 = vmatprep.subr.mxu0 0.0
    %3444 = vmatpush1.msra.mxu0 0.0
    %3445 = vmatprep.subr.mxu0 0.0
    %3446 = vmatpush1.msra.mxu0 0.0
    %3447 = vmatprep.subr.mxu0 0.0
    %3448 = vmatpush1.msra.mxu0 0.0
    %3449 = vmatprep.subr.mxu0 0.0
    %3450 = vmatpush1.msra.mxu0 0.0
    %3451 = vmatprep.subr.mxu0 0.0
    %3452 = vmatpush1.msra.mxu0 0.0
    %3453 = vmatprep.subr.mxu0 0.0
    %3454 = vmatpush1.msra.mxu0 0.0
    %3455 = vmatprep.mubr.f32.mxu0 0.0
    %3456 = vmatmul.mubr.f32.gmra.mrb[0].mxu0 %v3387
    %v3457 = vpop.f32.mrb[0].mxu0
    %v3458 = vadd.f32 0.0, %v3457
    %v3459 = vpop.f32.mrb[0].mxu0
    %3460 = vdwg.mxu0
    %3461 = vrot.lane.b32.xlu0 %v2591, 96
    %v3462 = vpop.permute.xlu0 %3461
    %v3463 = vsel %vm103, %v3462, 0
    %3465 = vmatprep.subr.mxu0 0.0
    %3466 = vmatpush1.xpose.msra.mxu0 %v3300
    %3467 = vmatprep.subr.mxu0 0.0
    %3468 = vmatpush1.xpose.msra.mxu0 %v3302
    %3469 = vmatprep.subr.mxu0 0.0
    %3470 = vmatpush1.xpose.msra.mxu0 0.0
    %3471 = vmatprep.subr.mxu0 0.0
    %3472 = vmatpush1.xpose.msra.mxu0 0.0
    %3473 = vmatprep.subr.mxu0 0.0
    %3474 = vmatpush1.xpose.msra.mxu0 0.0
    %3475 = vmatprep.subr.mxu0 0.0
    %3476 = vmatpush1.xpose.msra.mxu0 0.0
    %3477 = vmatprep.subr.mxu0 0.0
    %3478 = vmatpush1.xpose.msra.mxu0 0.0
    %3479 = vmatprep.subr.mxu0 0.0
    %3480 = vmatpush1.xpose.msra.mxu0 0.0
    %3481 = vmatprep.subr.mxu0 0.0
    %3482 = vmatpush1.xpose.msra.mxu0 0.0
    %3483 = vmatprep.subr.mxu0 0.0
    %3484 = vmatpush1.xpose.msra.mxu0 0.0
    %3485 = vmatprep.subr.mxu0 0.0
    %3486 = vmatpush1.xpose.msra.mxu0 0.0
    %3487 = vmatprep.subr.mxu0 0.0
    %3488 = vmatpush1.xpose.msra.mxu0 0.0
    %3489 = vmatprep.subr.mxu0 0.0
    %3490 = vmatpush1.xpose.msra.mxu0 0.0
    %3491 = vmatprep.subr.mxu0 0.0
    %3492 = vmatpush1.xpose.msra.mxu0 0.0
    %3493 = vmatprep.subr.mxu0 0.0
    %3494 = vmatpush1.xpose.msra.mxu0 0.0
    %3495 = vmatprep.subr.mxu0 0.0
    %3496 = vmatpush1.xpose.msra.mxu0 0.0
    %3497 = vmatprep.subr.mxu0 0.0
    %3498 = vmatpush1.xpose.msra.mxu0 0.0
    %3499 = vmatprep.subr.mxu0 0.0
    %3500 = vmatpush1.xpose.msra.mxu0 0.0
    %3501 = vmatprep.subr.mxu0 0.0
    %3502 = vmatpush1.xpose.msra.mxu0 0.0
    %3503 = vmatprep.subr.mxu0 0.0
    %3504 = vmatpush1.xpose.msra.mxu0 0.0
    %3505 = vmatprep.subr.mxu0 0.0
    %3506 = vmatpush1.xpose.msra.mxu0 0.0
    %3507 = vmatprep.subr.mxu0 0.0
    %3508 = vmatpush1.xpose.msra.mxu0 0.0
    %3509 = vmatprep.subr.mxu0 0.0
    %3510 = vmatpush1.xpose.msra.mxu0 0.0
    %3511 = vmatprep.subr.mxu0 0.0
    %3512 = vmatpush1.xpose.msra.mxu0 0.0
    %3513 = vmatprep.subr.mxu0 0.0
    %3514 = vmatpush1.xpose.msra.mxu0 0.0
    %3515 = vmatprep.subr.mxu0 0.0
    %3516 = vmatpush1.xpose.msra.mxu0 0.0
    %3517 = vmatprep.subr.mxu0 0.0
    %3518 = vmatpush1.xpose.msra.mxu0 0.0
    %3519 = vmatprep.subr.mxu0 0.0
    %3520 = vmatpush1.xpose.msra.mxu0 0.0
    %3521 = vmatprep.subr.mxu0 0.0
    %3522 = vmatpush1.xpose.msra.mxu0 0.0
    %3523 = vmatprep.subr.mxu0 0.0
    %3524 = vmatpush1.xpose.msra.mxu0 0.0
    %3525 = vmatprep.subr.mxu0 0.0
    %3526 = vmatpush1.xpose.msra.mxu0 0.0
    %3527 = vmatprep.subr.mxu0 0.0
    %3528 = vmatpush1.xpose.msra.mxu0 0.0
    %3529 = vmatprep.mubr.f32.mxu0 0.0
    %3530 = vmatmul.mubr.f32.gmra.mrb[0].mxu0 %v3463
    %v3531 = vpop.f32.mrb[0].mxu0
    %v3532 = vadd.f32 %v57, %v3531
    %v3533 = vpop.f32.mrb[0].mxu0
    %3534 = vdwg.mxu0
    %v3535 = vsel %vm101, -3.4028235e+38, %v3532
    %v3536 = vsel %vm601, %v3535, -inf
    %3537 = vmax.xlane.f32.xlu0 %v3536
    %v3538 = vpop.xlane.xlu0 %3537
    %v3539 = vsub.f32 %v3535, %v3538
    %v3540 = vmul.f32 %v3539, 1.442695
    %v3541 = vpow.pop %v3540
    %v3542 = vsel %vm601, %v3541, 0.0
    %3543 = vadd.xlane.f32.xlu0 %v3542
    %v3544 = vpop.xlane.xlu0 %3543
    %v3545 = vrcp.pop %v3544
    %v3546 = vmul.f32 %v3541, %v3545
    %v3548 = vsel %vm601, %v3546, 0
    %3550 = vmatprep.subr.mxu0 0.0
    %3551 = vmatpush1.msra.mxu0 %v3295
    %3552 = vmatprep.subr.mxu0 0.0
    %3553 = vmatpush1.msra.mxu0 %v3389
    %3554 = vmatprep.subr.mxu0 0.0
    %3555 = vmatpush1.msra.mxu0 0.0
    %3556 = vmatprep.subr.mxu0 0.0
    %3557 = vmatpush1.msra.mxu0 0.0
    %3558 = vmatprep.subr.mxu0 0.0
    %3559 = vmatpush1.msra.mxu0 0.0
    %3560 = vmatprep.subr.mxu0 0.0
    %3561 = vmatpush1.msra.mxu0 0.0
    %3562 = vmatprep.subr.mxu0 0.0
    %3563 = vmatpush1.msra.mxu0 0.0
    %3564 = vmatprep.subr.mxu0 0.0
    %3565 = vmatpush1.msra.mxu0 0.0
    %3566 = vmatprep.subr.mxu0 0.0
    %3567 = vmatpush1.msra.mxu0 0.0
    %3568 = vmatprep.subr.mxu0 0.0
    %3569 = vmatpush1.msra.mxu0 0.0
    %3570 = vmatprep.subr.mxu0 0.0
    %3571 = vmatpush1.msra.mxu0 0.0
    %3572 = vmatprep.subr.mxu0 0.0
    %3573 = vmatpush1.msra.mxu0 0.0
    %3574 = vmatprep.subr.mxu0 0.0
    %3575 = vmatpush1.msra.mxu0 0.0
    %3576 = vmatprep.subr.mxu0 0.0
    %3577 = vmatpush1.msra.mxu0 0.0
    %3578 = vmatprep.subr.mxu0 0.0
    %3579 = vmatpush1.msra.mxu0 0.0
    %3580 = vmatprep.subr.mxu0 0.0
    %3581 = vmatpush1.msra.mxu0 0.0
    %3582 = vmatprep.subr.mxu0 0.0
    %3583 = vmatpush1.msra.mxu0 0.0
    %3584 = vmatprep.subr.mxu0 0.0
    %3585 = vmatpush1.msra.mxu0 0.0
    %3586 = vmatprep.subr.mxu0 0.0
    %3587 = vmatpush1.msra.mxu0 0.0
    %3588 = vmatprep.subr.mxu0 0.0
    %3589 = vmatpush1.msra.mxu0 0.0
    %3590 = vmatprep.subr.mxu0 0.0
    %3591 = vmatpush1.msra.mxu0 0.0
    %3592 = vmatprep.subr.mxu0 0.0
    %3593 = vmatpush1.msra.mxu0 0.0
    %3594 = vmatprep.subr.mxu0 0.0
    %3595 = vmatpush1.msra.mxu0 0.0
    %3596 = vmatprep.subr.mxu0 0.0
    %3597 = vmatpush1.msra.mxu0 0.0
    %3598 = vmatprep.subr.mxu0 0.0
    %3599 = vmatpush1.msra.mxu0 0.0
    %3600 = vmatprep.subr.mxu0 0.0
    %3601 = vmatpush1.msra.mxu0 0.0
    %3602 = vmatprep.subr.mxu0 0.0
    %3603 = vmatpush1.msra.mxu0 0.0
    %3604 = vmatprep.subr.mxu0 0.0
    %3605 = vmatpush1.msra.mxu0 0.0
    %3606 = vmatprep.subr.mxu0 0.0
    %3607 = vmatpush1.msra.mxu0 0.0
    %3608 = vmatprep.subr.mxu0 0.0
    %3609 = vmatpush1.msra.mxu0 0.0
    %3610 = vmatprep.subr.mxu0 0.0
    %3611 = vmatpush1.msra.mxu0 0.0
    %3612 = vmatprep.subr.mxu0 0.0
    %3613 = vmatpush1.msra.mxu0 0.0
    %3614 = vmatprep.mubr.f32.mxu0 0.0
    %3615 = vmatmul.mubr.f32.gmra.mrb[0].mxu0 %v3548
    %v3616 = vpop.f32.mrb[0].mxu0
    %v3617 = vadd.f32 0.0, %v3616
    %v3618 = vpop.f32.mrb[0].mxu0
    %3619 = vdwg.mxu0
    %3620 = vrot.lane.b32.xlu0 %v2591, 64
    %v3621 = vpop.permute.xlu0 %3620
    %v3622 = vsel %vm103, %v3621, 0
    %3624 = vmatprep.subr.mxu0 0.0
    %3625 = vmatpush1.xpose.msra.mxu0 %v3300
    %3626 = vmatprep.subr.mxu0 0.0
    %3627 = vmatpush1.xpose.msra.mxu0 %v3302
    %3628 = vmatprep.subr.mxu0 0.0
    %3629 = vmatpush1.xpose.msra.mxu0 0.0
    %3630 = vmatprep.subr.mxu0 0.0
    %3631 = vmatpush1.xpose.msra.mxu0 0.0
    %3632 = vmatprep.subr.mxu0 0.0
    %3633 = vmatpush1.xpose.msra.mxu0 0.0
    %3634 = vmatprep.subr.mxu0 0.0
    %3635 = vmatpush1.xpose.msra.mxu0 0.0
    %3636 = vmatprep.subr.mxu0 0.0
    %3637 = vmatpush1.xpose.msra.mxu0 0.0
    %3638 = vmatprep.subr.mxu0 0.0
    %3639 = vmatpush1.xpose.msra.mxu0 0.0
    %3640 = vmatprep.subr.mxu0 0.0
    %3641 = vmatpush1.xpose.msra.mxu0 0.0
    %3642 = vmatprep.subr.mxu0 0.0
    %3643 = vmatpush1.xpose.msra.mxu0 0.0
    %3644 = vmatprep.subr.mxu0 0.0
    %3645 = vmatpush1.xpose.msra.mxu0 0.0
    %3646 = vmatprep.subr.mxu0 0.0
    %3647 = vmatpush1.xpose.msra.mxu0 0.0
    %3648 = vmatprep.subr.mxu0 0.0
    %3649 = vmatpush1.xpose.msra.mxu0 0.0
    %3650 = vmatprep.subr.mxu0 0.0
    %3651 = vmatpush1.xpose.msra.mxu0 0.0
    %3652 = vmatprep.subr.mxu0 0.0
    %3653 = vmatpush1.xpose.msra.mxu0 0.0
    %3654 = vmatprep.subr.mxu0 0.0
    %3655 = vmatpush1.xpose.msra.mxu0 0.0
    %3656 = vmatprep.subr.mxu0 0.0
    %3657 = vmatpush1.xpose.msra.mxu0 0.0
    %3658 = vmatprep.subr.mxu0 0.0
    %3659 = vmatpush1.xpose.msra.mxu0 0.0
    %3660 = vmatprep.subr.mxu0 0.0
    %3661 = vmatpush1.xpose.msra.mxu0 0.0
    %3662 = vmatprep.subr.mxu0 0.0
    %3663 = vmatpush1.xpose.msra.mxu0 0.0
    %3664 = vmatprep.subr.mxu0 0.0
    %3665 = vmatpush1.xpose.msra.mxu0 0.0
    %3666 = vmatprep.subr.mxu0 0.0
    %3667 = vmatpush1.xpose.msra.mxu0 0.0
    %3668 = vmatprep.subr.mxu0 0.0
    %3669 = vmatpush1.xpose.msra.mxu0 0.0
    %3670 = vmatprep.subr.mxu0 0.0
    %3671 = vmatpush1.xpose.msra.mxu0 0.0
    %3672 = vmatprep.subr.mxu0 0.0
    %3673 = vmatpush1.xpose.msra.mxu0 0.0
    %3674 = vmatprep.subr.mxu0 0.0
    %3675 = vmatpush1.xpose.msra.mxu0 0.0
    %3676 = vmatprep.subr.mxu0 0.0
    %3677 = vmatpush1.xpose.msra.mxu0 0.0
    %3678 = vmatprep.subr.mxu0 0.0
    %3679 = vmatpush1.xpose.msra.mxu0 0.0
    %3680 = vmatprep.subr.mxu0 0.0
    %3681 = vmatpush1.xpose.msra.mxu0 0.0
    %3682 = vmatprep.subr.mxu0 0.0
    %3683 = vmatpush1.xpose.msra.mxu0 0.0
    %3684 = vmatprep.subr.mxu0 0.0
    %3685 = vmatpush1.xpose.msra.mxu0 0.0
    %3686 = vmatprep.subr.mxu0 0.0
    %3687 = vmatpush1.xpose.msra.mxu0 0.0
    %3688 = vmatprep.mubr.f32.mxu0 0.0
    %3689 = vmatmul.mubr.f32.gmra.mrb[0].mxu0 %v3622
    %v3690 = vpop.f32.mrb[0].mxu0
    %v3691 = vadd.f32 %v58, %v3690
    %v3692 = vpop.f32.mrb[0].mxu0
    %3693 = vdwg.mxu0
    %v3694 = vsel %vm101, -3.4028235e+38, %v3691
    %v3695 = vsel %vm601, %v3694, -inf
    %3696 = vmax.xlane.f32.xlu0 %v3695
    %v3697 = vpop.xlane.xlu0 %3696
    %v3698 = vsub.f32 %v3694, %v3697
    %v3699 = vmul.f32 %v3698, 1.442695
    %v3700 = vpow.pop %v3699
    %v3701 = vsel %vm601, %v3700, 0.0
    %3702 = vadd.xlane.f32.xlu0 %v3701
    %v3703 = vpop.xlane.xlu0 %3702
    %v3704 = vrcp.pop %v3703
    %v3705 = vmul.f32 %v3700, %v3704
    %v3707 = vsel %vm601, %v3705, 0
    %3709 = vmatprep.subr.mxu0 0.0
    %3710 = vmatpush1.msra.mxu0 %v3295
    %3711 = vmatprep.subr.mxu0 0.0
    %3712 = vmatpush1.msra.mxu0 %v3389
    %3713 = vmatprep.subr.mxu0 0.0
    %3714 = vmatpush1.msra.mxu0 0.0
    %3715 = vmatprep.subr.mxu0 0.0
    %3716 = vmatpush1.msra.mxu0 0.0
    %3717 = vmatprep.subr.mxu0 0.0
    %3718 = vmatpush1.msra.mxu0 0.0
    %3719 = vmatprep.subr.mxu0 0.0
    %3720 = vmatpush1.msra.mxu0 0.0
    %3721 = vmatprep.subr.mxu0 0.0
    %3722 = vmatpush1.msra.mxu0 0.0
    %3723 = vmatprep.subr.mxu0 0.0
    %3724 = vmatpush1.msra.mxu0 0.0
    %3725 = vmatprep.subr.mxu0 0.0
    %3726 = vmatpush1.msra.mxu0 0.0
    %3727 = vmatprep.subr.mxu0 0.0
    %3728 = vmatpush1.msra.mxu0 0.0
    %3729 = vmatprep.subr.mxu0 0.0
    %3730 = vmatpush1.msra.mxu0 0.0
    %3731 = vmatprep.subr.mxu0 0.0
    %3732 = vmatpush1.msra.mxu0 0.0
    %3733 = vmatprep.subr.mxu0 0.0
    %3734 = vmatpush1.msra.mxu0 0.0
    %3735 = vmatprep.subr.mxu0 0.0
    %3736 = vmatpush1.msra.mxu0 0.0
    %3737 = vmatprep.subr.mxu0 0.0
    %3738 = vmatpush1.msra.mxu0 0.0
    %3739 = vmatprep.subr.mxu0 0.0
    %3740 = vmatpush1.msra.mxu0 0.0
    %3741 = vmatprep.subr.mxu0 0.0
    %3742 = vmatpush1.msra.mxu0 0.0
    %3743 = vmatprep.subr.mxu0 0.0
    %3744 = vmatpush1.msra.mxu0 0.0
    %3745 = vmatprep.subr.mxu0 0.0
    %3746 = vmatpush1.msra.mxu0 0.0
    %3747 = vmatprep.subr.mxu0 0.0
    %3748 = vmatpush1.msra.mxu0 0.0
    %3749 = vmatprep.subr.mxu0 0.0
    %3750 = vmatpush1.msra.mxu0 0.0
    %3751 = vmatprep.subr.mxu0 0.0
    %3752 = vmatpush1.msra.mxu0 0.0
    %3753 = vmatprep.subr.mxu0 0.0
    %3754 = vmatpush1.msra.mxu0 0.0
    %3755 = vmatprep.subr.mxu0 0.0
    %3756 = vmatpush1.msra.mxu0 0.0
    %3757 = vmatprep.subr.mxu0 0.0
    %3758 = vmatpush1.msra.mxu0 0.0
    %3759 = vmatprep.subr.mxu0 0.0
    %3760 = vmatpush1.msra.mxu0 0.0
    %3761 = vmatprep.subr.mxu0 0.0
    %3762 = vmatpush1.msra.mxu0 0.0
    %3763 = vmatprep.subr.mxu0 0.0
    %3764 = vmatpush1.msra.mxu0 0.0
    %3765 = vmatprep.subr.mxu0 0.0
    %3766 = vmatpush1.msra.mxu0 0.0
    %3767 = vmatprep.subr.mxu0 0.0
    %3768 = vmatpush1.msra.mxu0 0.0
    %3769 = vmatprep.subr.mxu0 0.0
    %3770 = vmatpush1.msra.mxu0 0.0
    %3771 = vmatprep.subr.mxu0 0.0
    %3772 = vmatpush1.msra.mxu0 0.0
    %3773 = vmatprep.mubr.f32.mxu0 0.0
    %3774 = vmatmul.mubr.f32.gmra.mrb[0].mxu0 %v3707
    %v3775 = vpop.f32.mrb[0].mxu0
    %v3776 = vadd.f32 0.0, %v3775
    %v3777 = vpop.f32.mrb[0].mxu0
    %3778 = vdwg.mxu0
    %3779 = vrot.lane.b32.xlu0 %v2591, 32
    %v3780 = vpop.permute.xlu0 %3779
    %v3781 = vsel %vm103, %v3780, 0
    %3783 = vmatprep.subr.mxu0 0.0
    %3784 = vmatpush1.xpose.msra.mxu0 %v3300
    %3785 = vmatprep.subr.mxu0 0.0
    %3786 = vmatpush1.xpose.msra.mxu0 %v3302
    %3787 = vmatprep.subr.mxu0 0.0
    %3788 = vmatpush1.xpose.msra.mxu0 0.0
    %3789 = vmatprep.subr.mxu0 0.0
    %3790 = vmatpush1.xpose.msra.mxu0 0.0
    %3791 = vmatprep.subr.mxu0 0.0
    %3792 = vmatpush1.xpose.msra.mxu0 0.0
    %3793 = vmatprep.subr.mxu0 0.0
    %3794 = vmatpush1.xpose.msra.mxu0 0.0
    %3795 = vmatprep.subr.mxu0 0.0
    %3796 = vmatpush1.xpose.msra.mxu0 0.0
    %3797 = vmatprep.subr.mxu0 0.0
    %3798 = vmatpush1.xpose.msra.mxu0 0.0
    %3799 = vmatprep.subr.mxu0 0.0
    %3800 = vmatpush1.xpose.msra.mxu0 0.0
    %3801 = vmatprep.subr.mxu0 0.0
    %3802 = vmatpush1.xpose.msra.mxu0 0.0
    %3803 = vmatprep.subr.mxu0 0.0
    %3804 = vmatpush1.xpose.msra.mxu0 0.0
    %3805 = vmatprep.subr.mxu0 0.0
    %3806 = vmatpush1.xpose.msra.mxu0 0.0
    %3807 = vmatprep.subr.mxu0 0.0
    %3808 = vmatpush1.xpose.msra.mxu0 0.0
    %3809 = vmatprep.subr.mxu0 0.0
    %3810 = vmatpush1.xpose.msra.mxu0 0.0
    %3811 = vmatprep.subr.mxu0 0.0
    %3812 = vmatpush1.xpose.msra.mxu0 0.0
    %3813 = vmatprep.subr.mxu0 0.0
    %3814 = vmatpush1.xpose.msra.mxu0 0.0
    %3815 = vmatprep.subr.mxu0 0.0
    %3816 = vmatpush1.xpose.msra.mxu0 0.0
    %3817 = vmatprep.subr.mxu0 0.0
    %3818 = vmatpush1.xpose.msra.mxu0 0.0
    %3819 = vmatprep.subr.mxu0 0.0
    %3820 = vmatpush1.xpose.msra.mxu0 0.0
    %3821 = vmatprep.subr.mxu0 0.0
    %3822 = vmatpush1.xpose.msra.mxu0 0.0
    %3823 = vmatprep.subr.mxu0 0.0
    %3824 = vmatpush1.xpose.msra.mxu0 0.0
    %3825 = vmatprep.subr.mxu0 0.0
    %3826 = vmatpush1.xpose.msra.mxu0 0.0
    %3827 = vmatprep.subr.mxu0 0.0
    %3828 = vmatpush1.xpose.msra.mxu0 0.0
    %3829 = vmatprep.subr.mxu0 0.0
    %3830 = vmatpush1.xpose.msra.mxu0 0.0
    %3831 = vmatprep.subr.mxu0 0.0
    %3832 = vmatpush1.xpose.msra.mxu0 0.0
    %3833 = vmatprep.subr.mxu0 0.0
    %3834 = vmatpush1.xpose.msra.mxu0 0.0
    %3835 = vmatprep.subr.mxu0 0.0
    %3836 = vmatpush1.xpose.msra.mxu0 0.0
    %3837 = vmatprep.subr.mxu0 0.0
    %3838 = vmatpush1.xpose.msra.mxu0 0.0
    %3839 = vmatprep.subr.mxu0 0.0
    %3840 = vmatpush1.xpose.msra.mxu0 0.0
    %3841 = vmatprep.subr.mxu0 0.0
    %3842 = vmatpush1.xpose.msra.mxu0 0.0
    %3843 = vmatprep.subr.mxu0 0.0
    %3844 = vmatpush1.xpose.msra.mxu0 0.0
    %3845 = vmatprep.subr.mxu0 0.0
    %3846 = vmatpush1.xpose.msra.mxu0 0.0
    %3847 = vmatprep.mubr.f32.mxu0 0.0
    %3848 = vmatmul.mubr.f32.gmra.mrb[0].mxu0 %v3781
    %v3849 = vpop.f32.mrb[0].mxu0
    %v3850 = vadd.f32 %v59, %v3849
    %v3851 = vpop.f32.mrb[0].mxu0
    %3852 = vdwg.mxu0
    %v3853 = vsel %vm101, -3.4028235e+38, %v3850
    %v3854 = vsel %vm601, %v3853, -inf
    %3855 = vmax.xlane.f32.xlu0 %v3854
    %v3856 = vpop.xlane.xlu0 %3855
    %v3857 = vsub.f32 %v3853, %v3856
    %v3858 = vmul.f32 %v3857, 1.442695
    %v3859 = vpow.pop %v3858
    %v3860 = vsel %vm601, %v3859, 0.0
    %3861 = vadd.xlane.f32.xlu0 %v3860
    %v3862 = vpop.xlane.xlu0 %3861
    %v3863 = vrcp.pop %v3862
    %v3864 = vmul.f32 %v3859, %v3863
    %v3866 = vsel %vm601, %v3864, 0
    %3868 = vmatprep.subr.mxu0 0.0
    %3869 = vmatpush1.msra.mxu0 %v3295
    %3870 = vmatprep.subr.mxu0 0.0
    %3871 = vmatpush1.msra.mxu0 %v3389
    %3872 = vmatprep.subr.mxu0 0.0
    %3873 = vmatpush1.msra.mxu0 0.0
    %3874 = vmatprep.subr.mxu0 0.0
    %3875 = vmatpush1.msra.mxu0 0.0
    %3876 = vmatprep.subr.mxu0 0.0
    %3877 = vmatpush1.msra.mxu0 0.0
    %3878 = vmatprep.subr.mxu0 0.0
    %3879 = vmatpush1.msra.mxu0 0.0
    %3880 = vmatprep.subr.mxu0 0.0
    %3881 = vmatpush1.msra.mxu0 0.0
    %3882 = vmatprep.subr.mxu0 0.0
    %3883 = vmatpush1.msra.mxu0 0.0
    %3884 = vmatprep.subr.mxu0 0.0
    %3885 = vmatpush1.msra.mxu0 0.0
    %3886 = vmatprep.subr.mxu0 0.0
    %3887 = vmatpush1.msra.mxu0 0.0
    %3888 = vmatprep.subr.mxu0 0.0
    %3889 = vmatpush1.msra.mxu0 0.0
    %3890 = vmatprep.subr.mxu0 0.0
    %3891 = vmatpush1.msra.mxu0 0.0
    %3892 = vmatprep.subr.mxu0 0.0
    %3893 = vmatpush1.msra.mxu0 0.0
    %3894 = vmatprep.subr.mxu0 0.0
    %3895 = vmatpush1.msra.mxu0 0.0
    %3896 = vmatprep.subr.mxu0 0.0
    %3897 = vmatpush1.msra.mxu0 0.0
    %3898 = vmatprep.subr.mxu0 0.0
    %3899 = vmatpush1.msra.mxu0 0.0
    %3900 = vmatprep.subr.mxu0 0.0
    %3901 = vmatpush1.msra.mxu0 0.0
    %3902 = vmatprep.subr.mxu0 0.0
    %3903 = vmatpush1.msra.mxu0 0.0
    %3904 = vmatprep.subr.mxu0 0.0
    %3905 = vmatpush1.msra.mxu0 0.0
    %3906 = vmatprep.subr.mxu0 0.0
    %3907 = vmatpush1.msra.mxu0 0.0
    %3908 = vmatprep.subr.mxu0 0.0
    %3909 = vmatpush1.msra.mxu0 0.0
    %3910 = vmatprep.subr.mxu0 0.0
    %3911 = vmatpush1.msra.mxu0 0.0
    %3912 = vmatprep.subr.mxu0 0.0
    %3913 = vmatpush1.msra.mxu0 0.0
    %3914 = vmatprep.subr.mxu0 0.0
    %3915 = vmatpush1.msra.mxu0 0.0
    %3916 = vmatprep.subr.mxu0 0.0
    %3917 = vmatpush1.msra.mxu0 0.0
    %3918 = vmatprep.subr.mxu0 0.0
    %3919 = vmatpush1.msra.mxu0 0.0
    %3920 = vmatprep.subr.mxu0 0.0
    %3921 = vmatpush1.msra.mxu0 0.0
    %3922 = vmatprep.subr.mxu0 0.0
    %3923 = vmatpush1.msra.mxu0 0.0
    %3924 = vmatprep.subr.mxu0 0.0
    %3925 = vmatpush1.msra.mxu0 0.0
    %3926 = vmatprep.subr.mxu0 0.0
    %3927 = vmatpush1.msra.mxu0 0.0
    %3928 = vmatprep.subr.mxu0 0.0
    %3929 = vmatpush1.msra.mxu0 0.0
    %3930 = vmatprep.subr.mxu0 0.0
    %3931 = vmatpush1.msra.mxu0 0.0
    %3932 = vmatprep.mubr.f32.mxu0 0.0
    %3933 = vmatmul.mubr.f32.gmra.mrb[0].mxu0 %v3866
    %v3934 = vpop.f32.mrb[0].mxu0
    %v3935 = vadd.f32 0.0, %v3934
    %v3936 = vpop.f32.mrb[0].mxu0
    %3937 = vdwg.mxu0
    %3939 = vrot.lane.b32.xlu0 %v3617, 32
    %v3940 = vpop.permute.xlu0 %3939
    %3943 = vrot.lane.b32.xlu0 %v3776, 64
    %v3944 = vpop.permute.xlu0 %3943
    %3947 = vrot.lane.b32.xlu0 %v3935, 96
    %v3948 = vpop.permute.xlu0 %3947
    %v3950 = vsel %vm103, %v3458, %v3940
    %v3951 = vsel %vm1178, %v3950, %v3944
    %v3952 = vsel %vm1180, %v3951, %v3948
    %s3953 = scalar_lea.vmem %s9, 128
    %v3954 = vld [vmem:[%s3953] sm:$0xff]
    %v3955 = vld [vmem:[%s3953 + $0x8] sm:$0xff]
    %v3956 = vld [vmem:[%s3953 + $0x10] sm:$0xff]
    %v3957 = vld [vmem:[%s3953 + $0x18] sm:$0xff]
    %v3958 = vld [vmem:[%s3953 + $0x20] sm:$0xff]
    %v3959 = vld [vmem:[%s3953 + $0x28] sm:$0xff]
    %v3960 = vld [vmem:[%s3953 + $0x30] sm:$0xff]
    %v3961 = vld [vmem:[%s3953 + $0x38] sm:$0xff]
    %v3962 = vld [vmem:[%s3953 + $0x40] sm:$0xff]
    %v3963 = vld [vmem:[%s3953 + $0x48] sm:$0xff]
    %v3964 = vld [vmem:[%s3953 + $0x50] sm:$0xff]
    %v3965 = vld [vmem:[%s3953 + $0x58] sm:$0xff]
    %v3966 = vld [vmem:[%s3953 + $0x60] sm:$0xff]
    %v3967 = vld [vmem:[%s3953 + $0x68] sm:$0xff]
    %v3968 = vld [vmem:[%s3953 + $0x70] sm:$0xff]
    %v3969 = vld [vmem:[%s3953 + $0x78] sm:$0xff]
    %3970 = vmatprep.subr.mxu0 0.0
    %3971 = vmatpush1.msra.mxu0 %v3954
    %3972 = vmatprep.subr.mxu0 0.0
    %3973 = vmatpush1.msra.mxu0 %v3955
    %3974 = vmatprep.subr.mxu0 0.0
    %3975 = vmatpush1.msra.mxu0 %v3956
    %3976 = vmatprep.subr.mxu0 0.0
    %3977 = vmatpush1.msra.mxu0 %v3957
    %3978 = vmatprep.subr.mxu0 0.0
    %3979 = vmatpush1.msra.mxu0 %v3958
    %3980 = vmatprep.subr.mxu0 0.0
    %3981 = vmatpush1.msra.mxu0 %v3959
    %3982 = vmatprep.subr.mxu0 0.0
    %3983 = vmatpush1.msra.mxu0 %v3960
    %3984 = vmatprep.subr.mxu0 0.0
    %3985 = vmatpush1.msra.mxu0 %v3961
    %3986 = vmatprep.subr.mxu0 0.0
    %3987 = vmatpush1.msra.mxu0 %v3962
    %3988 = vmatprep.subr.mxu0 0.0
    %3989 = vmatpush1.msra.mxu0 %v3963
    %3990 = vmatprep.subr.mxu0 0.0
    %3991 = vmatpush1.msra.mxu0 %v3964
    %3992 = vmatprep.subr.mxu0 0.0
    %3993 = vmatpush1.msra.mxu0 %v3965
    %3994 = vmatprep.subr.mxu0 0.0
    %3995 = vmatpush1.msra.mxu0 %v3966
    %3996 = vmatprep.subr.mxu0 0.0
    %3997 = vmatpush1.msra.mxu0 %v3967
    %3998 = vmatprep.subr.mxu0 0.0
    %3999 = vmatpush1.msra.mxu0 %v3968
    %4000 = vmatprep.subr.mxu0 0.0
    %4001 = vmatpush1.msra.mxu0 %v3969
    %4002 = vmatprep.subr.mxu0 0.0
    %4003 = vmatpush1.msra.mxu0 0.0
    %4004 = vmatprep.subr.mxu0 0.0
    %4005 = vmatpush1.msra.mxu0 0.0
    %4006 = vmatprep.subr.mxu0 0.0
    %4007 = vmatpush1.msra.mxu0 0.0
    %4008 = vmatprep.subr.mxu0 0.0
    %4009 = vmatpush1.msra.mxu0 0.0
    %4010 = vmatprep.subr.mxu0 0.0
    %4011 = vmatpush1.msra.mxu0 0.0
    %4012 = vmatprep.subr.mxu0 0.0
    %4013 = vmatpush1.msra.mxu0 0.0
    %4014 = vmatprep.subr.mxu0 0.0
    %4015 = vmatpush1.msra.mxu0 0.0
    %4016 = vmatprep.subr.mxu0 0.0
    %4017 = vmatpush1.msra.mxu0 0.0
    %4018 = vmatprep.subr.mxu0 0.0
    %4019 = vmatpush1.msra.mxu0 0.0
    %4020 = vmatprep.subr.mxu0 0.0
    %4021 = vmatpush1.msra.mxu0 0.0
    %4022 = vmatprep.subr.mxu0 0.0
    %4023 = vmatpush1.msra.mxu0 0.0
    %4024 = vmatprep.subr.mxu0 0.0
    %4025 = vmatpush1.msra.mxu0 0.0
    %4026 = vmatprep.subr.mxu0 0.0
    %4027 = vmatpush1.msra.mxu0 0.0
    %4028 = vmatprep.subr.mxu0 0.0
    %4029 = vmatpush1.msra.mxu0 0.0
    %4030 = vmatprep.subr.mxu0 0.0
    %4031 = vmatpush1.msra.mxu0 0.0
    %4032 = vmatprep.subr.mxu0 0.0
    %4033 = vmatpush1.msra.mxu0 0.0
    %4034 = vmatprep.mubr.f32.mxu0 0.0
    %4035 = vmatmul.mubr.f32.gmra.mrb[0].mxu0 %v3286
    %v4036 = vpop.f32.mrb[0].mxu0
    %v4037 = vadd.f32 0.0, %v4036
    %v4038 = vpop.f32.mrb[0].mxu0
    %4039 = vmatprep.mubr.f32.mxu0 0.0
    %4040 = vmatmul.mubr.f32.gmra.mrb[0].mxu0 %v3952
    %v4041 = vpop.f32.mrb[0].mxu0
    %v4042 = vadd.f32 0.0, %v4041
    %v4043 = vpop.f32.mrb[0].mxu0
    %4044 = vdwg.mxu0
    %s4045 = scalar_lea.vmem %s10, 1
    %v4046 = vld [vmem:[%s4045] sm:$0x1]
    %v4047 = vsel %vm103, %v4037, 0.0
    %4048 = vadd.xlane.f32.xlu0 %v4047
    %v4049 = vpop.xlane.xlu0 %4048
    %v4050 = vsel %vm103, %v4042, 0.0
    %4051 = vadd.xlane.f32.xlu0 %v4050
    %v4052 = vpop.xlane.xlu0 %4051
    %v4053 = vmul.f32 %v4049, %v110
    %v4054 = vmul.f32 %v4052, %v110
    %v4055 = vsub.f32 %v4037, %v4053
    %v4056 = vsub.f32 %v4042, %v4054
    %v4057 = vmul.f32 %v4055, %v4055
    %v4058 = vmul.f32 %v4056, %v4056
    %v4059 = vsel %vm103, %v4057, 0.0
    %4060 = vadd.xlane.f32.xlu0 %v4059
    %v4061 = vpop.xlane.xlu0 %4060
    %v4062 = vsel %vm103, %v4058, 0.0
    %4063 = vadd.xlane.f32.xlu0 %v4062
    %v4064 = vpop.xlane.xlu0 %4063
    %v4065 = vmul.f32 %v4061, %v110
    %v4066 = vmul.f32 %v4064, %v110
    %v4067 = vadd.f32 %v4065, 1e-05
    %v4068 = vadd.f32 %v4066, 1e-05
    %v4069 = vrsqrt.pop %v4067
    %v4070 = vrsqrt.pop %v4068
    %v4071 = vmul.f32 %v4055, %v4069
    %v4072 = vmul.f32 %v4056, %v4070
    %v4074 = vlaneseq
    %v4075 = vshrl.u32 %v4074, 7
    %v4076 = vsub.s32 0, %v4075
    %v4077 = vrot.slane %v4046, %v4076
    %v4079 = vmul.f32 %v4071, %v4077
    %v4080 = vmul.f32 %v4072, %v4077
    %v4081 = vadd.f32 %v2209, %v4079
    %v4082 = vadd.f32 %v2210, %v4080
    %s4083 = scalar_lea.vmem %s11, 1
    %v4084 = vld [vmem:[%s4083] sm:$0x1]
    %v4085 = vsel %vm103, %v4081, 0.0
    %4086 = vadd.xlane.f32.xlu0 %v4085
    %v4087 = vpop.xlane.xlu0 %4086
    %v4088 = vsel %vm103, %v4082, 0.0
    %4089 = vadd.xlane.f32.xlu0 %v4088
    %v4090 = vpop.xlane.xlu0 %4089
    %v4091 = vmul.f32 %v4087, %v110
    %v4092 = vmul.f32 %v4090, %v110
    %v4093 = vsub.f32 %v4081, %v4091
    %v4094 = vsub.f32 %v4082, %v4092
    %v4095 = vmul.f32 %v4093, %v4093
    %v4096 = vmul.f32 %v4094, %v4094
    %v4097 = vsel %vm103, %v4095, 0.0
    %4098 = vadd.xlane.f32.xlu0 %v4097
    %v4099 = vpop.xlane.xlu0 %4098
    %v4100 = vsel %vm103, %v4096, 0.0
    %4101 = vadd.xlane.f32.xlu0 %v4100
    %v4102 = vpop.xlane.xlu0 %4101
    %v4103 = vmul.f32 %v4099, %v110
    %v4104 = vmul.f32 %v4102, %v110
    %v4105 = vadd.f32 %v4103, 1e-05
    %v4106 = vadd.f32 %v4104, 1e-05
    %v4107 = vrsqrt.pop %v4105
    %v4108 = vrsqrt.pop %v4106
    %v4109 = vmul.f32 %v4093, %v4107
    %v4110 = vmul.f32 %v4094, %v4108
    %v4112 = vlaneseq
    %v4113 = vshrl.u32 %v4112, 7
    %v4114 = vsub.s32 0, %v4113
    %v4115 = vrot.slane %v4084, %v4114
    %v4117 = vmul.f32 %v4109, %v4115
    %v4118 = vmul.f32 %v4110, %v4115
    %s4119 = scalar_lea.vmem %s12, 64
    %v4120 = vld [vmem:[%s4119] sm:$0xff]
    %v4121 = vld [vmem:[%s4119 + $0x8] sm:$0xff]
    %v4122 = vld [vmem:[%s4119 + $0x10] sm:$0xff]
    %v4123 = vld [vmem:[%s4119 + $0x18] sm:$0xff]
    %v4124 = vld [vmem:[%s4119 + $0x20] sm:$0xff]
    %v4125 = vld [vmem:[%s4119 + $0x28] sm:$0xff]
    %v4126 = vld [vmem:[%s4119 + $0x30] sm:$0xff]
    %v4127 = vld [vmem:[%s4119 + $0x38] sm:$0xff]
    %v4129 = vsel %vm103, %v4117, 0
    %v4132 = vsel %vm103, %v4118, 0
    %4134 = vmatprep.subr.mxu0 %v4121
    %4135 = vmatpush1.msra.mxu0 %v4120
    %4136 = vmatprep.subr.mxu0 %v4123
    %4137 = vmatpush1.msra.mxu0 %v4122
    %4138 = vmatprep.subr.mxu0 %v4125
    %4139 = vmatpush1.msra.mxu0 %v4124
    %4140 = vmatprep.subr.mxu0 %v4127
    %4141 = vmatpush1.msra.mxu0 %v4126
    %4142 = vmatprep.subr.mxu0 0.0
    %4143 = vmatpush1.msra.mxu0 0.0
    %4144 = vmatprep.subr.mxu0 0.0
    %4145 = vmatpush1.msra.mxu0 0.0
    %4146 = vmatprep.subr.mxu0 0.0
    %4147 = vmatpush1.msra.mxu0 0.0
    %4148 = vmatprep.subr.mxu0 0.0
    %4149 = vmatpush1.msra.mxu0 0.0
    %4150 = vmatprep.subr.mxu0 0.0
    %4151 = vmatpush1.msra.mxu0 0.0
    %4152 = vmatprep.subr.mxu0 0.0
    %4153 = vmatpush1.msra.mxu0 0.0
    %4154 = vmatprep.subr.mxu0 0.0
    %4155 = vmatpush1.msra.mxu0 0.0
    %4156 = vmatprep.subr.mxu0 0.0
    %4157 = vmatpush1.msra.mxu0 0.0
    %4158 = vmatprep.subr.mxu0 0.0
    %4159 = vmatpush1.msra.mxu0 0.0
    %4160 = vmatprep.subr.mxu0 0.0
    %4161 = vmatpush1.msra.mxu0 0.0
    %4162 = vmatprep.subr.mxu0 0.0
    %4163 = vmatpush1.msra.mxu0 0.0
    %4164 = vmatprep.subr.mxu0 0.0
    %4165 = vmatpush1.msra.mxu0 0.0
    %4166 = vmatprep.subr.mxu0 0.0
    %4167 = vmatpush1.msra.mxu0 0.0
    %4168 = vmatprep.subr.mxu0 0.0
    %4169 = vmatpush1.msra.mxu0 0.0
    %4170 = vmatprep.subr.mxu0 0.0
    %4171 = vmatpush1.msra.mxu0 0.0
    %4172 = vmatprep.subr.mxu0 0.0
    %4173 = vmatpush1.msra.mxu0 0.0
    %4174 = vmatprep.subr.mxu0 0.0
    %4175 = vmatpush1.msra.mxu0 0.0
    %4176 = vmatprep.subr.mxu0 0.0
    %4177 = vmatpush1.msra.mxu0 0.0
    %4178 = vmatprep.subr.mxu0 0.0
    %4179 = vmatpush1.msra.mxu0 0.0
    %4180 = vmatprep.subr.mxu0 0.0
    %4181 = vmatpush1.msra.mxu0 0.0
    %4182 = vmatprep.subr.mxu0 0.0
    %4183 = vmatpush1.msra.mxu0 0.0
    %4184 = vmatprep.subr.mxu0 0.0
    %4185 = vmatpush1.msra.mxu0 0.0
    %4186 = vmatprep.subr.mxu0 0.0
    %4187 = vmatpush1.msra.mxu0 0.0
    %4188 = vmatprep.subr.mxu0 0.0
    %4189 = vmatpush1.msra.mxu0 0.0
    %4190 = vmatprep.subr.mxu0 0.0
    %4191 = vmatpush1.msra.mxu0 0.0
    %4192 = vmatprep.subr.mxu0 0.0
    %4193 = vmatpush1.msra.mxu0 0.0
    %4194 = vmatprep.subr.mxu0 0.0
    %4195 = vmatpush1.msra.mxu0 0.0
    %4196 = vmatprep.subr.mxu0 0.0
    %4197 = vmatpush1.msra.mxu0 0.0
    %4198 = vmatprep.mubr.f32.mxu0 0.0
    %4199 = vmatmul.mubr.f32.gmra.mrb[0].mxu0 %v4129
    %v4200 = vpop.f32.mrb[0].mxu0
    %v4201 = vadd.f32 0.0, %v4200
    %v4202 = vpop.f32.mrb[0].mxu0
    %v4203 = vadd.f32 0.0, %v4202
    %4204 = vmatprep.mubr.f32.mxu0 0.0
    %4205 = vmatmul.mubr.f32.gmra.mrb[0].mxu0 %v4132
    %v4206 = vpop.f32.mrb[0].mxu0
    %v4207 = vadd.f32 0.0, %v4206
    %v4208 = vpop.f32.mrb[0].mxu0
    %v4209 = vadd.f32 0.0, %v4208
    %4210 = vdwg.mxu0
    %v4211 = vxor.u32 %v4203, 2147483648
    %v4212 = vxor.u32 %v4209, 2147483648
    %v4213 = vmul.f32 %v4211, 1.442695
    %v4214 = vpow.pop %v4213
    %v4215 = vmul.f32 %v4212, 1.442695
    %v4216 = vpow.pop %v4215
    %v4217 = vadd.f32 %v4214, 1.0
    %v4218 = vadd.f32 %v4216, 1.0
    %v4219 = vrcp.pop %v4217
    %v4220 = vmul.f32 1.0, %v4219
    %v4221 = vrcp.pop %v4218
    %v4222 = vmul.f32 1.0, %v4221
    %v4223 = vmul.f32 %v4203, %v4220
    %v4224 = vmul.f32 %v4209, %v4222
    %v4225 = vmul.f32 %v4201, %v4223
    %v4226 = vmul.f32 %v4207, %v4224
    %s4227 = scalar_lea.vmem %s13, 128
    %v4228 = vld [vmem:[%s4227] sm:$0xff]
    %v4229 = vld [vmem:[%s4227 + $0x8] sm:$0xff]
    %v4230 = vld [vmem:[%s4227 + $0x10] sm:$0xff]
    %v4231 = vld [vmem:[%s4227 + $0x18] sm:$0xff]
    %v4232 = vld [vmem:[%s4227 + $0x20] sm:$0xff]
    %v4233 = vld [vmem:[%s4227 + $0x28] sm:$0xff]
    %v4234 = vld [vmem:[%s4227 + $0x30] sm:$0xff]
    %v4235 = vld [vmem:[%s4227 + $0x38] sm:$0xff]
    %v4236 = vld [vmem:[%s4227 + $0x40] sm:$0xff]
    %v4237 = vld [vmem:[%s4227 + $0x48] sm:$0xff]
    %v4238 = vld [vmem:[%s4227 + $0x50] sm:$0xff]
    %v4239 = vld [vmem:[%s4227 + $0x58] sm:$0xff]
    %v4240 = vld [vmem:[%s4227 + $0x60] sm:$0xff]
    %v4241 = vld [vmem:[%s4227 + $0x68] sm:$0xff]
    %v4242 = vld [vmem:[%s4227 + $0x70] sm:$0xff]
    %v4243 = vld [vmem:[%s4227 + $0x78] sm:$0xff]
    %4244 = vmatprep.subr.mxu0 0.0
    %4245 = vmatpush1.msra.mxu0 %v4228
    %4246 = vmatprep.subr.mxu0 0.0
    %4247 = vmatpush1.msra.mxu0 %v4229
    %4248 = vmatprep.subr.mxu0 0.0
    %4249 = vmatpush1.msra.mxu0 %v4230
    %4250 = vmatprep.subr.mxu0 0.0
    %4251 = vmatpush1.msra.mxu0 %v4231
    %4252 = vmatprep.subr.mxu0 0.0
    %4253 = vmatpush1.msra.mxu0 %v4232
    %4254 = vmatprep.subr.mxu0 0.0
    %4255 = vmatpush1.msra.mxu0 %v4233
    %4256 = vmatprep.subr.mxu0 0.0
    %4257 = vmatpush1.msra.mxu0 %v4234
    %4258 = vmatprep.subr.mxu0 0.0
    %4259 = vmatpush1.msra.mxu0 %v4235
    %4260 = vmatprep.subr.mxu0 0.0
    %4261 = vmatpush1.msra.mxu0 %v4236
    %4262 = vmatprep.subr.mxu0 0.0
    %4263 = vmatpush1.msra.mxu0 %v4237
    %4264 = vmatprep.subr.mxu0 0.0
    %4265 = vmatpush1.msra.mxu0 %v4238
    %4266 = vmatprep.subr.mxu0 0.0
    %4267 = vmatpush1.msra.mxu0 %v4239
    %4268 = vmatprep.subr.mxu0 0.0
    %4269 = vmatpush1.msra.mxu0 %v4240
    %4270 = vmatprep.subr.mxu0 0.0
    %4271 = vmatpush1.msra.mxu0 %v4241
    %4272 = vmatprep.subr.mxu0 0.0
    %4273 = vmatpush1.msra.mxu0 %v4242
    %4274 = vmatprep.subr.mxu0 0.0
    %4275 = vmatpush1.msra.mxu0 %v4243
    %4276 = vmatprep.subr.mxu0 0.0
    %4277 = vmatpush1.msra.mxu0 0.0
    %4278 = vmatprep.subr.mxu0 0.0
    %4279 = vmatpush1.msra.mxu0 0.0
    %4280 = vmatprep.subr.mxu0 0.0
    %4281 = vmatpush1.msra.mxu0 0.0
    %4282 = vmatprep.subr.mxu0 0.0
    %4283 = vmatpush1.msra.mxu0 0.0
    %4284 = vmatprep.subr.mxu0 0.0
    %4285 = vmatpush1.msra.mxu0 0.0
    %4286 = vmatprep.subr.mxu0 0.0
    %4287 = vmatpush1.msra.mxu0 0.0
    %4288 = vmatprep.subr.mxu0 0.0
    %4289 = vmatpush1.msra.mxu0 0.0
    %4290 = vmatprep.subr.mxu0 0.0
    %4291 = vmatpush1.msra.mxu0 0.0
    %4292 = vmatprep.subr.mxu0 0.0
    %4293 = vmatpush1.msra.mxu0 0.0
    %4294 = vmatprep.subr.mxu0 0.0
    %4295 = vmatpush1.msra.mxu0 0.0
    %4296 = vmatprep.subr.mxu0 0.0
    %4297 = vmatpush1.msra.mxu0 0.0
    %4298 = vmatprep.subr.mxu0 0.0
    %4299 = vmatpush1.msra.mxu0 0.0
    %4300 = vmatprep.subr.mxu0 0.0
    %4301 = vmatpush1.msra.mxu0 0.0
    %4302 = vmatprep.subr.mxu0 0.0
    %4303 = vmatpush1.msra.mxu0 0.0
    %4304 = vmatprep.subr.mxu0 0.0
    %4305 = vmatpush1.msra.mxu0 0.0
    %4306 = vmatprep.subr.mxu0 0.0
    %4307 = vmatpush1.msra.mxu0 0.0
    %4308 = vmatprep.mubr.f32.mxu0 0.0
    %4309 = vmatmul.mubr.f32.gmra.mrb[0].mxu0 %v4225
    %v4310 = vpop.f32.mrb[0].mxu0
    %v4311 = vadd.f32 0.0, %v4310
    %v4312 = vpop.f32.mrb[0].mxu0
    %4313 = vmatprep.mubr.f32.mxu0 0.0
    %4314 = vmatmul.mubr.f32.gmra.mrb[0].mxu0 %v4226
    %v4315 = vpop.f32.mrb[0].mxu0
    %v4316 = vadd.f32 0.0, %v4315
    %v4317 = vpop.f32.mrb[0].mxu0
    %4318 = vdwg.mxu0
    %v4319 = vadd.f32 %v4081, %v4311
    %v4320 = vadd.f32 %v4082, %v4316
    %v4321 = vsel %vm103, %v4319, -inf
    %4322 = vmax.xlane.f32.xlu0 %v4321
    %v4323 = vpop.xlane.xlu0 %4322
    %v4324 = vsel %vm103, %v4320, -inf
    %4325 = vmax.xlane.f32.xlu0 %v4324
    %v4326 = vpop.xlane.xlu0 %4325
    %v4327 = vrcp.pop %v4323
    %v4328 = vmul.f32 %v4319, %v4327
    %v4329 = vrcp.pop %v4326
    %v4330 = vmul.f32 %v4320, %v4329
    %v4331 = vld [vmem:[%s14] sm:$0x1]
    %v4332 = vsel %vm103, %v4328, 0.0
    %4333 = vadd.xlane.f32.xlu0 %v4332
    %v4334 = vpop.xlane.xlu0 %4333
    %v4335 = vsel %vm103, %v4330, 0.0
    %4336 = vadd.xlane.f32.xlu0 %v4335
    %v4337 = vpop.xlane.xlu0 %4336
    %v4338 = vmul.f32 %v4334, %v110
    %v4339 = vmul.f32 %v4337, %v110
    %v4340 = vsub.f32 %v4328, %v4338
    %v4341 = vsub.f32 %v4330, %v4339
    %v4342 = vmul.f32 %v4340, %v4340
    %v4343 = vmul.f32 %v4341, %v4341
    %v4344 = vsel %vm103, %v4342, 0.0
    %4345 = vadd.xlane.f32.xlu0 %v4344
    %v4346 = vpop.xlane.xlu0 %4345
    %v4347 = vsel %vm103, %v4343, 0.0
    %4348 = vadd.xlane.f32.xlu0 %v4347
    %v4349 = vpop.xlane.xlu0 %4348
    %v4350 = vmul.f32 %v4346, %v110
    %v4351 = vmul.f32 %v4349, %v110
    %v4352 = vadd.f32 %v4350, 1e-05
    %v4353 = vadd.f32 %v4351, 1e-05
    %v4354 = vrsqrt.pop %v4352
    %v4355 = vrsqrt.pop %v4353
    %v4356 = vmul.f32 %v4340, %v4354
    %v4357 = vmul.f32 %v4341, %v4355
    %v4359 = vlaneseq
    %v4360 = vshrl.u32 %v4359, 7
    %v4361 = vsub.s32 0, %v4360
    %v4362 = vrot.slane %v4331, %v4361
    %v4364 = vmul.f32 %v4356, %v4362
    %v4365 = vmul.f32 %v4357, %v4362
    %v4366 = vld [vmem:[%s15] sm:$0xff]
    %v4367 = vld [vmem:[%s15 + $0x8] sm:$0xff]
    %v4368 = vld [vmem:[%s15 + $0x10] sm:$0xff]
    %v4369 = vld [vmem:[%s15 + $0x18] sm:$0xff]
    %v4371 = vsel %vm103, %v4364, 0
    %v4374 = vsel %vm103, %v4365, 0
    %4376 = vmatprep.subr.mxu0 0.0
    %4377 = vmatpush1.msra.mxu0 %v4366
    %4378 = vmatprep.subr.mxu0 0.0
    %4379 = vmatpush1.msra.mxu0 %v4367
    %4380 = vmatprep.subr.mxu0 0.0
    %4381 = vmatpush1.msra.mxu0 %v4368
    %4382 = vmatprep.subr.mxu0 0.0
    %4383 = vmatpush1.msra.mxu0 %v4369
    %4384 = vmatprep.subr.mxu0 0.0
    %4385 = vmatpush1.msra.mxu0 0.0
    %4386 = vmatprep.subr.mxu0 0.0
    %4387 = vmatpush1.msra.mxu0 0.0
    %4388 = vmatprep.subr.mxu0 0.0
    %4389 = vmatpush1.msra.mxu0 0.0
    %4390 = vmatprep.subr.mxu0 0.0
    %4391 = vmatpush1.msra.mxu0 0.0
    %4392 = vmatprep.subr.mxu0 0.0
    %4393 = vmatpush1.msra.mxu0 0.0
    %4394 = vmatprep.subr.mxu0 0.0
    %4395 = vmatpush1.msra.mxu0 0.0
    %4396 = vmatprep.subr.mxu0 0.0
    %4397 = vmatpush1.msra.mxu0 0.0
    %4398 = vmatprep.subr.mxu0 0.0
    %4399 = vmatpush1.msra.mxu0 0.0
    %4400 = vmatprep.subr.mxu0 0.0
    %4401 = vmatpush1.msra.mxu0 0.0
    %4402 = vmatprep.subr.mxu0 0.0
    %4403 = vmatpush1.msra.mxu0 0.0
    %4404 = vmatprep.subr.mxu0 0.0
    %4405 = vmatpush1.msra.mxu0 0.0
    %4406 = vmatprep.subr.mxu0 0.0
    %4407 = vmatpush1.msra.mxu0 0.0
    %4408 = vmatprep.subr.mxu0 0.0
    %4409 = vmatpush1.msra.mxu0 0.0
    %4410 = vmatprep.subr.mxu0 0.0
    %4411 = vmatpush1.msra.mxu0 0.0
    %4412 = vmatprep.subr.mxu0 0.0
    %4413 = vmatpush1.msra.mxu0 0.0
    %4414 = vmatprep.subr.mxu0 0.0
    %4415 = vmatpush1.msra.mxu0 0.0
    %4416 = vmatprep.subr.mxu0 0.0
    %4417 = vmatpush1.msra.mxu0 0.0
    %4418 = vmatprep.subr.mxu0 0.0
    %4419 = vmatpush1.msra.mxu0 0.0
    %4420 = vmatprep.subr.mxu0 0.0
    %4421 = vmatpush1.msra.mxu0 0.0
    %4422 = vmatprep.subr.mxu0 0.0
    %4423 = vmatpush1.msra.mxu0 0.0
    %4424 = vmatprep.subr.mxu0 0.0
    %4425 = vmatpush1.msra.mxu0 0.0
    %4426 = vmatprep.subr.mxu0 0.0
    %4427 = vmatpush1.msra.mxu0 0.0
    %4428 = vmatprep.subr.mxu0 0.0
    %4429 = vmatpush1.msra.mxu0 0.0
    %4430 = vmatprep.subr.mxu0 0.0
    %4431 = vmatpush1.msra.mxu0 0.0
    %4432 = vmatprep.subr.mxu0 0.0
    %4433 = vmatpush1.msra.mxu0 0.0
    %4434 = vmatprep.subr.mxu0 0.0
    %4435 = vmatpush1.msra.mxu0 0.0
    %4436 = vmatprep.subr.mxu0 0.0
    %4437 = vmatpush1.msra.mxu0 0.0
    %4438 = vmatprep.subr.mxu0 0.0
    %4439 = vmatpush1.msra.mxu0 0.0
    %4440 = vmatprep.mubr.f32.mxu0 0.0
    %4441 = vmatmul.mubr.f32.gmra.mrb[0].mxu0 %v4371
    %v4442 = vpop.f32.mrb[0].mxu0
    %v4443 = vadd.f32 0.0, %v4442
    %v4444 = vpop.f32.mrb[0].mxu0
    %4445 = vmatprep.mubr.f32.mxu0 0.0
    %4446 = vmatmul.mubr.f32.gmra.mrb[0].mxu0 %v4374
    %v4447 = vpop.f32.mrb[0].mxu0
    %v4448 = vadd.f32 0.0, %v4447
    %v4449 = vpop.f32.mrb[0].mxu0
    %4450 = vdwg.mxu0
    %4451 = vst.msk [vmem:[#allocation2] sm:$0xff] %vm103, %v4443
    %4452 = vst.msk [vmem:[#allocation2 + $0x8] sm:$0xff] %vm103, %v4448
    // Predicated region
    $region66: #{causal_transformer_forward.1} parent=1 // pred_check
      _
    $region67: #{causal_transformer_forward.1} parent=1 // pred_check_branch
      %4454 = sbr.rel (0) target = $region69
    $region68: #{causal_transformer_forward.1} parent=1 // pred_region
      %s4456 = ssub.s32 256, 256
      %4457 = vsyncadd [#allocation3], %s4456
      %s4458 = sshll.u32 [#allocation2], 4
      %s4459 = int_to_ptr.vmem [resolvable:$true] %s4458
      %4464 = dma.vmem_to_hbm [thread:$0]  %s4459, 256, %s16, [#allocation3], 128, 128, 8
    $region69: #{causal_transformer_forward.1} parent=1 // pred_fallthru
      _
    // Predicated region
    $region70: #{causal_transformer_forward.1} parent=1 // pred_check
      _
    $region71: #{causal_transformer_forward.1} parent=1 // pred_check_branch
      %4466 = sbr.rel (0) target = $region73
    $region72: #{causal_transformer_forward.1} parent=1 // pred_region
      %4467 = dma.done [#allocation3], 256
    $region73: #{causal_transformer_forward.1} parent=1 // pred_fallthru
      _
    %4468 = vsyncpa [#allocation3], 1

</llo_original>
